<compile_context>
chip_gen: v6e
topology: v6e:2x2x1
jax: 0.10.0
libtpu: 0.0.40
codegen_flags: <defaults>
</compile_context>

<pallas_src>
import functools

import jax
import jax.numpy as jnp
from jax.experimental import pallas as pl
from jax.experimental.pallas import tpu as pltpu


# Dtype of the hoisted gate pre-activation scratch.  bf16 halves the largest
# per-chunk buffer (and its per-step load traffic) at a small accuracy cost;
# f32 keeps the recurrence matched to the f32-gate reference.
GX_DTYPE = jnp.float32


def _round_up(x, m):
    return ((x + m - 1) // m) * m


def _tpu_hw():
    """(vmem_bytes_per_core, tensorcores_per_chip) with conservative fallbacks."""
    vmem = 128 * 1024 * 1024
    cores = 1
    try:
        vmem = int(getattr(pltpu.get_tpu_info(), "vmem_capacity_bytes", vmem)) or vmem
    except Exception:
        pass
    try:
        kind = jax.devices()[0].device_kind.lower()
    except Exception:
        kind = ""
    if "v7" in kind:                       # 2 TensorCores, 64 MiB VMEM per core
        cores = 2
        vmem = min(vmem, 64 * 1024 * 1024)
    return max(vmem, 32 * 1024 * 1024), cores


def _const_block_spec(shape, index_map):
    """Grid-invariant operand: request single buffering (saves one VMEM copy)."""
    try:
        return pl.BlockSpec(shape, index_map, pipeline_mode=pl.Buffered(1))
    except Exception:  # older JAX without pipeline_mode / Buffered
        return pl.BlockSpec(shape, index_map)


# ----------------------------------------------------------------------------
# Kernel 1: fused LSTM stack (all layers) per (batch block, time chunk)
# ----------------------------------------------------------------------------
def _lstm_stack_kernel(*refs, num_layers, chunk_len, batch_tile, hid):
    """refs = [x, (wih_t, whh_t, bias) * L, out, gx_sc, hc_sc].

    x:      (Tc*bb, Ep)   bf16   layer-0 input chunk, time-major, batch minor
    wih_t:  (In_p, 4*Hp)  bf16   input->gates weights (gate blocks lane-padded)
    whh_t:  (Hp, 4*Hp)    bf16   recurrent weights
    bias:   (1, 4*Hp)     f32    b_ih + b_hh (folded), zero in padded lanes
    out:    (Tc*bb, Hp)   bf16   hidden chunk (also the inter-layer buffer)
    gx_sc:  (Tc*bb, 4*Hp)        hoisted gate pre-activations
    hc_sc:  (2L, bb, Hp)  f32    per-layer (h, c) carried across time chunks
    """
    x_ref = refs[0]
    out_ref = refs[1 + 3 * num_layers]
    gx_sc = refs[2 + 3 * num_layers]
    hc_sc = refs[3 + 3 * num_layers]

    chunk_idx = pl.program_id(1)

    # hidden=None in the PyTorch forward -> zero-initialized (h, c).
    @pl.when(chunk_idx == 0)
    def _():
        hc_sc[...] = jnp.zeros(hc_sc.shape, hc_sc.dtype)

    # vreg-pressure-aware unroll of the sequential recurrence.
    if hid <= 256:
        unroll = True if chunk_len <= 16 else 4
    elif hid <= 512:
        unroll = 2
    else:
        unroll = 1

    for layer in range(num_layers):          # static: weights differ per layer
        wih_ref = refs[1 + 3 * layer]
        whh_ref = refs[2 + 3 * layer]
        b_ref = refs[3 + 3 * layer]

        # Hoisted input projection for the whole chunk (M = Tc*bb on the MXU),
        # bias folded in.  Layers > 0 read the previous layer's output straight
        # out of the (VMEM-resident) output block.
        src_ref = x_ref if layer == 0 else out_ref
        gx = jnp.dot(src_ref[...], wih_ref[...],
                     preferred_element_type=jnp.float32) + b_ref[...]
        gx_sc[...] = gx.astype(gx_sc.dtype)

        whh = whh_ref[...]                   # hoisted out of the time loop
        # TODO(synk): for small Hp, stage W_hh on the MXU across time steps via
        # pltpu.matmul_push_rhs / matmul_acc_lhs instead of re-streaming it.

        def step(t, carry):
            h, c = carry
            r = pl.multiple_of(t * batch_tile, batch_tile)
            gates = (gx_sc[pl.ds(r, batch_tile), :].astype(jnp.float32)
                     + jnp.dot(h.astype(jnp.bfloat16), whh,
                               preferred_element_type=jnp.float32))
            # Lane-aligned gate slices (hid is a multiple of 128).
            i_g = jax.nn.sigmoid(gates[:, 0 * hid:1 * hid])
            f_g = jax.nn.sigmoid(gates[:, 1 * hid:2 * hid])
            g_g = jnp.tanh(gates[:, 2 * hid:3 * hid])
            o_g = jax.nn.sigmoid(gates[:, 3 * hid:4 * hid])
            c_new = f_g * c + i_g * g_g
            h_new = o_g * jnp.tanh(c_new)
            out_ref[pl.ds(r, batch_tile), :] = h_new.astype(out_ref.dtype)
            return h_new, c_new

        h_fin, c_fin = jax.lax.fori_loop(
            0, chunk_len, step,
            (hc_sc[2 * layer], hc_sc[2 * layer + 1]),
            unroll=unroll)
        hc_sc[2 * layer] = h_fin
        hc_sc[2 * layer + 1] = c_fin


# ----------------------------------------------------------------------------
# Kernel 2: Linear (decoder_dim -> vocab) + LogSoftmax(dim=-1), row-tiled
# ----------------------------------------------------------------------------
def _fc_logsoftmax_kernel(x_ref, w_t_ref, b_ref, out_ref):
    # Padded vocab lanes carry bias = -1e30 so they never affect max / sum-exp.
    logits = (jnp.dot(x_ref[...], w_t_ref[...],
                      preferred_element_type=jnp.float32)
              + b_ref[...])                                   # (rows, Vp) f32
    m = jnp.max(logits, axis=-1, keepdims=True)
    z = logits - m
    lse = jnp.log(jnp.sum(jnp.exp(z), axis=-1, keepdims=True))
    out_ref[...] = z - lse


def _pick_row_tile(n_rows, hp, vp, vmem_limit):
    """Largest row tile (multiple of 8, <=512) that fits the VMEM budget."""
    fixed = hp * vp * 2 + vp * 4 + (2 << 20)          # single-buffered weight + bias + slack
    per_row = (vp * 4 + hp * 2) * 2                   # f32 out + bf16 x, double-buffered
    budget = int(vmem_limit * 0.8) - fixed
    rows = budget // per_row if budget > 0 else 8
    rows = max(8, min(512, (rows // 8) * 8))
    return min(rows, max(8, _round_up(n_rows, 8)))


def run_fc_logsoftmax(x_2d, w_fc_t_p, b_fc_p, vmem_limit):
    """x_2d: [N, Hp] bf16.  Returns log-probs [N, Vp] f32."""
    n, hp = x_2d.shape
    vp = w_fc_t_p.shape[1]
    rows = _pick_row_tile(n, hp, vp, vmem_limit)
    n_pad = _round_up(n, rows)
    if n_pad != n:
        x_2d = jnp.pad(x_2d, ((0, n_pad - n), (0, 0)))
    # TODO(synk): for vocabularies where the (Hp, Vp) bf16 weight no longer fits
    # VMEM, also tile Vp and switch to a streaming two-pass log-softmax.
    out = pl.pallas_call(
        _fc_logsoftmax_kernel,
        out_shape=jax.ShapeDtypeStruct((n_pad, vp), jnp.float32),
        grid_spec=pltpu.PrefetchScalarGridSpec(
            num_scalar_prefetch=0,
            grid=(n_pad // rows,),
            in_specs=[
                pl.BlockSpec((rows, hp), lambda i: (i, 0)),
                _const_block_spec((hp, vp), lambda i: (0, 0)),
                _const_block_spec((1, vp), lambda i: (0, 0)),
            ],
            out_specs=pl.BlockSpec((rows, vp), lambda i: (i, 0)),
        ),
        compiler_params=pltpu.CompilerParams(
            dimension_semantics=("parallel",),
            vmem_limit_bytes=vmem_limit),
    )(x_2d, w_fc_t_p, b_fc_p)
    return out[:n]


# ----------------------------------------------------------------------------
# Weight padding glue (PyTorch layout -> lane-aligned, transposed, bf16)
# ----------------------------------------------------------------------------
def _pad_gate_cols(w_t, h, hp, rows_p):
    """w_t: (rows, 4h) -> (rows_p, 4hp), each gate block placed at k*hp."""
    rows = w_t.shape[0]
    out = jnp.zeros((rows_p, 4 * hp), jnp.float32)
    for k in range(4):
        out = out.at[:rows, k * hp:k * hp + h].set(w_t[:, k * h:(k + 1) * h])
    return out


def _pad_gate_vec(b, h, hp):
    out = jnp.zeros((4 * hp,), jnp.float32)
    for k in range(4):
        out = out.at[k * hp:k * hp + h].set(b[k * h:(k + 1) * h])
    return out


# ----------------------------------------------------------------------------
# Module-equivalent forward
# ----------------------------------------------------------------------------
def lstm_decoder_forward(encoder_outputs, params):
    """encoder_outputs: [B, T, encoder_dim] -> log-probs [B, T, vocab_size]."""
    b_sz, t_len, e_dim = encoder_outputs.shape
    h_dim = params["lstm"][0][1].shape[1]          # w_hh: (4H, H)
    v_dim = params["w_fc"].shape[0]
    n_layers = len(params["lstm"])

    hp = _round_up(h_dim, 128)
    ep = _round_up(e_dim, 128)
    vp = _round_up(v_dim, 128)

    vmem_bytes, n_cores = _tpu_hw()
    vmem_limit = max(32 * 1024 * 1024, (vmem_bytes * 3) // 4)   # ~96 MiB v5e/v6e, ~48 MiB v7x

    # Split the batch across TensorCores only on multi-TC chips (v7x) and only
    # when each core keeps a meaningful batch; on single-TC v5e/v6e a grid of 2
    # would just serialize and double the sequential recurrence step count.
    g_blk = 2 if (n_cores >= 2 and b_sz >= 16) else 1
    # bf16 packs 16 sublanes/vreg: pad the per-core batch to 16 so per-step
    # stores of h are full, unmasked (16,128) tiles.
    bp = _round_up(b_sz, 16 * g_blk)
    bb = bp // g_blk

    # ---- weights: transpose, gate-pad to 128 lanes, fold biases, cast bf16 --
    flat_w = []
    weight_specs = []
    weights_bytes = 0
    for l, (w_ih, w_hh, b_ih, b_hh) in enumerate(params["lstm"]):
        in_p = ep if l == 0 else hp
        wih_t = _pad_gate_cols(w_ih.T, h_dim, hp, in_p).astype(jnp.bfloat16)
        whh_t = _pad_gate_cols(w_hh.T, h_dim, hp, hp).astype(jnp.bfloat16)
        bias = _pad_gate_vec(b_ih + b_hh, h_dim, hp).reshape(1, 4 * hp)
        flat_w += [wih_t, whh_t, bias]
        weight_specs += [
            _const_block_spec((in_p, 4 * hp), lambda g, c: (0, 0)),
            _const_block_spec((hp, 4 * hp), lambda g, c: (0, 0)),
            _const_block_spec((1, 4 * hp), lambda g, c: (0, 0)),
        ]
        weights_bytes += (in_p + hp) * 4 * hp * 2 + 4 * hp * 4

    # ---- time-chunk size from the VMEM budget ---------------------------------
    gx_item = jnp.dtype(GX_DTYPE).itemsize
    fixed = weights_bytes + 2 * n_layers * bb * hp * 4 + (2 << 20)      # weights + h/c + slack
    per_step = bb * (ep + hp) * 2 * 2 + bb * 4 * hp * gx_item           # x/out (2 bufs) + gx
    budget = int(vmem_limit * 0.8) - fixed
    tc = min(t_len, max(1, budget // per_step)) if budget > 0 else 1
    while t_len % tc:                         # keep chunks uniform
        tc -= 1
    n_chunks = t_len // tc

    # ---- input: bf16 first, then pad batch/feature, lay out [G, T*bb, Ep] -----
    x = encoder_outputs.astype(jnp.bfloat16)
    x = jnp.pad(x, ((0, bp - b_sz), (0, 0), (0, ep - e_dim)))            # [Bp,T,Ep]
    x = jnp.transpose(x, (1, 0, 2))                                      # [T,Bp,Ep]
    x = (x.reshape(t_len, g_blk, bb, ep)
          .transpose(1, 0, 2, 3)
          .reshape(g_blk, t_len * bb, ep))

    kernel = functools.partial(_lstm_stack_kernel, num_layers=n_layers,
                               chunk_len=tc, batch_tile=bb, hid=hp)
    hseq = pl.pallas_call(
        kernel,
        out_shape=jax.ShapeDtypeStruct((g_blk, t_len * bb, hp), jnp.bfloat16),
        grid_spec=pltpu.PrefetchScalarGridSpec(
            num_scalar_prefetch=0,
            grid=(g_blk, n_chunks),
            in_specs=[pl.BlockSpec((None, tc * bb, ep), lambda g, c: (g, c, 0))]
                     + weight_specs,
            out_specs=pl.BlockSpec((None, tc * bb, hp), lambda g, c: (g, c, 0)),
            scratch_shapes=[
                pltpu.VMEM((tc * bb, 4 * hp), GX_DTYPE),       # hoisted gates_x (per chunk)
                pltpu.VMEM((2 * n_layers, bb, hp), jnp.float32),  # per-layer (h, c) carry
            ],
        ),
        compiler_params=pltpu.CompilerParams(
            dimension_semantics=("parallel", "arbitrary"),
            vmem_limit_bytes=vmem_limit),
    )(x, *flat_w)

    # ---- de-interleave on the small bf16 activations (not the f32 log-probs) --
    hbt = (hseq.reshape(g_blk, t_len, bb, hp)
               .transpose(0, 2, 1, 3)
               .reshape(bp, t_len, hp)[:b_sz])                          # [B,T,Hp]
    flat = hbt.reshape(b_sz * t_len, hp)

    # ---- FC + log-softmax ------------------------------------------------------
    w_fc_t = (jnp.zeros((hp, vp), jnp.float32)
              .at[:h_dim, :v_dim].set(params["w_fc"].T)
              .astype(jnp.bfloat16))
    b_fc_p = (jnp.full((1, vp), -1e30, jnp.float32)
              .at[0, :v_dim].set(params["b_fc"]))

    logp = run_fc_logsoftmax(flat, w_fc_t, b_fc_p, vmem_limit)          # (B*T, Vp) f32
    return logp.reshape(b_sz, t_len, vp)[:, :, :v_dim]


# ----------------------------------------------------------------------------
# Deterministic parameter init (PyTorch-style uniform(-1/sqrt(H), 1/sqrt(H)))
# ----------------------------------------------------------------------------
def init_params(key, encoder_dim, decoder_dim, num_layers, vocab_size):
    h = decoder_dim
    k = 1.0 / jnp.sqrt(jnp.float32(h))
    params = {"lstm": []}
    for layer in range(num_layers):
        in_dim = encoder_dim if layer == 0 else h
        key, k1, k2, k3, k4 = jax.random.split(key, 5)
        params["lstm"].append((
            jax.random.uniform(k1, (4 * h, in_dim), jnp.float32, -k, k),
            jax.random.uniform(k2, (4 * h, h), jnp.float32, -k, k),
            jax.random.uniform(k3, (4 * h,), jnp.float32, -k, k),
            jax.random.uniform(k4, (4 * h,), jnp.float32, -k, k),
        ))
    key, k5, k6 = jax.random.split(key, 3)
    params["w_fc"] = jax.random.uniform(k5, (vocab_size, h), jnp.float32, -k, k)
    params["b_fc"] = jax.random.uniform(k6, (vocab_size,), jnp.float32, -k, k)
    return params


# ----------------------------------------------------------------------------
# Pure-JAX reference mirroring the kernel's precision policy
# (bf16 matmul operands, f32 accumulation/state/softmax)
# ----------------------------------------------------------------------------
def reference_forward(encoder_outputs, params):
    x = encoder_outputs.astype(jnp.float32)           # [B, T, E]
    b_sz, t_len, _ = x.shape
    for (w_ih, w_hh, b_ih, b_hh) in params["lstm"]:
        h_dim = w_hh.shape[1]
        wih_t = w_ih.T.astype(jnp.bfloat16)
        whh_t = w_hh.T.astype(jnp.bfloat16)
        bias = (b_ih + b_hh).astype(jnp.float32)
        xin = x.astype(jnp.bfloat16)
        h = jnp.zeros((b_sz, h_dim), jnp.float32)
        c = jnp.zeros((b_sz, h_dim), jnp.float32)
        outs = []
        for t in range(t_len):
            gates = (jnp.dot(xin[:, t], wih_t, preferred_element_type=jnp.float32)
                     + jnp.dot(h.astype(jnp.bfloat16), whh_t,
                               preferred_element_type=jnp.float32)
                     + bias)
            i, f, g, o = jnp.split(gates, 4, axis=-1)
            i, f, o = jax.nn.sigmoid(i), jax.nn.sigmoid(f), jax.nn.sigmoid(o)
            g = jnp.tanh(g)
            c = f * c + i * g
            h = o * jnp.tanh(c)
            outs.append(h)
        x = jnp.stack(outs, axis=1)                    # [B, T, H] f32
    logits = (jnp.dot(x.astype(jnp.bfloat16),
                      params["w_fc"].T.astype(jnp.bfloat16),
                      preferred_element_type=jnp.float32)
              + params["b_fc"])
    return jax.nn.log_softmax(logits, axis=-1)


if __name__ == "__main__":
    # Small shapes consistent with the module's forward:
    #   encoder_outputs: [batch=2, seq=8, encoder_dim=32]
    #   decoder_dim=32, decoder_layer_nums=2, vocab_size=64
    B, T, E, H, L, V = 2, 8, 32, 32, 2, 64

    key = jax.random.PRNGKey(0)
    key, pkey, xkey = jax.random.split(key, 3)
    params = init_params(pkey, E, H, L, V)
    encoder_outputs = jax.random.normal(xkey, (B, T, E), jnp.float32)

    probs = jax.block_until_ready(lstm_decoder_forward(encoder_outputs, params))
    ref = jax.block_until_ready(reference_forward(encoder_outputs, params))

    assert probs.shape == (B, T, V), probs.shape
    max_err = float(jnp.max(jnp.abs(probs - ref)))
    assert max_err < 5e-3, max_err

    print("KERNEL_OK")
</pallas_src>

<mosaic_0001>
module attributes {stable_mosaic.version = 11 : i64} {
  func.func @_lstm_stack_kernel(%arg0: i32, %arg1: i32, %arg2: memref<1x128x128xbf16, #tpu.memory_space<vmem>>, %arg3: memref<128x512xbf16, #tpu.memory_space<vmem>>, %arg4: memref<128x512xbf16, #tpu.memory_space<vmem>>, %arg5: memref<1x512xf32, #tpu.memory_space<vmem>>, %arg6: memref<128x512xbf16, #tpu.memory_space<vmem>>, %arg7: memref<128x512xbf16, #tpu.memory_space<vmem>>, %arg8: memref<1x512xf32, #tpu.memory_space<vmem>>, %arg9: memref<1x128x128xbf16, #tpu.memory_space<vmem>>, %arg10: memref<128x512xf32, #tpu.memory_space<vmem>>, %arg11: memref<4x16x128xf32, #tpu.memory_space<vmem>>) attributes {dimension_semantics = [#tpu.dimension_semantics<parallel>, #tpu.dimension_semantics<arbitrary>], iteration_bounds = array<i64: 1, 1>, scalar_prefetch = 0 : i64, scratch_operands = 2 : i64, tpu.core_type = #tpu.core_type<tc>, window_params = [{transform_indices = @transform_0, window_bounds = array<i64: 1, 128, 128>}, {pipeline_mode = #tpu.pipeline_mode<synchronous>, transform_indices = @transform_1, window_bounds = array<i64: 128, 512>}, {pipeline_mode = #tpu.pipeline_mode<synchronous>, transform_indices = @transform_2, window_bounds = array<i64: 128, 512>}, {pipeline_mode = #tpu.pipeline_mode<synchronous>, transform_indices = @transform_3, window_bounds = array<i64: 1, 512>}, {pipeline_mode = #tpu.pipeline_mode<synchronous>, transform_indices = @transform_4, window_bounds = array<i64: 128, 512>}, {pipeline_mode = #tpu.pipeline_mode<synchronous>, transform_indices = @transform_5, window_bounds = array<i64: 128, 512>}, {pipeline_mode = #tpu.pipeline_mode<synchronous>, transform_indices = @transform_6, window_bounds = array<i64: 1, 512>}, {transform_indices = @transform_7, window_bounds = array<i64: 1, 128, 128>}]} {
    %c0_i32 = arith.constant 0 : i32
    %0 = arith.cmpi eq, %arg1, %c0_i32 : i32
    %1 = arith.extui %0 : i1 to i32
    %c0_i32_0 = arith.constant 0 : i32
    %2 = arith.cmpi ne, %1, %c0_i32_0 : i32
    scf.if %2 {
      %cst_181 = arith.constant 0.000000e+00 : f32
      %633 = vector.broadcast %cst_181 : f32 to vector<4x16x128xf32>
      %c0_182 = arith.constant 0 : index
      %c0_183 = arith.constant 0 : index
      %c0_184 = arith.constant 0 : index
      %634 = vector.load %arg11[%c0_182, %c0_183, %c0_184] : memref<4x16x128xf32, #tpu.memory_space<vmem>>, vector<4x16x128xf32>
      tpu.vector_store %arg11[%c0_182, %c0_183, %c0_184], %633 {strides = array<i32>} : memref<4x16x128xf32, #tpu.memory_space<vmem>>, vector<4x16x128xf32>,
    } else {
    }
    %c0 = arith.constant 0 : index
    %c0_1 = arith.constant 0 : index
    %c0_2 = arith.constant 0 : index
    %3 = vector.load %arg2[%c0, %c0_1, %c0_2] : memref<1x128x128xbf16, #tpu.memory_space<vmem>>, vector<1x128x128xbf16>
    %4 = vector.shape_cast %3 : vector<1x128x128xbf16> to vector<128x128xbf16>
    %c0_3 = arith.constant 0 : index
    %c0_4 = arith.constant 0 : index
    %5 = vector.load %arg3[%c0_3, %c0_4] : memref<128x512xbf16, #tpu.memory_space<vmem>>, vector<128x512xbf16>
    %cst = arith.constant dense<0.000000e+00> : vector<128x512xf32>
    %6 = tpu.matmul %4, %5, %cst {dimension_numbers = #tpu.dot_dimension_numbers<[1], [0], [0], [1], [0, 0, 1, 1], [], []>} : vector<128x128xbf16>, vector<128x512xbf16>, vector<128x512xf32> -> vector<128x512xf32>
    %c0_5 = arith.constant 0 : index
    %c0_6 = arith.constant 0 : index
    %7 = vector.load %arg5[%c0_5, %c0_6] : memref<1x512xf32, #tpu.memory_space<vmem>>, vector<1x512xf32>
    %8 = vector.broadcast %7 : vector<1x512xf32> to vector<128x512xf32>
    %9 = arith.addf %6, %8 : vector<128x512xf32>
    %c0_7 = arith.constant 0 : index
    %c0_8 = arith.constant 0 : index
    %10 = vector.load %arg10[%c0_7, %c0_8] : memref<128x512xf32, #tpu.memory_space<vmem>>, vector<128x512xf32>
    tpu.vector_store %arg10[%c0_7, %c0_8], %9 {strides = array<i32>} : memref<128x512xf32, #tpu.memory_space<vmem>>, vector<128x512xf32>,
    %c0_9 = arith.constant 0 : index
    %c0_10 = arith.constant 0 : index
    %11 = vector.load %arg4[%c0_9, %c0_10] : memref<128x512xbf16, #tpu.memory_space<vmem>>, vector<128x512xbf16>
    %c0_11 = arith.constant 0 : index
    %c0_12 = arith.constant 0 : index
    %c0_13 = arith.constant 0 : index
    %12 = vector.load %arg11[%c0_11, %c0_12, %c0_13] : memref<4x16x128xf32, #tpu.memory_space<vmem>>, vector<1x16x128xf32>
    %13 = vector.shape_cast %12 : vector<1x16x128xf32> to vector<16x128xf32>
    %c1 = arith.constant 1 : index
    %c0_14 = arith.constant 0 : index
    %c0_15 = arith.constant 0 : index
    %14 = vector.load %arg11[%c1, %c0_14, %c0_15] : memref<4x16x128xf32, #tpu.memory_space<vmem>>, vector<1x16x128xf32>
    %15 = vector.shape_cast %14 : vector<1x16x128xf32> to vector<16x128xf32>
    %c0_i32_16 = arith.constant 0 : i32
    %c16_i32 = arith.constant 16 : i32
    %16 = arith.muli %c0_i32_16, %c16_i32 : i32
    %17 = tpu.assume_multiple %16, 16 : i32
    %18 = arith.index_cast %17 : i32 to index
    %c0_17 = arith.constant 0 : index
    %19 = vector.load %arg10[%18, %c0_17] : memref<128x512xf32, #tpu.memory_space<vmem>>, vector<16x512xf32>
    %20 = arith.truncf %13 : vector<16x128xf32> to vector<16x128xbf16>
    %cst_18 = arith.constant dense<0.000000e+00> : vector<16x512xf32>
    %21 = tpu.matmul %20, %11, %cst_18 {dimension_numbers = #tpu.dot_dimension_numbers<[1], [0], [0], [1], [0, 0, 1, 1], [], []>} : vector<16x128xbf16>, vector<128x512xbf16>, vector<16x512xf32> -> vector<16x512xf32>
    %22 = arith.addf %19, %21 : vector<16x512xf32>
    %23 = vector.extract_strided_slice %22 {offsets = [0, 0], sizes = [16, 128], strides = [1, 1]} : vector<16x512xf32> to vector<16x128xf32>
    %24 = arith.negf %23 : vector<16x128xf32>
    %25 = math.exp %24 : vector<16x128xf32>
    %cst_19 = arith.constant 1.000000e+00 : f32
    %26 = vector.broadcast %cst_19 : f32 to vector<16x128xf32>
    %27 = arith.addf %26, %25 : vector<16x128xf32>
    %28 = arith.divf %26, %27 : vector<16x128xf32>
    %29 = vector.extract_strided_slice %22 {offsets = [0, 128], sizes = [16, 128], strides = [1, 1]} : vector<16x512xf32> to vector<16x128xf32>
    %30 = arith.negf %29 : vector<16x128xf32>
    %31 = math.exp %30 : vector<16x128xf32>
    %cst_20 = arith.constant 1.000000e+00 : f32
    %32 = vector.broadcast %cst_20 : f32 to vector<16x128xf32>
    %33 = arith.addf %32, %31 : vector<16x128xf32>
    %34 = arith.divf %32, %33 : vector<16x128xf32>
    %35 = vector.extract_strided_slice %22 {offsets = [0, 256], sizes = [16, 128], strides = [1, 1]} : vector<16x512xf32> to vector<16x128xf32>
    %36 = math.tanh %35 : vector<16x128xf32>
    %37 = vector.extract_strided_slice %22 {offsets = [0, 384], sizes = [16, 128], strides = [1, 1]} : vector<16x512xf32> to vector<16x128xf32>
    %38 = arith.negf %37 : vector<16x128xf32>
    %39 = math.exp %38 : vector<16x128xf32>
    %cst_21 = arith.constant 1.000000e+00 : f32
    %40 = vector.broadcast %cst_21 : f32 to vector<16x128xf32>
    %41 = arith.addf %40, %39 : vector<16x128xf32>
    %42 = arith.divf %40, %41 : vector<16x128xf32>
    %43 = arith.mulf %34, %15 : vector<16x128xf32>
    %44 = arith.mulf %28, %36 : vector<16x128xf32>
    %45 = arith.addf %43, %44 : vector<16x128xf32>
    %46 = math.tanh %45 : vector<16x128xf32>
    %47 = arith.mulf %42, %46 : vector<16x128xf32>
    %48 = arith.truncf %47 : vector<16x128xf32> to vector<16x128xbf16>
    %c0_22 = arith.constant 0 : index
    %49 = arith.index_cast %17 : i32 to index
    %c0_23 = arith.constant 0 : index
    %50 = vector.load %arg9[%c0_22, %49, %c0_23] : memref<1x128x128xbf16, #tpu.memory_space<vmem>>, vector<1x16x128xbf16>
    %51 = vector.shape_cast %50 : vector<1x16x128xbf16> to vector<16x128xbf16>
    %52 = vector.shape_cast %48 : vector<16x128xbf16> to vector<1x16x128xbf16>
    tpu.vector_store %arg9[%c0_22, %49, %c0_23], %52 {strides = array<i32>} : memref<1x128x128xbf16, #tpu.memory_space<vmem>>, vector<1x16x128xbf16>,
    %c1_i32 = arith.constant 1 : i32
    %c16_i32_24 = arith.constant 16 : i32
    %53 = arith.muli %c1_i32, %c16_i32_24 : i32
    %54 = tpu.assume_multiple %53, 16 : i32
    %55 = arith.index_cast %54 : i32 to index
    %c0_25 = arith.constant 0 : index
    %56 = vector.load %arg10[%55, %c0_25] : memref<128x512xf32, #tpu.memory_space<vmem>>, vector<16x512xf32>
    %57 = arith.truncf %47 : vector<16x128xf32> to vector<16x128xbf16>
    %cst_26 = arith.constant dense<0.000000e+00> : vector<16x512xf32>
    %58 = tpu.matmul %57, %11, %cst_26 {dimension_numbers = #tpu.dot_dimension_numbers<[1], [0], [0], [1], [0, 0, 1, 1], [], []>} : vector<16x128xbf16>, vector<128x512xbf16>, vector<16x512xf32> -> vector<16x512xf32>
    %59 = arith.addf %56, %58 : vector<16x512xf32>
    %60 = vector.extract_strided_slice %59 {offsets = [0, 0], sizes = [16, 128], strides = [1, 1]} : vector<16x512xf32> to vector<16x128xf32>
    %61 = arith.negf %60 : vector<16x128xf32>
    %62 = math.exp %61 : vector<16x128xf32>
    %cst_27 = arith.constant 1.000000e+00 : f32
    %63 = vector.broadcast %cst_27 : f32 to vector<16x128xf32>
    %64 = arith.addf %63, %62 : vector<16x128xf32>
    %65 = arith.divf %63, %64 : vector<16x128xf32>
    %66 = vector.extract_strided_slice %59 {offsets = [0, 128], sizes = [16, 128], strides = [1, 1]} : vector<16x512xf32> to vector<16x128xf32>
    %67 = arith.negf %66 : vector<16x128xf32>
    %68 = math.exp %67 : vector<16x128xf32>
    %cst_28 = arith.constant 1.000000e+00 : f32
    %69 = vector.broadcast %cst_28 : f32 to vector<16x128xf32>
    %70 = arith.addf %69, %68 : vector<16x128xf32>
    %71 = arith.divf %69, %70 : vector<16x128xf32>
    %72 = vector.extract_strided_slice %59 {offsets = [0, 256], sizes = [16, 128], strides = [1, 1]} : vector<16x512xf32> to vector<16x128xf32>
    %73 = math.tanh %72 : vector<16x128xf32>
    %74 = vector.extract_strided_slice %59 {offsets = [0, 384], sizes = [16, 128], strides = [1, 1]} : vector<16x512xf32> to vector<16x128xf32>
    %75 = arith.negf %74 : vector<16x128xf32>
    %76 = math.exp %75 : vector<16x128xf32>
    %cst_29 = arith.constant 1.000000e+00 : f32
    %77 = vector.broadcast %cst_29 : f32 to vector<16x128xf32>
    %78 = arith.addf %77, %76 : vector<16x128xf32>
    %79 = arith.divf %77, %78 : vector<16x128xf32>
    %80 = arith.mulf %71, %45 : vector<16x128xf32>
    %81 = arith.mulf %65, %73 : vector<16x128xf32>
    %82 = arith.addf %80, %81 : vector<16x128xf32>
    %83 = math.tanh %82 : vector<16x128xf32>
    %84 = arith.mulf %79, %83 : vector<16x128xf32>
    %85 = arith.truncf %84 : vector<16x128xf32> to vector<16x128xbf16>
    %c0_30 = arith.constant 0 : index
    %86 = arith.index_cast %54 : i32 to index
    %c0_31 = arith.constant 0 : index
    %87 = vector.load %arg9[%c0_30, %86, %c0_31] : memref<1x128x128xbf16, #tpu.memory_space<vmem>>, vector<1x16x128xbf16>
    %88 = vector.shape_cast %87 : vector<1x16x128xbf16> to vector<16x128xbf16>
    %89 = vector.shape_cast %85 : vector<16x128xbf16> to vector<1x16x128xbf16>
    tpu.vector_store %arg9[%c0_30, %86, %c0_31], %89 {strides = array<i32>} : memref<1x128x128xbf16, #tpu.memory_space<vmem>>, vector<1x16x128xbf16>,
    %c2_i32 = arith.constant 2 : i32
    %c16_i32_32 = arith.constant 16 : i32
    %90 = arith.muli %c2_i32, %c16_i32_32 : i32
    %91 = tpu.assume_multiple %90, 16 : i32
    %92 = arith.index_cast %91 : i32 to index
    %c0_33 = arith.constant 0 : index
    %93 = vector.load %arg10[%92, %c0_33] : memref<128x512xf32, #tpu.memory_space<vmem>>, vector<16x512xf32>
    %94 = arith.truncf %84 : vector<16x128xf32> to vector<16x128xbf16>
    %cst_34 = arith.constant dense<0.000000e+00> : vector<16x512xf32>
    %95 = tpu.matmul %94, %11, %cst_34 {dimension_numbers = #tpu.dot_dimension_numbers<[1], [0], [0], [1], [0, 0, 1, 1], [], []>} : vector<16x128xbf16>, vector<128x512xbf16>, vector<16x512xf32> -> vector<16x512xf32>
    %96 = arith.addf %93, %95 : vector<16x512xf32>
    %97 = vector.extract_strided_slice %96 {offsets = [0, 0], sizes = [16, 128], strides = [1, 1]} : vector<16x512xf32> to vector<16x128xf32>
    %98 = arith.negf %97 : vector<16x128xf32>
    %99 = math.exp %98 : vector<16x128xf32>
    %cst_35 = arith.constant 1.000000e+00 : f32
    %100 = vector.broadcast %cst_35 : f32 to vector<16x128xf32>
    %101 = arith.addf %100, %99 : vector<16x128xf32>
    %102 = arith.divf %100, %101 : vector<16x128xf32>
    %103 = vector.extract_strided_slice %96 {offsets = [0, 128], sizes = [16, 128], strides = [1, 1]} : vector<16x512xf32> to vector<16x128xf32>
    %104 = arith.negf %103 : vector<16x128xf32>
    %105 = math.exp %104 : vector<16x128xf32>
    %cst_36 = arith.constant 1.000000e+00 : f32
    %106 = vector.broadcast %cst_36 : f32 to vector<16x128xf32>
    %107 = arith.addf %106, %105 : vector<16x128xf32>
    %108 = arith.divf %106, %107 : vector<16x128xf32>
    %109 = vector.extract_strided_slice %96 {offsets = [0, 256], sizes = [16, 128], strides = [1, 1]} : vector<16x512xf32> to vector<16x128xf32>
    %110 = math.tanh %109 : vector<16x128xf32>
    %111 = vector.extract_strided_slice %96 {offsets = [0, 384], sizes = [16, 128], strides = [1, 1]} : vector<16x512xf32> to vector<16x128xf32>
    %112 = arith.negf %111 : vector<16x128xf32>
    %113 = math.exp %112 : vector<16x128xf32>
    %cst_37 = arith.constant 1.000000e+00 : f32
    %114 = vector.broadcast %cst_37 : f32 to vector<16x128xf32>
    %115 = arith.addf %114, %113 : vector<16x128xf32>
    %116 = arith.divf %114, %115 : vector<16x128xf32>
    %117 = arith.mulf %108, %82 : vector<16x128xf32>
    %118 = arith.mulf %102, %110 : vector<16x128xf32>
    %119 = arith.addf %117, %118 : vector<16x128xf32>
    %120 = math.tanh %119 : vector<16x128xf32>
    %121 = arith.mulf %116, %120 : vector<16x128xf32>
    %122 = arith.truncf %121 : vector<16x128xf32> to vector<16x128xbf16>
    %c0_38 = arith.constant 0 : index
    %123 = arith.index_cast %91 : i32 to index
    %c0_39 = arith.constant 0 : index
    %124 = vector.load %arg9[%c0_38, %123, %c0_39] : memref<1x128x128xbf16, #tpu.memory_space<vmem>>, vector<1x16x128xbf16>
    %125 = vector.shape_cast %124 : vector<1x16x128xbf16> to vector<16x128xbf16>
    %126 = vector.shape_cast %122 : vector<16x128xbf16> to vector<1x16x128xbf16>
    tpu.vector_store %arg9[%c0_38, %123, %c0_39], %126 {strides = array<i32>} : memref<1x128x128xbf16, #tpu.memory_space<vmem>>, vector<1x16x128xbf16>,
    %c3_i32 = arith.constant 3 : i32
    %c16_i32_40 = arith.constant 16 : i32
    %127 = arith.muli %c3_i32, %c16_i32_40 : i32
    %128 = tpu.assume_multiple %127, 16 : i32
    %129 = arith.index_cast %128 : i32 to index
    %c0_41 = arith.constant 0 : index
    %130 = vector.load %arg10[%129, %c0_41] : memref<128x512xf32, #tpu.memory_space<vmem>>, vector<16x512xf32>
    %131 = arith.truncf %121 : vector<16x128xf32> to vector<16x128xbf16>
    %cst_42 = arith.constant dense<0.000000e+00> : vector<16x512xf32>
    %132 = tpu.matmul %131, %11, %cst_42 {dimension_numbers = #tpu.dot_dimension_numbers<[1], [0], [0], [1], [0, 0, 1, 1], [], []>} : vector<16x128xbf16>, vector<128x512xbf16>, vector<16x512xf32> -> vector<16x512xf32>
    %133 = arith.addf %130, %132 : vector<16x512xf32>
    %134 = vector.extract_strided_slice %133 {offsets = [0, 0], sizes = [16, 128], strides = [1, 1]} : vector<16x512xf32> to vector<16x128xf32>
    %135 = arith.negf %134 : vector<16x128xf32>
    %136 = math.exp %135 : vector<16x128xf32>
    %cst_43 = arith.constant 1.000000e+00 : f32
    %137 = vector.broadcast %cst_43 : f32 to vector<16x128xf32>
    %138 = arith.addf %137, %136 : vector<16x128xf32>
    %139 = arith.divf %137, %138 : vector<16x128xf32>
    %140 = vector.extract_strided_slice %133 {offsets = [0, 128], sizes = [16, 128], strides = [1, 1]} : vector<16x512xf32> to vector<16x128xf32>
    %141 = arith.negf %140 : vector<16x128xf32>
    %142 = math.exp %141 : vector<16x128xf32>
    %cst_44 = arith.constant 1.000000e+00 : f32
    %143 = vector.broadcast %cst_44 : f32 to vector<16x128xf32>
    %144 = arith.addf %143, %142 : vector<16x128xf32>
    %145 = arith.divf %143, %144 : vector<16x128xf32>
    %146 = vector.extract_strided_slice %133 {offsets = [0, 256], sizes = [16, 128], strides = [1, 1]} : vector<16x512xf32> to vector<16x128xf32>
    %147 = math.tanh %146 : vector<16x128xf32>
    %148 = vector.extract_strided_slice %133 {offsets = [0, 384], sizes = [16, 128], strides = [1, 1]} : vector<16x512xf32> to vector<16x128xf32>
    %149 = arith.negf %148 : vector<16x128xf32>
    %150 = math.exp %149 : vector<16x128xf32>
    %cst_45 = arith.constant 1.000000e+00 : f32
    %151 = vector.broadcast %cst_45 : f32 to vector<16x128xf32>
    %152 = arith.addf %151, %150 : vector<16x128xf32>
    %153 = arith.divf %151, %152 : vector<16x128xf32>
    %154 = arith.mulf %145, %119 : vector<16x128xf32>
    %155 = arith.mulf %139, %147 : vector<16x128xf32>
    %156 = arith.addf %154, %155 : vector<16x128xf32>
    %157 = math.tanh %156 : vector<16x128xf32>
    %158 = arith.mulf %153, %157 : vector<16x128xf32>
    %159 = arith.truncf %158 : vector<16x128xf32> to vector<16x128xbf16>
    %c0_46 = arith.constant 0 : index
    %160 = arith.index_cast %128 : i32 to index
    %c0_47 = arith.constant 0 : index
    %161 = vector.load %arg9[%c0_46, %160, %c0_47] : memref<1x128x128xbf16, #tpu.memory_space<vmem>>, vector<1x16x128xbf16>
    %162 = vector.shape_cast %161 : vector<1x16x128xbf16> to vector<16x128xbf16>
    %163 = vector.shape_cast %159 : vector<16x128xbf16> to vector<1x16x128xbf16>
    tpu.vector_store %arg9[%c0_46, %160, %c0_47], %163 {strides = array<i32>} : memref<1x128x128xbf16, #tpu.memory_space<vmem>>, vector<1x16x128xbf16>,
    %c4_i32 = arith.constant 4 : i32
    %c16_i32_48 = arith.constant 16 : i32
    %164 = arith.muli %c4_i32, %c16_i32_48 : i32
    %165 = tpu.assume_multiple %164, 16 : i32
    %166 = arith.index_cast %165 : i32 to index
    %c0_49 = arith.constant 0 : index
    %167 = vector.load %arg10[%166, %c0_49] : memref<128x512xf32, #tpu.memory_space<vmem>>, vector<16x512xf32>
    %168 = arith.truncf %158 : vector<16x128xf32> to vector<16x128xbf16>
    %cst_50 = arith.constant dense<0.000000e+00> : vector<16x512xf32>
    %169 = tpu.matmul %168, %11, %cst_50 {dimension_numbers = #tpu.dot_dimension_numbers<[1], [0], [0], [1], [0, 0, 1, 1], [], []>} : vector<16x128xbf16>, vector<128x512xbf16>, vector<16x512xf32> -> vector<16x512xf32>
    %170 = arith.addf %167, %169 : vector<16x512xf32>
    %171 = vector.extract_strided_slice %170 {offsets = [0, 0], sizes = [16, 128], strides = [1, 1]} : vector<16x512xf32> to vector<16x128xf32>
    %172 = arith.negf %171 : vector<16x128xf32>
    %173 = math.exp %172 : vector<16x128xf32>
    %cst_51 = arith.constant 1.000000e+00 : f32
    %174 = vector.broadcast %cst_51 : f32 to vector<16x128xf32>
    %175 = arith.addf %174, %173 : vector<16x128xf32>
    %176 = arith.divf %174, %175 : vector<16x128xf32>
    %177 = vector.extract_strided_slice %170 {offsets = [0, 128], sizes = [16, 128], strides = [1, 1]} : vector<16x512xf32> to vector<16x128xf32>
    %178 = arith.negf %177 : vector<16x128xf32>
    %179 = math.exp %178 : vector<16x128xf32>
    %cst_52 = arith.constant 1.000000e+00 : f32
    %180 = vector.broadcast %cst_52 : f32 to vector<16x128xf32>
    %181 = arith.addf %180, %179 : vector<16x128xf32>
    %182 = arith.divf %180, %181 : vector<16x128xf32>
    %183 = vector.extract_strided_slice %170 {offsets = [0, 256], sizes = [16, 128], strides = [1, 1]} : vector<16x512xf32> to vector<16x128xf32>
    %184 = math.tanh %183 : vector<16x128xf32>
    %185 = vector.extract_strided_slice %170 {offsets = [0, 384], sizes = [16, 128], strides = [1, 1]} : vector<16x512xf32> to vector<16x128xf32>
    %186 = arith.negf %185 : vector<16x128xf32>
    %187 = math.exp %186 : vector<16x128xf32>
    %cst_53 = arith.constant 1.000000e+00 : f32
    %188 = vector.broadcast %cst_53 : f32 to vector<16x128xf32>
    %189 = arith.addf %188, %187 : vector<16x128xf32>
    %190 = arith.divf %188, %189 : vector<16x128xf32>
    %191 = arith.mulf %182, %156 : vector<16x128xf32>
    %192 = arith.mulf %176, %184 : vector<16x128xf32>
    %193 = arith.addf %191, %192 : vector<16x128xf32>
    %194 = math.tanh %193 : vector<16x128xf32>
    %195 = arith.mulf %190, %194 : vector<16x128xf32>
    %196 = arith.truncf %195 : vector<16x128xf32> to vector<16x128xbf16>
    %c0_54 = arith.constant 0 : index
    %197 = arith.index_cast %165 : i32 to index
    %c0_55 = arith.constant 0 : index
    %198 = vector.load %arg9[%c0_54, %197, %c0_55] : memref<1x128x128xbf16, #tpu.memory_space<vmem>>, vector<1x16x128xbf16>
    %199 = vector.shape_cast %198 : vector<1x16x128xbf16> to vector<16x128xbf16>
    %200 = vector.shape_cast %196 : vector<16x128xbf16> to vector<1x16x128xbf16>
    tpu.vector_store %arg9[%c0_54, %197, %c0_55], %200 {strides = array<i32>} : memref<1x128x128xbf16, #tpu.memory_space<vmem>>, vector<1x16x128xbf16>,
    %c5_i32 = arith.constant 5 : i32
    %c16_i32_56 = arith.constant 16 : i32
    %201 = arith.muli %c5_i32, %c16_i32_56 : i32
    %202 = tpu.assume_multiple %201, 16 : i32
    %203 = arith.index_cast %202 : i32 to index
    %c0_57 = arith.constant 0 : index
    %204 = vector.load %arg10[%203, %c0_57] : memref<128x512xf32, #tpu.memory_space<vmem>>, vector<16x512xf32>
    %205 = arith.truncf %195 : vector<16x128xf32> to vector<16x128xbf16>
    %cst_58 = arith.constant dense<0.000000e+00> : vector<16x512xf32>
    %206 = tpu.matmul %205, %11, %cst_58 {dimension_numbers = #tpu.dot_dimension_numbers<[1], [0], [0], [1], [0, 0, 1, 1], [], []>} : vector<16x128xbf16>, vector<128x512xbf16>, vector<16x512xf32> -> vector<16x512xf32>
    %207 = arith.addf %204, %206 : vector<16x512xf32>
    %208 = vector.extract_strided_slice %207 {offsets = [0, 0], sizes = [16, 128], strides = [1, 1]} : vector<16x512xf32> to vector<16x128xf32>
    %209 = arith.negf %208 : vector<16x128xf32>
    %210 = math.exp %209 : vector<16x128xf32>
    %cst_59 = arith.constant 1.000000e+00 : f32
    %211 = vector.broadcast %cst_59 : f32 to vector<16x128xf32>
    %212 = arith.addf %211, %210 : vector<16x128xf32>
    %213 = arith.divf %211, %212 : vector<16x128xf32>
    %214 = vector.extract_strided_slice %207 {offsets = [0, 128], sizes = [16, 128], strides = [1, 1]} : vector<16x512xf32> to vector<16x128xf32>
    %215 = arith.negf %214 : vector<16x128xf32>
    %216 = math.exp %215 : vector<16x128xf32>
    %cst_60 = arith.constant 1.000000e+00 : f32
    %217 = vector.broadcast %cst_60 : f32 to vector<16x128xf32>
    %218 = arith.addf %217, %216 : vector<16x128xf32>
    %219 = arith.divf %217, %218 : vector<16x128xf32>
    %220 = vector.extract_strided_slice %207 {offsets = [0, 256], sizes = [16, 128], strides = [1, 1]} : vector<16x512xf32> to vector<16x128xf32>
    %221 = math.tanh %220 : vector<16x128xf32>
    %222 = vector.extract_strided_slice %207 {offsets = [0, 384], sizes = [16, 128], strides = [1, 1]} : vector<16x512xf32> to vector<16x128xf32>
    %223 = arith.negf %222 : vector<16x128xf32>
    %224 = math.exp %223 : vector<16x128xf32>
    %cst_61 = arith.constant 1.000000e+00 : f32
    %225 = vector.broadcast %cst_61 : f32 to vector<16x128xf32>
    %226 = arith.addf %225, %224 : vector<16x128xf32>
    %227 = arith.divf %225, %226 : vector<16x128xf32>
    %228 = arith.mulf %219, %193 : vector<16x128xf32>
    %229 = arith.mulf %213, %221 : vector<16x128xf32>
    %230 = arith.addf %228, %229 : vector<16x128xf32>
    %231 = math.tanh %230 : vector<16x128xf32>
    %232 = arith.mulf %227, %231 : vector<16x128xf32>
    %233 = arith.truncf %232 : vector<16x128xf32> to vector<16x128xbf16>
    %c0_62 = arith.constant 0 : index
    %234 = arith.index_cast %202 : i32 to index
    %c0_63 = arith.constant 0 : index
    %235 = vector.load %arg9[%c0_62, %234, %c0_63] : memref<1x128x128xbf16, #tpu.memory_space<vmem>>, vector<1x16x128xbf16>
    %236 = vector.shape_cast %235 : vector<1x16x128xbf16> to vector<16x128xbf16>
    %237 = vector.shape_cast %233 : vector<16x128xbf16> to vector<1x16x128xbf16>
    tpu.vector_store %arg9[%c0_62, %234, %c0_63], %237 {strides = array<i32>} : memref<1x128x128xbf16, #tpu.memory_space<vmem>>, vector<1x16x128xbf16>,
    %c6_i32 = arith.constant 6 : i32
    %c16_i32_64 = arith.constant 16 : i32
    %238 = arith.muli %c6_i32, %c16_i32_64 : i32
    %239 = tpu.assume_multiple %238, 16 : i32
    %240 = arith.index_cast %239 : i32 to index
    %c0_65 = arith.constant 0 : index
    %241 = vector.load %arg10[%240, %c0_65] : memref<128x512xf32, #tpu.memory_space<vmem>>, vector<16x512xf32>
    %242 = arith.truncf %232 : vector<16x128xf32> to vector<16x128xbf16>
    %cst_66 = arith.constant dense<0.000000e+00> : vector<16x512xf32>
    %243 = tpu.matmul %242, %11, %cst_66 {dimension_numbers = #tpu.dot_dimension_numbers<[1], [0], [0], [1], [0, 0, 1, 1], [], []>} : vector<16x128xbf16>, vector<128x512xbf16>, vector<16x512xf32> -> vector<16x512xf32>
    %244 = arith.addf %241, %243 : vector<16x512xf32>
    %245 = vector.extract_strided_slice %244 {offsets = [0, 0], sizes = [16, 128], strides = [1, 1]} : vector<16x512xf32> to vector<16x128xf32>
    %246 = arith.negf %245 : vector<16x128xf32>
    %247 = math.exp %246 : vector<16x128xf32>
    %cst_67 = arith.constant 1.000000e+00 : f32
    %248 = vector.broadcast %cst_67 : f32 to vector<16x128xf32>
    %249 = arith.addf %248, %247 : vector<16x128xf32>
    %250 = arith.divf %248, %249 : vector<16x128xf32>
    %251 = vector.extract_strided_slice %244 {offsets = [0, 128], sizes = [16, 128], strides = [1, 1]} : vector<16x512xf32> to vector<16x128xf32>
    %252 = arith.negf %251 : vector<16x128xf32>
    %253 = math.exp %252 : vector<16x128xf32>
    %cst_68 = arith.constant 1.000000e+00 : f32
    %254 = vector.broadcast %cst_68 : f32 to vector<16x128xf32>
    %255 = arith.addf %254, %253 : vector<16x128xf32>
    %256 = arith.divf %254, %255 : vector<16x128xf32>
    %257 = vector.extract_strided_slice %244 {offsets = [0, 256], sizes = [16, 128], strides = [1, 1]} : vector<16x512xf32> to vector<16x128xf32>
    %258 = math.tanh %257 : vector<16x128xf32>
    %259 = vector.extract_strided_slice %244 {offsets = [0, 384], sizes = [16, 128], strides = [1, 1]} : vector<16x512xf32> to vector<16x128xf32>
    %260 = arith.negf %259 : vector<16x128xf32>
    %261 = math.exp %260 : vector<16x128xf32>
    %cst_69 = arith.constant 1.000000e+00 : f32
    %262 = vector.broadcast %cst_69 : f32 to vector<16x128xf32>
    %263 = arith.addf %262, %261 : vector<16x128xf32>
    %264 = arith.divf %262, %263 : vector<16x128xf32>
    %265 = arith.mulf %256, %230 : vector<16x128xf32>
    %266 = arith.mulf %250, %258 : vector<16x128xf32>
    %267 = arith.addf %265, %266 : vector<16x128xf32>
    %268 = math.tanh %267 : vector<16x128xf32>
    %269 = arith.mulf %264, %268 : vector<16x128xf32>
    %270 = arith.truncf %269 : vector<16x128xf32> to vector<16x128xbf16>
    %c0_70 = arith.constant 0 : index
    %271 = arith.index_cast %239 : i32 to index
    %c0_71 = arith.constant 0 : index
    %272 = vector.load %arg9[%c0_70, %271, %c0_71] : memref<1x128x128xbf16, #tpu.memory_space<vmem>>, vector<1x16x128xbf16>
    %273 = vector.shape_cast %272 : vector<1x16x128xbf16> to vector<16x128xbf16>
    %274 = vector.shape_cast %270 : vector<16x128xbf16> to vector<1x16x128xbf16>
    tpu.vector_store %arg9[%c0_70, %271, %c0_71], %274 {strides = array<i32>} : memref<1x128x128xbf16, #tpu.memory_space<vmem>>, vector<1x16x128xbf16>,
    %c7_i32 = arith.constant 7 : i32
    %c16_i32_72 = arith.constant 16 : i32
    %275 = arith.muli %c7_i32, %c16_i32_72 : i32
    %276 = tpu.assume_multiple %275, 16 : i32
    %277 = arith.index_cast %276 : i32 to index
    %c0_73 = arith.constant 0 : index
    %278 = vector.load %arg10[%277, %c0_73] : memref<128x512xf32, #tpu.memory_space<vmem>>, vector<16x512xf32>
    %279 = arith.truncf %269 : vector<16x128xf32> to vector<16x128xbf16>
    %cst_74 = arith.constant dense<0.000000e+00> : vector<16x512xf32>
    %280 = tpu.matmul %279, %11, %cst_74 {dimension_numbers = #tpu.dot_dimension_numbers<[1], [0], [0], [1], [0, 0, 1, 1], [], []>} : vector<16x128xbf16>, vector<128x512xbf16>, vector<16x512xf32> -> vector<16x512xf32>
    %281 = arith.addf %278, %280 : vector<16x512xf32>
    %282 = vector.extract_strided_slice %281 {offsets = [0, 0], sizes = [16, 128], strides = [1, 1]} : vector<16x512xf32> to vector<16x128xf32>
    %283 = arith.negf %282 : vector<16x128xf32>
    %284 = math.exp %283 : vector<16x128xf32>
    %cst_75 = arith.constant 1.000000e+00 : f32
    %285 = vector.broadcast %cst_75 : f32 to vector<16x128xf32>
    %286 = arith.addf %285, %284 : vector<16x128xf32>
    %287 = arith.divf %285, %286 : vector<16x128xf32>
    %288 = vector.extract_strided_slice %281 {offsets = [0, 128], sizes = [16, 128], strides = [1, 1]} : vector<16x512xf32> to vector<16x128xf32>
    %289 = arith.negf %288 : vector<16x128xf32>
    %290 = math.exp %289 : vector<16x128xf32>
    %cst_76 = arith.constant 1.000000e+00 : f32
    %291 = vector.broadcast %cst_76 : f32 to vector<16x128xf32>
    %292 = arith.addf %291, %290 : vector<16x128xf32>
    %293 = arith.divf %291, %292 : vector<16x128xf32>
    %294 = vector.extract_strided_slice %281 {offsets = [0, 256], sizes = [16, 128], strides = [1, 1]} : vector<16x512xf32> to vector<16x128xf32>
    %295 = math.tanh %294 : vector<16x128xf32>
    %296 = vector.extract_strided_slice %281 {offsets = [0, 384], sizes = [16, 128], strides = [1, 1]} : vector<16x512xf32> to vector<16x128xf32>
    %297 = arith.negf %296 : vector<16x128xf32>
    %298 = math.exp %297 : vector<16x128xf32>
    %cst_77 = arith.constant 1.000000e+00 : f32
    %299 = vector.broadcast %cst_77 : f32 to vector<16x128xf32>
    %300 = arith.addf %299, %298 : vector<16x128xf32>
    %301 = arith.divf %299, %300 : vector<16x128xf32>
    %302 = arith.mulf %293, %267 : vector<16x128xf32>
    %303 = arith.mulf %287, %295 : vector<16x128xf32>
    %304 = arith.addf %302, %303 : vector<16x128xf32>
    %305 = math.tanh %304 : vector<16x128xf32>
    %306 = arith.mulf %301, %305 : vector<16x128xf32>
    %307 = arith.truncf %306 : vector<16x128xf32> to vector<16x128xbf16>
    %c0_78 = arith.constant 0 : index
    %308 = arith.index_cast %276 : i32 to index
    %c0_79 = arith.constant 0 : index
    %309 = vector.load %arg9[%c0_78, %308, %c0_79] : memref<1x128x128xbf16, #tpu.memory_space<vmem>>, vector<1x16x128xbf16>
    %310 = vector.shape_cast %309 : vector<1x16x128xbf16> to vector<16x128xbf16>
    %311 = vector.shape_cast %307 : vector<16x128xbf16> to vector<1x16x128xbf16>
    tpu.vector_store %arg9[%c0_78, %308, %c0_79], %311 {strides = array<i32>} : memref<1x128x128xbf16, #tpu.memory_space<vmem>>, vector<1x16x128xbf16>,
    %c8_i32 = arith.constant 8 : i32
    %c0_80 = arith.constant 0 : index
    %c0_81 = arith.constant 0 : index
    %c0_82 = arith.constant 0 : index
    %312 = vector.load %arg11[%c0_80, %c0_81, %c0_82] : memref<4x16x128xf32, #tpu.memory_space<vmem>>, vector<1x16x128xf32>
    %313 = vector.shape_cast %312 : vector<1x16x128xf32> to vector<16x128xf32>
    %314 = vector.shape_cast %306 : vector<16x128xf32> to vector<1x16x128xf32>
    tpu.vector_store %arg11[%c0_80, %c0_81, %c0_82], %314 {strides = array<i32>} : memref<4x16x128xf32, #tpu.memory_space<vmem>>, vector<1x16x128xf32>,
    %c1_83 = arith.constant 1 : index
    %c0_84 = arith.constant 0 : index
    %c0_85 = arith.constant 0 : index
    %315 = vector.load %arg11[%c1_83, %c0_84, %c0_85] : memref<4x16x128xf32, #tpu.memory_space<vmem>>, vector<1x16x128xf32>
    %316 = vector.shape_cast %315 : vector<1x16x128xf32> to vector<16x128xf32>
    %317 = vector.shape_cast %304 : vector<16x128xf32> to vector<1x16x128xf32>
    tpu.vector_store %arg11[%c1_83, %c0_84, %c0_85], %317 {strides = array<i32>} : memref<4x16x128xf32, #tpu.memory_space<vmem>>, vector<1x16x128xf32>,
    %c0_86 = arith.constant 0 : index
    %c0_87 = arith.constant 0 : index
    %c0_88 = arith.constant 0 : index
    %318 = vector.load %arg9[%c0_86, %c0_87, %c0_88] : memref<1x128x128xbf16, #tpu.memory_space<vmem>>, vector<1x128x128xbf16>
    %319 = vector.shape_cast %318 : vector<1x128x128xbf16> to vector<128x128xbf16>
    %c0_89 = arith.constant 0 : index
    %c0_90 = arith.constant 0 : index
    %320 = vector.load %arg6[%c0_89, %c0_90] : memref<128x512xbf16, #tpu.memory_space<vmem>>, vector<128x512xbf16>
    %cst_91 = arith.constant dense<0.000000e+00> : vector<128x512xf32>
    %321 = tpu.matmul %319, %320, %cst_91 {dimension_numbers = #tpu.dot_dimension_numbers<[1], [0], [0], [1], [0, 0, 1, 1], [], []>} : vector<128x128xbf16>, vector<128x512xbf16>, vector<128x512xf32> -> vector<128x512xf32>
    %c0_92 = arith.constant 0 : index
    %c0_93 = arith.constant 0 : index
    %322 = vector.load %arg8[%c0_92, %c0_93] : memref<1x512xf32, #tpu.memory_space<vmem>>, vector<1x512xf32>
    %323 = vector.broadcast %322 : vector<1x512xf32> to vector<128x512xf32>
    %324 = arith.addf %321, %323 : vector<128x512xf32>
    %c0_94 = arith.constant 0 : index
    %c0_95 = arith.constant 0 : index
    %325 = vector.load %arg10[%c0_94, %c0_95] : memref<128x512xf32, #tpu.memory_space<vmem>>, vector<128x512xf32>
    tpu.vector_store %arg10[%c0_94, %c0_95], %324 {strides = array<i32>} : memref<128x512xf32, #tpu.memory_space<vmem>>, vector<128x512xf32>,
    %c0_96 = arith.constant 0 : index
    %c0_97 = arith.constant 0 : index
    %326 = vector.load %arg7[%c0_96, %c0_97] : memref<128x512xbf16, #tpu.memory_space<vmem>>, vector<128x512xbf16>
    %c2 = arith.constant 2 : index
    %c0_98 = arith.constant 0 : index
    %c0_99 = arith.constant 0 : index
    %327 = vector.load %arg11[%c2, %c0_98, %c0_99] : memref<4x16x128xf32, #tpu.memory_space<vmem>>, vector<1x16x128xf32>
    %328 = vector.shape_cast %327 : vector<1x16x128xf32> to vector<16x128xf32>
    %c3 = arith.constant 3 : index
    %c0_100 = arith.constant 0 : index
    %c0_101 = arith.constant 0 : index
    %329 = vector.load %arg11[%c3, %c0_100, %c0_101] : memref<4x16x128xf32, #tpu.memory_space<vmem>>, vector<1x16x128xf32>
    %330 = vector.shape_cast %329 : vector<1x16x128xf32> to vector<16x128xf32>
    %c0_i32_102 = arith.constant 0 : i32
    %c16_i32_103 = arith.constant 16 : i32
    %331 = arith.muli %c0_i32_102, %c16_i32_103 : i32
    %332 = tpu.assume_multiple %331, 16 : i32
    %333 = arith.index_cast %332 : i32 to index
    %c0_104 = arith.constant 0 : index
    %334 = vector.load %arg10[%333, %c0_104] : memref<128x512xf32, #tpu.memory_space<vmem>>, vector<16x512xf32>
    %335 = arith.truncf %328 : vector<16x128xf32> to vector<16x128xbf16>
    %cst_105 = arith.constant dense<0.000000e+00> : vector<16x512xf32>
    %336 = tpu.matmul %335, %326, %cst_105 {dimension_numbers = #tpu.dot_dimension_numbers<[1], [0], [0], [1], [0, 0, 1, 1], [], []>} : vector<16x128xbf16>, vector<128x512xbf16>, vector<16x512xf32> -> vector<16x512xf32>
    %337 = arith.addf %334, %336 : vector<16x512xf32>
    %338 = vector.extract_strided_slice %337 {offsets = [0, 0], sizes = [16, 128], strides = [1, 1]} : vector<16x512xf32> to vector<16x128xf32>
    %339 = arith.negf %338 : vector<16x128xf32>
    %340 = math.exp %339 : vector<16x128xf32>
    %cst_106 = arith.constant 1.000000e+00 : f32
    %341 = vector.broadcast %cst_106 : f32 to vector<16x128xf32>
    %342 = arith.addf %341, %340 : vector<16x128xf32>
    %343 = arith.divf %341, %342 : vector<16x128xf32>
    %344 = vector.extract_strided_slice %337 {offsets = [0, 128], sizes = [16, 128], strides = [1, 1]} : vector<16x512xf32> to vector<16x128xf32>
    %345 = arith.negf %344 : vector<16x128xf32>
    %346 = math.exp %345 : vector<16x128xf32>
    %cst_107 = arith.constant 1.000000e+00 : f32
    %347 = vector.broadcast %cst_107 : f32 to vector<16x128xf32>
    %348 = arith.addf %347, %346 : vector<16x128xf32>
    %349 = arith.divf %347, %348 : vector<16x128xf32>
    %350 = vector.extract_strided_slice %337 {offsets = [0, 256], sizes = [16, 128], strides = [1, 1]} : vector<16x512xf32> to vector<16x128xf32>
    %351 = math.tanh %350 : vector<16x128xf32>
    %352 = vector.extract_strided_slice %337 {offsets = [0, 384], sizes = [16, 128], strides = [1, 1]} : vector<16x512xf32> to vector<16x128xf32>
    %353 = arith.negf %352 : vector<16x128xf32>
    %354 = math.exp %353 : vector<16x128xf32>
    %cst_108 = arith.constant 1.000000e+00 : f32
    %355 = vector.broadcast %cst_108 : f32 to vector<16x128xf32>
    %356 = arith.addf %355, %354 : vector<16x128xf32>
    %357 = arith.divf %355, %356 : vector<16x128xf32>
    %358 = arith.mulf %349, %330 : vector<16x128xf32>
    %359 = arith.mulf %343, %351 : vector<16x128xf32>
    %360 = arith.addf %358, %359 : vector<16x128xf32>
    %361 = math.tanh %360 : vector<16x128xf32>
    %362 = arith.mulf %357, %361 : vector<16x128xf32>
    %363 = arith.truncf %362 : vector<16x128xf32> to vector<16x128xbf16>
    %c0_109 = arith.constant 0 : index
    %364 = arith.index_cast %332 : i32 to index
    %c0_110 = arith.constant 0 : index
    %365 = vector.load %arg9[%c0_109, %364, %c0_110] : memref<1x128x128xbf16, #tpu.memory_space<vmem>>, vector<1x16x128xbf16>
    %366 = vector.shape_cast %365 : vector<1x16x128xbf16> to vector<16x128xbf16>
    %367 = vector.shape_cast %363 : vector<16x128xbf16> to vector<1x16x128xbf16>
    tpu.vector_store %arg9[%c0_109, %364, %c0_110], %367 {strides = array<i32>} : memref<1x128x128xbf16, #tpu.memory_space<vmem>>, vector<1x16x128xbf16>,
    %c1_i32_111 = arith.constant 1 : i32
    %c16_i32_112 = arith.constant 16 : i32
    %368 = arith.muli %c1_i32_111, %c16_i32_112 : i32
    %369 = tpu.assume_multiple %368, 16 : i32
    %370 = arith.index_cast %369 : i32 to index
    %c0_113 = arith.constant 0 : index
    %371 = vector.load %arg10[%370, %c0_113] : memref<128x512xf32, #tpu.memory_space<vmem>>, vector<16x512xf32>
    %372 = arith.truncf %362 : vector<16x128xf32> to vector<16x128xbf16>
    %cst_114 = arith.constant dense<0.000000e+00> : vector<16x512xf32>
    %373 = tpu.matmul %372, %326, %cst_114 {dimension_numbers = #tpu.dot_dimension_numbers<[1], [0], [0], [1], [0, 0, 1, 1], [], []>} : vector<16x128xbf16>, vector<128x512xbf16>, vector<16x512xf32> -> vector<16x512xf32>
    %374 = arith.addf %371, %373 : vector<16x512xf32>
    %375 = vector.extract_strided_slice %374 {offsets = [0, 0], sizes = [16, 128], strides = [1, 1]} : vector<16x512xf32> to vector<16x128xf32>
    %376 = arith.negf %375 : vector<16x128xf32>
    %377 = math.exp %376 : vector<16x128xf32>
    %cst_115 = arith.constant 1.000000e+00 : f32
    %378 = vector.broadcast %cst_115 : f32 to vector<16x128xf32>
    %379 = arith.addf %378, %377 : vector<16x128xf32>
    %380 = arith.divf %378, %379 : vector<16x128xf32>
    %381 = vector.extract_strided_slice %374 {offsets = [0, 128], sizes = [16, 128], strides = [1, 1]} : vector<16x512xf32> to vector<16x128xf32>
    %382 = arith.negf %381 : vector<16x128xf32>
    %383 = math.exp %382 : vector<16x128xf32>
    %cst_116 = arith.constant 1.000000e+00 : f32
    %384 = vector.broadcast %cst_116 : f32 to vector<16x128xf32>
    %385 = arith.addf %384, %383 : vector<16x128xf32>
    %386 = arith.divf %384, %385 : vector<16x128xf32>
    %387 = vector.extract_strided_slice %374 {offsets = [0, 256], sizes = [16, 128], strides = [1, 1]} : vector<16x512xf32> to vector<16x128xf32>
    %388 = math.tanh %387 : vector<16x128xf32>
    %389 = vector.extract_strided_slice %374 {offsets = [0, 384], sizes = [16, 128], strides = [1, 1]} : vector<16x512xf32> to vector<16x128xf32>
    %390 = arith.negf %389 : vector<16x128xf32>
    %391 = math.exp %390 : vector<16x128xf32>
    %cst_117 = arith.constant 1.000000e+00 : f32
    %392 = vector.broadcast %cst_117 : f32 to vector<16x128xf32>
    %393 = arith.addf %392, %391 : vector<16x128xf32>
    %394 = arith.divf %392, %393 : vector<16x128xf32>
    %395 = arith.mulf %386, %360 : vector<16x128xf32>
    %396 = arith.mulf %380, %388 : vector<16x128xf32>
    %397 = arith.addf %395, %396 : vector<16x128xf32>
    %398 = math.tanh %397 : vector<16x128xf32>
    %399 = arith.mulf %394, %398 : vector<16x128xf32>
    %400 = arith.truncf %399 : vector<16x128xf32> to vector<16x128xbf16>
    %c0_118 = arith.constant 0 : index
    %401 = arith.index_cast %369 : i32 to index
    %c0_119 = arith.constant 0 : index
    %402 = vector.load %arg9[%c0_118, %401, %c0_119] : memref<1x128x128xbf16, #tpu.memory_space<vmem>>, vector<1x16x128xbf16>
    %403 = vector.shape_cast %402 : vector<1x16x128xbf16> to vector<16x128xbf16>
    %404 = vector.shape_cast %400 : vector<16x128xbf16> to vector<1x16x128xbf16>
    tpu.vector_store %arg9[%c0_118, %401, %c0_119], %404 {strides = array<i32>} : memref<1x128x128xbf16, #tpu.memory_space<vmem>>, vector<1x16x128xbf16>,
    %c2_i32_120 = arith.constant 2 : i32
    %c16_i32_121 = arith.constant 16 : i32
    %405 = arith.muli %c2_i32_120, %c16_i32_121 : i32
    %406 = tpu.assume_multiple %405, 16 : i32
    %407 = arith.index_cast %406 : i32 to index
    %c0_122 = arith.constant 0 : index
    %408 = vector.load %arg10[%407, %c0_122] : memref<128x512xf32, #tpu.memory_space<vmem>>, vector<16x512xf32>
    %409 = arith.truncf %399 : vector<16x128xf32> to vector<16x128xbf16>
    %cst_123 = arith.constant dense<0.000000e+00> : vector<16x512xf32>
    %410 = tpu.matmul %409, %326, %cst_123 {dimension_numbers = #tpu.dot_dimension_numbers<[1], [0], [0], [1], [0, 0, 1, 1], [], []>} : vector<16x128xbf16>, vector<128x512xbf16>, vector<16x512xf32> -> vector<16x512xf32>
    %411 = arith.addf %408, %410 : vector<16x512xf32>
    %412 = vector.extract_strided_slice %411 {offsets = [0, 0], sizes = [16, 128], strides = [1, 1]} : vector<16x512xf32> to vector<16x128xf32>
    %413 = arith.negf %412 : vector<16x128xf32>
    %414 = math.exp %413 : vector<16x128xf32>
    %cst_124 = arith.constant 1.000000e+00 : f32
    %415 = vector.broadcast %cst_124 : f32 to vector<16x128xf32>
    %416 = arith.addf %415, %414 : vector<16x128xf32>
    %417 = arith.divf %415, %416 : vector<16x128xf32>
    %418 = vector.extract_strided_slice %411 {offsets = [0, 128], sizes = [16, 128], strides = [1, 1]} : vector<16x512xf32> to vector<16x128xf32>
    %419 = arith.negf %418 : vector<16x128xf32>
    %420 = math.exp %419 : vector<16x128xf32>
    %cst_125 = arith.constant 1.000000e+00 : f32
    %421 = vector.broadcast %cst_125 : f32 to vector<16x128xf32>
    %422 = arith.addf %421, %420 : vector<16x128xf32>
    %423 = arith.divf %421, %422 : vector<16x128xf32>
    %424 = vector.extract_strided_slice %411 {offsets = [0, 256], sizes = [16, 128], strides = [1, 1]} : vector<16x512xf32> to vector<16x128xf32>
    %425 = math.tanh %424 : vector<16x128xf32>
    %426 = vector.extract_strided_slice %411 {offsets = [0, 384], sizes = [16, 128], strides = [1, 1]} : vector<16x512xf32> to vector<16x128xf32>
    %427 = arith.negf %426 : vector<16x128xf32>
    %428 = math.exp %427 : vector<16x128xf32>
    %cst_126 = arith.constant 1.000000e+00 : f32
    %429 = vector.broadcast %cst_126 : f32 to vector<16x128xf32>
    %430 = arith.addf %429, %428 : vector<16x128xf32>
    %431 = arith.divf %429, %430 : vector<16x128xf32>
    %432 = arith.mulf %423, %397 : vector<16x128xf32>
    %433 = arith.mulf %417, %425 : vector<16x128xf32>
    %434 = arith.addf %432, %433 : vector<16x128xf32>
    %435 = math.tanh %434 : vector<16x128xf32>
    %436 = arith.mulf %431, %435 : vector<16x128xf32>
    %437 = arith.truncf %436 : vector<16x128xf32> to vector<16x128xbf16>
    %c0_127 = arith.constant 0 : index
    %438 = arith.index_cast %406 : i32 to index
    %c0_128 = arith.constant 0 : index
    %439 = vector.load %arg9[%c0_127, %438, %c0_128] : memref<1x128x128xbf16, #tpu.memory_space<vmem>>, vector<1x16x128xbf16>
    %440 = vector.shape_cast %439 : vector<1x16x128xbf16> to vector<16x128xbf16>
    %441 = vector.shape_cast %437 : vector<16x128xbf16> to vector<1x16x128xbf16>
    tpu.vector_store %arg9[%c0_127, %438, %c0_128], %441 {strides = array<i32>} : memref<1x128x128xbf16, #tpu.memory_space<vmem>>, vector<1x16x128xbf16>,
    %c3_i32_129 = arith.constant 3 : i32
    %c16_i32_130 = arith.constant 16 : i32
    %442 = arith.muli %c3_i32_129, %c16_i32_130 : i32
    %443 = tpu.assume_multiple %442, 16 : i32
    %444 = arith.index_cast %443 : i32 to index
    %c0_131 = arith.constant 0 : index
    %445 = vector.load %arg10[%444, %c0_131] : memref<128x512xf32, #tpu.memory_space<vmem>>, vector<16x512xf32>
    %446 = arith.truncf %436 : vector<16x128xf32> to vector<16x128xbf16>
    %cst_132 = arith.constant dense<0.000000e+00> : vector<16x512xf32>
    %447 = tpu.matmul %446, %326, %cst_132 {dimension_numbers = #tpu.dot_dimension_numbers<[1], [0], [0], [1], [0, 0, 1, 1], [], []>} : vector<16x128xbf16>, vector<128x512xbf16>, vector<16x512xf32> -> vector<16x512xf32>
    %448 = arith.addf %445, %447 : vector<16x512xf32>
    %449 = vector.extract_strided_slice %448 {offsets = [0, 0], sizes = [16, 128], strides = [1, 1]} : vector<16x512xf32> to vector<16x128xf32>
    %450 = arith.negf %449 : vector<16x128xf32>
    %451 = math.exp %450 : vector<16x128xf32>
    %cst_133 = arith.constant 1.000000e+00 : f32
    %452 = vector.broadcast %cst_133 : f32 to vector<16x128xf32>
    %453 = arith.addf %452, %451 : vector<16x128xf32>
    %454 = arith.divf %452, %453 : vector<16x128xf32>
    %455 = vector.extract_strided_slice %448 {offsets = [0, 128], sizes = [16, 128], strides = [1, 1]} : vector<16x512xf32> to vector<16x128xf32>
    %456 = arith.negf %455 : vector<16x128xf32>
    %457 = math.exp %456 : vector<16x128xf32>
    %cst_134 = arith.constant 1.000000e+00 : f32
    %458 = vector.broadcast %cst_134 : f32 to vector<16x128xf32>
    %459 = arith.addf %458, %457 : vector<16x128xf32>
    %460 = arith.divf %458, %459 : vector<16x128xf32>
    %461 = vector.extract_strided_slice %448 {offsets = [0, 256], sizes = [16, 128], strides = [1, 1]} : vector<16x512xf32> to vector<16x128xf32>
    %462 = math.tanh %461 : vector<16x128xf32>
    %463 = vector.extract_strided_slice %448 {offsets = [0, 384], sizes = [16, 128], strides = [1, 1]} : vector<16x512xf32> to vector<16x128xf32>
    %464 = arith.negf %463 : vector<16x128xf32>
    %465 = math.exp %464 : vector<16x128xf32>
    %cst_135 = arith.constant 1.000000e+00 : f32
    %466 = vector.broadcast %cst_135 : f32 to vector<16x128xf32>
    %467 = arith.addf %466, %465 : vector<16x128xf32>
    %468 = arith.divf %466, %467 : vector<16x128xf32>
    %469 = arith.mulf %460, %434 : vector<16x128xf32>
    %470 = arith.mulf %454, %462 : vector<16x128xf32>
    %471 = arith.addf %469, %470 : vector<16x128xf32>
    %472 = math.tanh %471 : vector<16x128xf32>
    %473 = arith.mulf %468, %472 : vector<16x128xf32>
    %474 = arith.truncf %473 : vector<16x128xf32> to vector<16x128xbf16>
    %c0_136 = arith.constant 0 : index
    %475 = arith.index_cast %443 : i32 to index
    %c0_137 = arith.constant 0 : index
    %476 = vector.load %arg9[%c0_136, %475, %c0_137] : memref<1x128x128xbf16, #tpu.memory_space<vmem>>, vector<1x16x128xbf16>
    %477 = vector.shape_cast %476 : vector<1x16x128xbf16> to vector<16x128xbf16>
    %478 = vector.shape_cast %474 : vector<16x128xbf16> to vector<1x16x128xbf16>
    tpu.vector_store %arg9[%c0_136, %475, %c0_137], %478 {strides = array<i32>} : memref<1x128x128xbf16, #tpu.memory_space<vmem>>, vector<1x16x128xbf16>,
    %c4_i32_138 = arith.constant 4 : i32
    %c16_i32_139 = arith.constant 16 : i32
    %479 = arith.muli %c4_i32_138, %c16_i32_139 : i32
    %480 = tpu.assume_multiple %479, 16 : i32
    %481 = arith.index_cast %480 : i32 to index
    %c0_140 = arith.constant 0 : index
    %482 = vector.load %arg10[%481, %c0_140] : memref<128x512xf32, #tpu.memory_space<vmem>>, vector<16x512xf32>
    %483 = arith.truncf %473 : vector<16x128xf32> to vector<16x128xbf16>
    %cst_141 = arith.constant dense<0.000000e+00> : vector<16x512xf32>
    %484 = tpu.matmul %483, %326, %cst_141 {dimension_numbers = #tpu.dot_dimension_numbers<[1], [0], [0], [1], [0, 0, 1, 1], [], []>} : vector<16x128xbf16>, vector<128x512xbf16>, vector<16x512xf32> -> vector<16x512xf32>
    %485 = arith.addf %482, %484 : vector<16x512xf32>
    %486 = vector.extract_strided_slice %485 {offsets = [0, 0], sizes = [16, 128], strides = [1, 1]} : vector<16x512xf32> to vector<16x128xf32>
    %487 = arith.negf %486 : vector<16x128xf32>
    %488 = math.exp %487 : vector<16x128xf32>
    %cst_142 = arith.constant 1.000000e+00 : f32
    %489 = vector.broadcast %cst_142 : f32 to vector<16x128xf32>
    %490 = arith.addf %489, %488 : vector<16x128xf32>
    %491 = arith.divf %489, %490 : vector<16x128xf32>
    %492 = vector.extract_strided_slice %485 {offsets = [0, 128], sizes = [16, 128], strides = [1, 1]} : vector<16x512xf32> to vector<16x128xf32>
    %493 = arith.negf %492 : vector<16x128xf32>
    %494 = math.exp %493 : vector<16x128xf32>
    %cst_143 = arith.constant 1.000000e+00 : f32
    %495 = vector.broadcast %cst_143 : f32 to vector<16x128xf32>
    %496 = arith.addf %495, %494 : vector<16x128xf32>
    %497 = arith.divf %495, %496 : vector<16x128xf32>
    %498 = vector.extract_strided_slice %485 {offsets = [0, 256], sizes = [16, 128], strides = [1, 1]} : vector<16x512xf32> to vector<16x128xf32>
    %499 = math.tanh %498 : vector<16x128xf32>
    %500 = vector.extract_strided_slice %485 {offsets = [0, 384], sizes = [16, 128], strides = [1, 1]} : vector<16x512xf32> to vector<16x128xf32>
    %501 = arith.negf %500 : vector<16x128xf32>
    %502 = math.exp %501 : vector<16x128xf32>
    %cst_144 = arith.constant 1.000000e+00 : f32
    %503 = vector.broadcast %cst_144 : f32 to vector<16x128xf32>
    %504 = arith.addf %503, %502 : vector<16x128xf32>
    %505 = arith.divf %503, %504 : vector<16x128xf32>
    %506 = arith.mulf %497, %471 : vector<16x128xf32>
    %507 = arith.mulf %491, %499 : vector<16x128xf32>
    %508 = arith.addf %506, %507 : vector<16x128xf32>
    %509 = math.tanh %508 : vector<16x128xf32>
    %510 = arith.mulf %505, %509 : vector<16x128xf32>
    %511 = arith.truncf %510 : vector<16x128xf32> to vector<16x128xbf16>
    %c0_145 = arith.constant 0 : index
    %512 = arith.index_cast %480 : i32 to index
    %c0_146 = arith.constant 0 : index
    %513 = vector.load %arg9[%c0_145, %512, %c0_146] : memref<1x128x128xbf16, #tpu.memory_space<vmem>>, vector<1x16x128xbf16>
    %514 = vector.shape_cast %513 : vector<1x16x128xbf16> to vector<16x128xbf16>
    %515 = vector.shape_cast %511 : vector<16x128xbf16> to vector<1x16x128xbf16>
    tpu.vector_store %arg9[%c0_145, %512, %c0_146], %515 {strides = array<i32>} : memref<1x128x128xbf16, #tpu.memory_space<vmem>>, vector<1x16x128xbf16>,
    %c5_i32_147 = arith.constant 5 : i32
    %c16_i32_148 = arith.constant 16 : i32
    %516 = arith.muli %c5_i32_147, %c16_i32_148 : i32
    %517 = tpu.assume_multiple %516, 16 : i32
    %518 = arith.index_cast %517 : i32 to index
    %c0_149 = arith.constant 0 : index
    %519 = vector.load %arg10[%518, %c0_149] : memref<128x512xf32, #tpu.memory_space<vmem>>, vector<16x512xf32>
    %520 = arith.truncf %510 : vector<16x128xf32> to vector<16x128xbf16>
    %cst_150 = arith.constant dense<0.000000e+00> : vector<16x512xf32>
    %521 = tpu.matmul %520, %326, %cst_150 {dimension_numbers = #tpu.dot_dimension_numbers<[1], [0], [0], [1], [0, 0, 1, 1], [], []>} : vector<16x128xbf16>, vector<128x512xbf16>, vector<16x512xf32> -> vector<16x512xf32>
    %522 = arith.addf %519, %521 : vector<16x512xf32>
    %523 = vector.extract_strided_slice %522 {offsets = [0, 0], sizes = [16, 128], strides = [1, 1]} : vector<16x512xf32> to vector<16x128xf32>
    %524 = arith.negf %523 : vector<16x128xf32>
    %525 = math.exp %524 : vector<16x128xf32>
    %cst_151 = arith.constant 1.000000e+00 : f32
    %526 = vector.broadcast %cst_151 : f32 to vector<16x128xf32>
    %527 = arith.addf %526, %525 : vector<16x128xf32>
    %528 = arith.divf %526, %527 : vector<16x128xf32>
    %529 = vector.extract_strided_slice %522 {offsets = [0, 128], sizes = [16, 128], strides = [1, 1]} : vector<16x512xf32> to vector<16x128xf32>
    %530 = arith.negf %529 : vector<16x128xf32>
    %531 = math.exp %530 : vector<16x128xf32>
    %cst_152 = arith.constant 1.000000e+00 : f32
    %532 = vector.broadcast %cst_152 : f32 to vector<16x128xf32>
    %533 = arith.addf %532, %531 : vector<16x128xf32>
    %534 = arith.divf %532, %533 : vector<16x128xf32>
    %535 = vector.extract_strided_slice %522 {offsets = [0, 256], sizes = [16, 128], strides = [1, 1]} : vector<16x512xf32> to vector<16x128xf32>
    %536 = math.tanh %535 : vector<16x128xf32>
    %537 = vector.extract_strided_slice %522 {offsets = [0, 384], sizes = [16, 128], strides = [1, 1]} : vector<16x512xf32> to vector<16x128xf32>
    %538 = arith.negf %537 : vector<16x128xf32>
    %539 = math.exp %538 : vector<16x128xf32>
    %cst_153 = arith.constant 1.000000e+00 : f32
    %540 = vector.broadcast %cst_153 : f32 to vector<16x128xf32>
    %541 = arith.addf %540, %539 : vector<16x128xf32>
    %542 = arith.divf %540, %541 : vector<16x128xf32>
    %543 = arith.mulf %534, %508 : vector<16x128xf32>
    %544 = arith.mulf %528, %536 : vector<16x128xf32>
    %545 = arith.addf %543, %544 : vector<16x128xf32>
    %546 = math.tanh %545 : vector<16x128xf32>
    %547 = arith.mulf %542, %546 : vector<16x128xf32>
    %548 = arith.truncf %547 : vector<16x128xf32> to vector<16x128xbf16>
    %c0_154 = arith.constant 0 : index
    %549 = arith.index_cast %517 : i32 to index
    %c0_155 = arith.constant 0 : index
    %550 = vector.load %arg9[%c0_154, %549, %c0_155] : memref<1x128x128xbf16, #tpu.memory_space<vmem>>, vector<1x16x128xbf16>
    %551 = vector.shape_cast %550 : vector<1x16x128xbf16> to vector<16x128xbf16>
    %552 = vector.shape_cast %548 : vector<16x128xbf16> to vector<1x16x128xbf16>
    tpu.vector_store %arg9[%c0_154, %549, %c0_155], %552 {strides = array<i32>} : memref<1x128x128xbf16, #tpu.memory_space<vmem>>, vector<1x16x128xbf16>,
    %c6_i32_156 = arith.constant 6 : i32
    %c16_i32_157 = arith.constant 16 : i32
    %553 = arith.muli %c6_i32_156, %c16_i32_157 : i32
    %554 = tpu.assume_multiple %553, 16 : i32
    %555 = arith.index_cast %554 : i32 to index
    %c0_158 = arith.constant 0 : index
    %556 = vector.load %arg10[%555, %c0_158] : memref<128x512xf32, #tpu.memory_space<vmem>>, vector<16x512xf32>
    %557 = arith.truncf %547 : vector<16x128xf32> to vector<16x128xbf16>
    %cst_159 = arith.constant dense<0.000000e+00> : vector<16x512xf32>
    %558 = tpu.matmul %557, %326, %cst_159 {dimension_numbers = #tpu.dot_dimension_numbers<[1], [0], [0], [1], [0, 0, 1, 1], [], []>} : vector<16x128xbf16>, vector<128x512xbf16>, vector<16x512xf32> -> vector<16x512xf32>
    %559 = arith.addf %556, %558 : vector<16x512xf32>
    %560 = vector.extract_strided_slice %559 {offsets = [0, 0], sizes = [16, 128], strides = [1, 1]} : vector<16x512xf32> to vector<16x128xf32>
    %561 = arith.negf %560 : vector<16x128xf32>
    %562 = math.exp %561 : vector<16x128xf32>
    %cst_160 = arith.constant 1.000000e+00 : f32
    %563 = vector.broadcast %cst_160 : f32 to vector<16x128xf32>
    %564 = arith.addf %563, %562 : vector<16x128xf32>
    %565 = arith.divf %563, %564 : vector<16x128xf32>
    %566 = vector.extract_strided_slice %559 {offsets = [0, 128], sizes = [16, 128], strides = [1, 1]} : vector<16x512xf32> to vector<16x128xf32>
    %567 = arith.negf %566 : vector<16x128xf32>
    %568 = math.exp %567 : vector<16x128xf32>
    %cst_161 = arith.constant 1.000000e+00 : f32
    %569 = vector.broadcast %cst_161 : f32 to vector<16x128xf32>
    %570 = arith.addf %569, %568 : vector<16x128xf32>
    %571 = arith.divf %569, %570 : vector<16x128xf32>
    %572 = vector.extract_strided_slice %559 {offsets = [0, 256], sizes = [16, 128], strides = [1, 1]} : vector<16x512xf32> to vector<16x128xf32>
    %573 = math.tanh %572 : vector<16x128xf32>
    %574 = vector.extract_strided_slice %559 {offsets = [0, 384], sizes = [16, 128], strides = [1, 1]} : vector<16x512xf32> to vector<16x128xf32>
    %575 = arith.negf %574 : vector<16x128xf32>
    %576 = math.exp %575 : vector<16x128xf32>
    %cst_162 = arith.constant 1.000000e+00 : f32
    %577 = vector.broadcast %cst_162 : f32 to vector<16x128xf32>
    %578 = arith.addf %577, %576 : vector<16x128xf32>
    %579 = arith.divf %577, %578 : vector<16x128xf32>
    %580 = arith.mulf %571, %545 : vector<16x128xf32>
    %581 = arith.mulf %565, %573 : vector<16x128xf32>
    %582 = arith.addf %580, %581 : vector<16x128xf32>
    %583 = math.tanh %582 : vector<16x128xf32>
    %584 = arith.mulf %579, %583 : vector<16x128xf32>
    %585 = arith.truncf %584 : vector<16x128xf32> to vector<16x128xbf16>
    %c0_163 = arith.constant 0 : index
    %586 = arith.index_cast %554 : i32 to index
    %c0_164 = arith.constant 0 : index
    %587 = vector.load %arg9[%c0_163, %586, %c0_164] : memref<1x128x128xbf16, #tpu.memory_space<vmem>>, vector<1x16x128xbf16>
    %588 = vector.shape_cast %587 : vector<1x16x128xbf16> to vector<16x128xbf16>
    %589 = vector.shape_cast %585 : vector<16x128xbf16> to vector<1x16x128xbf16>
    tpu.vector_store %arg9[%c0_163, %586, %c0_164], %589 {strides = array<i32>} : memref<1x128x128xbf16, #tpu.memory_space<vmem>>, vector<1x16x128xbf16>,
    %c7_i32_165 = arith.constant 7 : i32
    %c16_i32_166 = arith.constant 16 : i32
    %590 = arith.muli %c7_i32_165, %c16_i32_166 : i32
    %591 = tpu.assume_multiple %590, 16 : i32
    %592 = arith.index_cast %591 : i32 to index
    %c0_167 = arith.constant 0 : index
    %593 = vector.load %arg10[%592, %c0_167] : memref<128x512xf32, #tpu.memory_space<vmem>>, vector<16x512xf32>
    %594 = arith.truncf %584 : vector<16x128xf32> to vector<16x128xbf16>
    %cst_168 = arith.constant dense<0.000000e+00> : vector<16x512xf32>
    %595 = tpu.matmul %594, %326, %cst_168 {dimension_numbers = #tpu.dot_dimension_numbers<[1], [0], [0], [1], [0, 0, 1, 1], [], []>} : vector<16x128xbf16>, vector<128x512xbf16>, vector<16x512xf32> -> vector<16x512xf32>
    %596 = arith.addf %593, %595 : vector<16x512xf32>
    %597 = vector.extract_strided_slice %596 {offsets = [0, 0], sizes = [16, 128], strides = [1, 1]} : vector<16x512xf32> to vector<16x128xf32>
    %598 = arith.negf %597 : vector<16x128xf32>
    %599 = math.exp %598 : vector<16x128xf32>
    %cst_169 = arith.constant 1.000000e+00 : f32
    %600 = vector.broadcast %cst_169 : f32 to vector<16x128xf32>
    %601 = arith.addf %600, %599 : vector<16x128xf32>
    %602 = arith.divf %600, %601 : vector<16x128xf32>
    %603 = vector.extract_strided_slice %596 {offsets = [0, 128], sizes = [16, 128], strides = [1, 1]} : vector<16x512xf32> to vector<16x128xf32>
    %604 = arith.negf %603 : vector<16x128xf32>
    %605 = math.exp %604 : vector<16x128xf32>
    %cst_170 = arith.constant 1.000000e+00 : f32
    %606 = vector.broadcast %cst_170 : f32 to vector<16x128xf32>
    %607 = arith.addf %606, %605 : vector<16x128xf32>
    %608 = arith.divf %606, %607 : vector<16x128xf32>
    %609 = vector.extract_strided_slice %596 {offsets = [0, 256], sizes = [16, 128], strides = [1, 1]} : vector<16x512xf32> to vector<16x128xf32>
    %610 = math.tanh %609 : vector<16x128xf32>
    %611 = vector.extract_strided_slice %596 {offsets = [0, 384], sizes = [16, 128], strides = [1, 1]} : vector<16x512xf32> to vector<16x128xf32>
    %612 = arith.negf %611 : vector<16x128xf32>
    %613 = math.exp %612 : vector<16x128xf32>
    %cst_171 = arith.constant 1.000000e+00 : f32
    %614 = vector.broadcast %cst_171 : f32 to vector<16x128xf32>
    %615 = arith.addf %614, %613 : vector<16x128xf32>
    %616 = arith.divf %614, %615 : vector<16x128xf32>
    %617 = arith.mulf %608, %582 : vector<16x128xf32>
    %618 = arith.mulf %602, %610 : vector<16x128xf32>
    %619 = arith.addf %617, %618 : vector<16x128xf32>
    %620 = math.tanh %619 : vector<16x128xf32>
    %621 = arith.mulf %616, %620 : vector<16x128xf32>
    %622 = arith.truncf %621 : vector<16x128xf32> to vector<16x128xbf16>
    %c0_172 = arith.constant 0 : index
    %623 = arith.index_cast %591 : i32 to index
    %c0_173 = arith.constant 0 : index
    %624 = vector.load %arg9[%c0_172, %623, %c0_173] : memref<1x128x128xbf16, #tpu.memory_space<vmem>>, vector<1x16x128xbf16>
    %625 = vector.shape_cast %624 : vector<1x16x128xbf16> to vector<16x128xbf16>
    %626 = vector.shape_cast %622 : vector<16x128xbf16> to vector<1x16x128xbf16>
    tpu.vector_store %arg9[%c0_172, %623, %c0_173], %626 {strides = array<i32>} : memref<1x128x128xbf16, #tpu.memory_space<vmem>>, vector<1x16x128xbf16>,
    %c8_i32_174 = arith.constant 8 : i32
    %c2_175 = arith.constant 2 : index
    %c0_176 = arith.constant 0 : index
    %c0_177 = arith.constant 0 : index
    %627 = vector.load %arg11[%c2_175, %c0_176, %c0_177] : memref<4x16x128xf32, #tpu.memory_space<vmem>>, vector<1x16x128xf32>
    %628 = vector.shape_cast %627 : vector<1x16x128xf32> to vector<16x128xf32>
    %629 = vector.shape_cast %621 : vector<16x128xf32> to vector<1x16x128xf32>
    tpu.vector_store %arg11[%c2_175, %c0_176, %c0_177], %629 {strides = array<i32>} : memref<4x16x128xf32, #tpu.memory_space<vmem>>, vector<1x16x128xf32>,
    %c3_178 = arith.constant 3 : index
    %c0_179 = arith.constant 0 : index
    %c0_180 = arith.constant 0 : index
    %630 = vector.load %arg11[%c3_178, %c0_179, %c0_180] : memref<4x16x128xf32, #tpu.memory_space<vmem>>, vector<1x16x128xf32>
    %631 = vector.shape_cast %630 : vector<1x16x128xf32> to vector<16x128xf32>
    %632 = vector.shape_cast %619 : vector<16x128xf32> to vector<1x16x128xf32>
    tpu.vector_store %arg11[%c3_178, %c0_179, %c0_180], %632 {strides = array<i32>} : memref<4x16x128xf32, #tpu.memory_space<vmem>>, vector<1x16x128xf32>,
    return
  }
  func.func @transform_0(%arg0: i32, %arg1: i32) -> (i32, i32, i32) {
    %c0_i32 = arith.constant 0 : i32
    %c0_i32_0 = arith.constant 0 : i32
    return %arg0, %arg1, %c0_i32 : i32, i32, i32
  }
  func.func @transform_1(%arg0: i32, %arg1: i32) -> (i32, i32) {
    %c0_i32 = arith.constant 0 : i32
    %c0_i32_0 = arith.constant 0 : i32
    %c0_i32_1 = arith.constant 0 : i32
    return %c0_i32, %c0_i32_0 : i32, i32
  }
  func.func @transform_2(%arg0: i32, %arg1: i32) -> (i32, i32) {
    %c0_i32 = arith.constant 0 : i32
    %c0_i32_0 = arith.constant 0 : i32
    %c0_i32_1 = arith.constant 0 : i32
    return %c0_i32, %c0_i32_0 : i32, i32
  }
  func.func @transform_3(%arg0: i32, %arg1: i32) -> (i32, i32) {
    %c0_i32 = arith.constant 0 : i32
    %c0_i32_0 = arith.constant 0 : i32
    %c0_i32_1 = arith.constant 0 : i32
    return %c0_i32, %c0_i32_0 : i32, i32
  }
  func.func @transform_4(%arg0: i32, %arg1: i32) -> (i32, i32) {
    %c0_i32 = arith.constant 0 : i32
    %c0_i32_0 = arith.constant 0 : i32
    %c0_i32_1 = arith.constant 0 : i32
    return %c0_i32, %c0_i32_0 : i32, i32
  }
  func.func @transform_5(%arg0: i32, %arg1: i32) -> (i32, i32) {
    %c0_i32 = arith.constant 0 : i32
    %c0_i32_0 = arith.constant 0 : i32
    %c0_i32_1 = arith.constant 0 : i32
    return %c0_i32, %c0_i32_0 : i32, i32
  }
  func.func @transform_6(%arg0: i32, %arg1: i32) -> (i32, i32) {
    %c0_i32 = arith.constant 0 : i32
    %c0_i32_0 = arith.constant 0 : i32
    %c0_i32_1 = arith.constant 0 : i32
    return %c0_i32, %c0_i32_0 : i32, i32
  }
  func.func @transform_7(%arg0: i32, %arg1: i32) -> (i32, i32, i32) {
    %c0_i32 = arith.constant 0 : i32
    %c0_i32_0 = arith.constant 0 : i32
    return %arg0, %arg1, %c0_i32 : i32, i32, i32
  }
}

</mosaic_0001>

<llo_original>
// kernel: tpu_custom_call.1
$region0: #{tpu_custom_call.1}
  #allocation0 [shape = 'u32[]', space=smem, size = 0x4, offset = 0x4, fixed_abs, tag = 'smem constant byte address 0x4 - core index']
  #allocation1 [shape = 'u32[144,128]{1,0:T(1,128)}', space=vmem, size = 0x12000, scoped, tag = 'internal scratch']
  #allocation2 [shape = 'f32[128,512]{1,0:T(8,128)}', space=vmem, size = 0x40000, scoped, tag = 'scratch operand']
  #allocation3 [shape = 'f32[4,16,128]{2,1,0:T(8,128)}', space=vmem, size = 0x8000, scoped, tag = 'scratch operand']
  %s0 = inlined_call_operand.hbm [shape: bf16[1,128,128], index: 0, kind: input, shape index: {}]
  %s1 = inlined_call_operand.hbm [shape: bf16[128,512], index: 1, kind: input, shape index: {}]
  %s2 = inlined_call_operand.hbm [shape: bf16[128,512], index: 2, kind: input, shape index: {}]
  %s3 = inlined_call_operand.vmem [shape: f32[1,512], index: 3, kind: input, shape index: {}]
  %s4 = inlined_call_operand.hbm [shape: bf16[128,512], index: 4, kind: input, shape index: {}]
  %s5 = inlined_call_operand.hbm [shape: bf16[128,512], index: 5, kind: input, shape index: {}]
  %s6 = inlined_call_operand.vmem [shape: f32[1,512], index: 6, kind: input, shape index: {}]
  %s7 = inlined_call_operand.hbm [shape: bf16[1,128,128], index: 7, kind: output, shape index: {}]
  %s8 = sld [smem:[#allocation0]]
  $region62: #{tpu_custom_call.1} parent=0
    _
  %s10 = ssub.s32 1, %s8
  %s11 = scalar_select 0, %s10, %s8
  $region1: #{tpu_custom_call.1} parent=0
    #allocation4 [shape = 'u8[32768]{0}', space=vmem, size = 0x8000, scoped, tag = 'input window, operand 0, single buffered']
    #allocation5 [shape = 's32[1]{0}', space=sflag, size = 0x4, scoped, tag = 'scoped memory for tpu_custom_call.1']
    #allocation6 [shape = 's32[1]{0}', space=sflag, size = 0x4, scoped, tag = 'scoped memory for tpu_custom_call.1']
    #allocation7 [shape = 'u8[131072]{0}', space=vmem, size = 0x20000, scoped, tag = 'input window, operand 1, single buffered']
    #allocation8 [shape = 's32[1]{0}', space=sflag, size = 0x4, scoped, tag = 'scoped memory for tpu_custom_call.1']
    #allocation9 [shape = 'u8[131072]{0}', space=vmem, size = 0x20000, scoped, tag = 'input window, operand 2, single buffered']
    #allocation10 [shape = 'u8[131072]{0}', space=vmem, size = 0x20000, scoped, tag = 'input window, operand 4, single buffered']
    #allocation11 [shape = 's32[1]{0}', space=sflag, size = 0x4, scoped, tag = 'scoped memory for tpu_custom_call.1']
    #allocation12 [shape = 'u8[131072]{0}', space=vmem, size = 0x20000, scoped, tag = 'input window, operand 5, single buffered']
    #allocation13 [shape = 'u8[32768]{0}', space=vmem, size = 0x8000, scoped, tag = 'output window, operand 0, single buffered']
    %12 = vsyncpa [#allocation5], 0
    %13 = vsyncpa [#allocation8], 0
    %14 = vsyncpa [#allocation11], 0
    %15 = vsyncpa [#allocation6], 0
    // Predicated region
    $region2: #{tpu_custom_call.1} parent=1 // pred_check
      _
    $region3: #{tpu_custom_call.1} parent=1 // pred_check_branch
      %17 = sbr.rel (0) target = $region5
    $region4: #{tpu_custom_call.1} parent=1 // pred_region
      %s19 = ssub.s32 1024, 1024
      %20 = vsyncadd [#allocation5], %s19
      %s21 = sshll.u32 [#allocation4], 4
      %s22 = int_to_ptr.vmem [resolvable:$true] %s21
      %27 = dma.hbm_to_vmem [thread:$0]  %s0, 1024, %s22, [#allocation5], 64, 64, 4
    $region5: #{tpu_custom_call.1} parent=1 // pred_fallthru
      _
    // Predicated region
    $region6: #{tpu_custom_call.1} parent=1 // pred_check
      _
    $region7: #{tpu_custom_call.1} parent=1 // pred_check_branch
      %29 = sbr.rel (0) target = $region9
    $region8: #{tpu_custom_call.1} parent=1 // pred_region
      %s31 = ssub.s32 4096, 4096
      %32 = vsyncadd [#allocation8], %s31
      %s33 = sshll.u32 [#allocation7], 4
      %s34 = int_to_ptr.vmem [resolvable:$true] %s33
      %39 = dma.hbm_to_vmem [thread:$0]  %s1, 4096, %s34, [#allocation8], 256, 256, 16
    $region9: #{tpu_custom_call.1} parent=1 // pred_fallthru
      _
    // Predicated region
    $region10: #{tpu_custom_call.1} parent=1 // pred_check
      _
    $region11: #{tpu_custom_call.1} parent=1 // pred_check_branch
      %41 = sbr.rel (0) target = $region13
    $region12: #{tpu_custom_call.1} parent=1 // pred_region
      %s43 = ssub.s32 4096, 4096
      %44 = vsyncadd [#allocation8], %s43
      %s45 = sshll.u32 [#allocation9], 4
      %s46 = int_to_ptr.vmem [resolvable:$true] %s45
      %51 = dma.hbm_to_vmem [thread:$0]  %s2, 4096, %s46, [#allocation8], 256, 256, 16
    $region13: #{tpu_custom_call.1} parent=1 // pred_fallthru
      _
    // Predicated region
    $region14: #{tpu_custom_call.1} parent=1 // pred_check
      _
    $region15: #{tpu_custom_call.1} parent=1 // pred_check_branch
      %53 = sbr.rel (0) target = $region17
    $region16: #{tpu_custom_call.1} parent=1 // pred_region
      _
    $region17: #{tpu_custom_call.1} parent=1 // pred_fallthru
      _
    // Predicated region
    $region18: #{tpu_custom_call.1} parent=1 // pred_check
      _
    $region19: #{tpu_custom_call.1} parent=1 // pred_check_branch
      %55 = sbr.rel (0) target = $region21
    $region20: #{tpu_custom_call.1} parent=1 // pred_region
      %s57 = ssub.s32 4096, 4096
      %58 = vsyncadd [#allocation11], %s57
      %s59 = sshll.u32 [#allocation10], 4
      %s60 = int_to_ptr.vmem [resolvable:$true] %s59
      %65 = dma.hbm_to_vmem [thread:$0]  %s4, 4096, %s60, [#allocation11], 256, 256, 16
    $region21: #{tpu_custom_call.1} parent=1 // pred_fallthru
      _
    // Predicated region
    $region22: #{tpu_custom_call.1} parent=1 // pred_check
      _
    $region23: #{tpu_custom_call.1} parent=1 // pred_check_branch
      %67 = sbr.rel (0) target = $region25
    $region24: #{tpu_custom_call.1} parent=1 // pred_region
      %s69 = ssub.s32 4096, 4096
      %70 = vsyncadd [#allocation11], %s69
      %s71 = sshll.u32 [#allocation12], 4
      %s72 = int_to_ptr.vmem [resolvable:$true] %s71
      %77 = dma.hbm_to_vmem [thread:$0]  %s5, 4096, %s72, [#allocation11], 256, 256, 16
    $region25: #{tpu_custom_call.1} parent=1 // pred_fallthru
      _
    // Predicated region
    $region26: #{tpu_custom_call.1} parent=1 // pred_check
      _
    $region27: #{tpu_custom_call.1} parent=1 // pred_check_branch
      %79 = sbr.rel (0) target = $region29
    $region28: #{tpu_custom_call.1} parent=1 // pred_region
      _
    $region29: #{tpu_custom_call.1} parent=1 // pred_fallthru
      _
    // Predicated region
    $region30: #{tpu_custom_call.1} parent=1 // pred_check
      _
    $region31: #{tpu_custom_call.1} parent=1 // pred_check_branch
      %81 = sbr.rel (0) target = $region33
    $region32: #{tpu_custom_call.1} parent=1 // pred_region
      %82 = dma.done [#allocation5], 1024
    $region33: #{tpu_custom_call.1} parent=1 // pred_fallthru
      _
    // Predicated region
    $region34: #{tpu_custom_call.1} parent=1 // pred_check
      _
    $region35: #{tpu_custom_call.1} parent=1 // pred_check_branch
      %84 = sbr.rel (0) target = $region37
    $region36: #{tpu_custom_call.1} parent=1 // pred_region
      %85 = dma.done [#allocation8], 4096
    $region37: #{tpu_custom_call.1} parent=1 // pred_fallthru
      _
    // Predicated region
    $region38: #{tpu_custom_call.1} parent=1 // pred_check
      _
    $region39: #{tpu_custom_call.1} parent=1 // pred_check_branch
      %87 = sbr.rel (0) target = $region41
    $region40: #{tpu_custom_call.1} parent=1 // pred_region
      %88 = dma.done [#allocation8], 4096
    $region41: #{tpu_custom_call.1} parent=1 // pred_fallthru
      _
    // Predicated region
    $region42: #{tpu_custom_call.1} parent=1 // pred_check
      _
    $region43: #{tpu_custom_call.1} parent=1 // pred_check_branch
      %90 = sbr.rel (0) target = $region45
    $region44: #{tpu_custom_call.1} parent=1 // pred_region
      %91 = dma.done [#allocation11], 4096
    $region45: #{tpu_custom_call.1} parent=1 // pred_fallthru
      _
    // Predicated region
    $region46: #{tpu_custom_call.1} parent=1 // pred_check
      _
    $region47: #{tpu_custom_call.1} parent=1 // pred_check_branch
      %93 = sbr.rel (0) target = $region49
    $region48: #{tpu_custom_call.1} parent=1 // pred_region
      %94 = dma.done [#allocation11], 4096
    $region49: #{tpu_custom_call.1} parent=1 // pred_fallthru
      _
    %p96 = scmp.eq.s32.totalorder 0, 0
    // Predicated region
    $region50: #{tpu_custom_call.1} parent=1 // pred_check
      %p97 = pneg %p96
    $region51: #{tpu_custom_call.1} parent=1 // pred_check_branch
      %99 = sbr.rel (%p97) target = $region53
    $region52: #{tpu_custom_call.1} parent=1 // pred_region
      %100 = vst [vmem:[#allocation3] sm:$0xff] 0.0
      %101 = vst [vmem:[#allocation3 + $0x8] sm:$0xff] 0.0
      %102 = vst [vmem:[#allocation3 + $0x10] sm:$0xff] 0.0
      %103 = vst [vmem:[#allocation3 + $0x18] sm:$0xff] 0.0
      %104 = vst [vmem:[#allocation3 + $0x20] sm:$0xff] 0.0
      %105 = vst [vmem:[#allocation3 + $0x28] sm:$0xff] 0.0
      %106 = vst [vmem:[#allocation3 + $0x30] sm:$0xff] 0.0
      %107 = vst [vmem:[#allocation3 + $0x38] sm:$0xff] 0.0
    $region53: #{tpu_custom_call.1} parent=1 // pred_fallthru
      _
    %v108 = vld [vmem:[#allocation4] sm:$0xf]
    %v109 = vld [vmem:[#allocation4 + $0x4] sm:$0xf]
    %v110 = vld [vmem:[#allocation4 + $0x8] sm:$0xf]
    %v111 = vld [vmem:[#allocation4 + $0xc] sm:$0xf]
    %v112 = vld [vmem:[#allocation4 + $0x10] sm:$0xf]
    %v113 = vld [vmem:[#allocation4 + $0x14] sm:$0xf]
    %v114 = vld [vmem:[#allocation4 + $0x18] sm:$0xf]
    %v115 = vld [vmem:[#allocation4 + $0x1c] sm:$0xf]
    %v116 = vld [vmem:[#allocation4 + $0x20] sm:$0xf]
    %v117 = vld [vmem:[#allocation4 + $0x24] sm:$0xf]
    %v118 = vld [vmem:[#allocation4 + $0x28] sm:$0xf]
    %v119 = vld [vmem:[#allocation4 + $0x2c] sm:$0xf]
    %v120 = vld [vmem:[#allocation4 + $0x30] sm:$0xf]
    %v121 = vld [vmem:[#allocation4 + $0x34] sm:$0xf]
    %v122 = vld [vmem:[#allocation4 + $0x38] sm:$0xf]
    %v123 = vld [vmem:[#allocation4 + $0x3c] sm:$0xf]
    %v124 = vld [vmem:[#allocation7] sm:$0xff]
    %v125 = vld [vmem:[#allocation7 + $0x8] sm:$0xff]
    %v126 = vld [vmem:[#allocation7 + $0x10] sm:$0xff]
    %v127 = vld [vmem:[#allocation7 + $0x18] sm:$0xff]
    %v128 = vld [vmem:[#allocation7 + $0x20] sm:$0xff]
    %v129 = vld [vmem:[#allocation7 + $0x28] sm:$0xff]
    %v130 = vld [vmem:[#allocation7 + $0x30] sm:$0xff]
    %v131 = vld [vmem:[#allocation7 + $0x38] sm:$0xff]
    %v132 = vld [vmem:[#allocation7 + $0x40] sm:$0xff]
    %v133 = vld [vmem:[#allocation7 + $0x48] sm:$0xff]
    %v134 = vld [vmem:[#allocation7 + $0x50] sm:$0xff]
    %v135 = vld [vmem:[#allocation7 + $0x58] sm:$0xff]
    %v136 = vld [vmem:[#allocation7 + $0x60] sm:$0xff]
    %v137 = vld [vmem:[#allocation7 + $0x68] sm:$0xff]
    %v138 = vld [vmem:[#allocation7 + $0x70] sm:$0xff]
    %v139 = vld [vmem:[#allocation7 + $0x78] sm:$0xff]
    %v140 = vld [vmem:[#allocation7 + $0x80] sm:$0xff]
    %v141 = vld [vmem:[#allocation7 + $0x88] sm:$0xff]
    %v142 = vld [vmem:[#allocation7 + $0x90] sm:$0xff]
    %v143 = vld [vmem:[#allocation7 + $0x98] sm:$0xff]
    %v144 = vld [vmem:[#allocation7 + $0xa0] sm:$0xff]
    %v145 = vld [vmem:[#allocation7 + $0xa8] sm:$0xff]
    %v146 = vld [vmem:[#allocation7 + $0xb0] sm:$0xff]
    %v147 = vld [vmem:[#allocation7 + $0xb8] sm:$0xff]
    %v148 = vld [vmem:[#allocation7 + $0xc0] sm:$0xff]
    %v149 = vld [vmem:[#allocation7 + $0xc8] sm:$0xff]
    %v150 = vld [vmem:[#allocation7 + $0xd0] sm:$0xff]
    %v151 = vld [vmem:[#allocation7 + $0xd8] sm:$0xff]
    %v152 = vld [vmem:[#allocation7 + $0xe0] sm:$0xff]
    %v153 = vld [vmem:[#allocation7 + $0xe8] sm:$0xff]
    %v154 = vld [vmem:[#allocation7 + $0xf0] sm:$0xff]
    %v155 = vld [vmem:[#allocation7 + $0xf8] sm:$0xff]
    %v156 = vld [vmem:[%s3] sm:$0xf]
    %v158 = vlaneseq
    %v159 = vshrl.u32 %v158, 7
    %v160 = vsub.s32 0, %v159
    %v161 = vrot.slane %v156, %v160
    %v162 = vlaneseq
    %v163 = vshrl.u32 %v162, 7
    %v164 = vsub.s32 1, %v163
    %v165 = vrot.slane %v156, %v164
    %v166 = vlaneseq
    %v167 = vshrl.u32 %v166, 7
    %v168 = vsub.s32 2, %v167
    %v169 = vrot.slane %v156, %v168
    %v170 = vlaneseq
    %v171 = vshrl.u32 %v170, 7
    %v172 = vsub.s32 3, %v171
    %v173 = vrot.slane %v156, %v172
    %v194 = vunpack.c.l.b16 %v108
    %v195 = vunpack.c.l.b16 %v109
    %v196 = vunpack.c.l.b16 %v110
    %v197 = vunpack.c.l.b16 %v111
    %v198 = vunpack.c.l.b16 %v112
    %v199 = vunpack.c.l.b16 %v113
    %v200 = vunpack.c.l.b16 %v114
    %v201 = vunpack.c.l.b16 %v115
    %v202 = vunpack.c.l.b16 %v116
    %v203 = vunpack.c.l.b16 %v117
    %v204 = vunpack.c.l.b16 %v118
    %v205 = vunpack.c.l.b16 %v119
    %v206 = vunpack.c.l.b16 %v120
    %v207 = vunpack.c.l.b16 %v121
    %v208 = vunpack.c.l.b16 %v122
    %v209 = vunpack.c.l.b16 %v123
    %v210 = vpack.c.b16 %v195, %v194
    %v211 = vpack.c.b16 %v197, %v196
    %v212 = vpack.c.b16 %v199, %v198
    %v213 = vpack.c.b16 %v201, %v200
    %v214 = vpack.c.b16 %v203, %v202
    %v215 = vpack.c.b16 %v205, %v204
    %v216 = vpack.c.b16 %v207, %v206
    %v217 = vpack.c.b16 %v209, %v208
    %v258 = vunpack.c.l.b16 %v124
    %v259 = vunpack.c.h.b16 %v124
    %v260 = vunpack.c.l.b16 %v125
    %v261 = vunpack.c.h.b16 %v125
    %v262 = vunpack.c.l.b16 %v126
    %v263 = vunpack.c.h.b16 %v126
    %v264 = vunpack.c.l.b16 %v127
    %v265 = vunpack.c.h.b16 %v127
    %v266 = vunpack.c.l.b16 %v128
    %v267 = vunpack.c.h.b16 %v128
    %v268 = vunpack.c.l.b16 %v129
    %v269 = vunpack.c.h.b16 %v129
    %v270 = vunpack.c.l.b16 %v130
    %v271 = vunpack.c.h.b16 %v130
    %v272 = vunpack.c.l.b16 %v131
    %v273 = vunpack.c.h.b16 %v131
    %v274 = vunpack.c.l.b16 %v132
    %v275 = vunpack.c.h.b16 %v132
    %v276 = vunpack.c.l.b16 %v133
    %v277 = vunpack.c.h.b16 %v133
    %v278 = vunpack.c.l.b16 %v134
    %v279 = vunpack.c.h.b16 %v134
    %v280 = vunpack.c.l.b16 %v135
    %v281 = vunpack.c.h.b16 %v135
    %v282 = vunpack.c.l.b16 %v136
    %v283 = vunpack.c.h.b16 %v136
    %v284 = vunpack.c.l.b16 %v137
    %v285 = vunpack.c.h.b16 %v137
    %v286 = vunpack.c.l.b16 %v138
    %v287 = vunpack.c.h.b16 %v138
    %v288 = vunpack.c.l.b16 %v139
    %v289 = vunpack.c.h.b16 %v139
    %v290 = vunpack.c.l.b16 %v140
    %v291 = vunpack.c.h.b16 %v140
    %v292 = vunpack.c.l.b16 %v141
    %v293 = vunpack.c.h.b16 %v141
    %v294 = vunpack.c.l.b16 %v142
    %v295 = vunpack.c.h.b16 %v142
    %v296 = vunpack.c.l.b16 %v143
    %v297 = vunpack.c.h.b16 %v143
    %v298 = vunpack.c.l.b16 %v144
    %v299 = vunpack.c.h.b16 %v144
    %v300 = vunpack.c.l.b16 %v145
    %v301 = vunpack.c.h.b16 %v145
    %v302 = vunpack.c.l.b16 %v146
    %v303 = vunpack.c.h.b16 %v146
    %v304 = vunpack.c.l.b16 %v147
    %v305 = vunpack.c.h.b16 %v147
    %v306 = vunpack.c.l.b16 %v148
    %v307 = vunpack.c.h.b16 %v148
    %v308 = vunpack.c.l.b16 %v149
    %v309 = vunpack.c.h.b16 %v149
    %v310 = vunpack.c.l.b16 %v150
    %v311 = vunpack.c.h.b16 %v150
    %v312 = vunpack.c.l.b16 %v151
    %v313 = vunpack.c.h.b16 %v151
    %v314 = vunpack.c.l.b16 %v152
    %v315 = vunpack.c.h.b16 %v152
    %v316 = vunpack.c.l.b16 %v153
    %v317 = vunpack.c.h.b16 %v153
    %v318 = vunpack.c.l.b16 %v154
    %v319 = vunpack.c.h.b16 %v154
    %v320 = vunpack.c.l.b16 %v155
    %v321 = vunpack.c.h.b16 %v155
    %v322 = vpack.c.b16 %v262, %v258
    %v323 = vpack.c.b16 %v263, %v259
    %v324 = vpack.c.b16 %v264, %v260
    %v325 = vpack.c.b16 %v265, %v261
    %v326 = vpack.c.b16 %v270, %v266
    %v327 = vpack.c.b16 %v271, %v267
    %v328 = vpack.c.b16 %v272, %v268
    %v329 = vpack.c.b16 %v273, %v269
    %v330 = vpack.c.b16 %v278, %v274
    %v331 = vpack.c.b16 %v279, %v275
    %v332 = vpack.c.b16 %v280, %v276
    %v333 = vpack.c.b16 %v281, %v277
    %v334 = vpack.c.b16 %v286, %v282
    %v335 = vpack.c.b16 %v287, %v283
    %v336 = vpack.c.b16 %v288, %v284
    %v337 = vpack.c.b16 %v289, %v285
    %v338 = vpack.c.b16 %v294, %v290
    %v339 = vpack.c.b16 %v295, %v291
    %v340 = vpack.c.b16 %v296, %v292
    %v341 = vpack.c.b16 %v297, %v293
    %v342 = vpack.c.b16 %v302, %v298
    %v343 = vpack.c.b16 %v303, %v299
    %v344 = vpack.c.b16 %v304, %v300
    %v345 = vpack.c.b16 %v305, %v301
    %v346 = vpack.c.b16 %v310, %v306
    %v347 = vpack.c.b16 %v311, %v307
    %v348 = vpack.c.b16 %v312, %v308
    %v349 = vpack.c.b16 %v313, %v309
    %v350 = vpack.c.b16 %v318, %v314
    %v351 = vpack.c.b16 %v319, %v315
    %v352 = vpack.c.b16 %v320, %v316
    %v353 = vpack.c.b16 %v321, %v317
    %386 = vmatprep.subr.bf16.mxu0 %v351
    %387 = vmatpush1.bf16.msra.mxu0 %v350
    %388 = vmatprep.subr.bf16.mxu0 %v347
    %389 = vmatpush1.bf16.msra.mxu0 %v346
    %390 = vmatprep.subr.bf16.mxu0 %v343
    %391 = vmatpush1.bf16.msra.mxu0 %v342
    %392 = vmatprep.subr.bf16.mxu0 %v339
    %393 = vmatpush1.bf16.msra.mxu0 %v338
    %394 = vmatprep.subr.bf16.mxu0 %v335
    %395 = vmatpush1.bf16.msra.mxu0 %v334
    %396 = vmatprep.subr.bf16.mxu0 %v331
    %397 = vmatpush1.bf16.msra.mxu0 %v330
    %398 = vmatprep.subr.bf16.mxu0 %v327
    %399 = vmatpush1.bf16.msra.mxu0 %v326
    %400 = vmatprep.subr.bf16.mxu0 %v323
    %401 = vmatpush1.bf16.msra.mxu0 %v322
    %402 = vmatprep.subr.bf16.mxu0 0
    %403 = vmatpush2.bf16.msra.mxu0 0
    %404 = vmatprep.subr.bf16.mxu0 0
    %405 = vmatpush2.bf16.msra.mxu0 0
    %406 = vmatprep.subr.bf16.mxu0 0
    %407 = vmatpush2.bf16.msra.mxu0 0
    %408 = vmatprep.subr.bf16.mxu0 0
    %409 = vmatpush2.bf16.msra.mxu0 0
    %410 = vmatprep.subr.bf16.mxu0 0
    %411 = vmatpush2.bf16.msra.mxu0 0
    %412 = vmatprep.subr.bf16.mxu0 0
    %413 = vmatpush2.bf16.msra.mxu0 0
    %414 = vmatprep.subr.bf16.mxu0 0
    %415 = vmatpush2.bf16.msra.mxu0 0
    %416 = vmatprep.subr.bf16.mxu0 0
    %417 = vmatpush2.bf16.msra.mxu0 0
    %418 = vmatprep.mubr.bf16.mxu0 0
    %419 = vmatmul.mubr.bf16.gmra.mxu0 %v210
    %v420 = vpop.f32.mrf.mxu0
    %v421 = vadd.f32 %v161, %v420
    %v422 = vpop.f32.mrf.mxu0
    %v423 = vadd.f32 %v165, %v422
    %v424 = vpop.f32.mrf.mxu0
    %v425 = vadd.f32 %v161, %v424
    %v426 = vpop.f32.mrf.mxu0
    %v427 = vadd.f32 %v165, %v426
    %428 = vmatprep.mubr.bf16.mxu0 0
    %429 = vmatmul.mubr.bf16.gmra.mxu0 %v211
    %v430 = vpop.f32.mrf.mxu0
    %v431 = vadd.f32 %v161, %v430
    %v432 = vpop.f32.mrf.mxu0
    %v433 = vadd.f32 %v165, %v432
    %v434 = vpop.f32.mrf.mxu0
    %v435 = vadd.f32 %v161, %v434
    %v436 = vpop.f32.mrf.mxu0
    %v437 = vadd.f32 %v165, %v436
    %438 = vmatprep.mubr.bf16.mxu0 0
    %439 = vmatmul.mubr.bf16.gmra.mxu0 %v212
    %v440 = vpop.f32.mrf.mxu0
    %v441 = vadd.f32 %v161, %v440
    %v442 = vpop.f32.mrf.mxu0
    %v443 = vadd.f32 %v165, %v442
    %v444 = vpop.f32.mrf.mxu0
    %v445 = vadd.f32 %v161, %v444
    %v446 = vpop.f32.mrf.mxu0
    %v447 = vadd.f32 %v165, %v446
    %448 = vmatprep.mubr.bf16.mxu0 0
    %449 = vmatmul.mubr.bf16.gmra.mxu0 %v213
    %v450 = vpop.f32.mrf.mxu0
    %v451 = vadd.f32 %v161, %v450
    %v452 = vpop.f32.mrf.mxu0
    %v453 = vadd.f32 %v165, %v452
    %v454 = vpop.f32.mrf.mxu0
    %v455 = vadd.f32 %v161, %v454
    %v456 = vpop.f32.mrf.mxu0
    %v457 = vadd.f32 %v165, %v456
    %458 = vmatprep.mubr.bf16.mxu0 0
    %459 = vmatmul.mubr.bf16.gmra.mxu0 %v214
    %v460 = vpop.f32.mrf.mxu0
    %v461 = vadd.f32 %v161, %v460
    %v462 = vpop.f32.mrf.mxu0
    %v463 = vadd.f32 %v165, %v462
    %v464 = vpop.f32.mrf.mxu0
    %v465 = vadd.f32 %v161, %v464
    %v466 = vpop.f32.mrf.mxu0
    %v467 = vadd.f32 %v165, %v466
    %468 = vmatprep.mubr.bf16.mxu0 0
    %469 = vmatmul.mubr.bf16.gmra.mxu0 %v215
    %v470 = vpop.f32.mrf.mxu0
    %v471 = vadd.f32 %v161, %v470
    %v472 = vpop.f32.mrf.mxu0
    %v473 = vadd.f32 %v165, %v472
    %v474 = vpop.f32.mrf.mxu0
    %v475 = vadd.f32 %v161, %v474
    %v476 = vpop.f32.mrf.mxu0
    %v477 = vadd.f32 %v165, %v476
    %478 = vmatprep.mubr.bf16.mxu0 0
    %479 = vmatmul.mubr.bf16.gmra.mxu0 %v216
    %v480 = vpop.f32.mrf.mxu0
    %v481 = vadd.f32 %v161, %v480
    %v482 = vpop.f32.mrf.mxu0
    %v483 = vadd.f32 %v165, %v482
    %v484 = vpop.f32.mrf.mxu0
    %v485 = vadd.f32 %v161, %v484
    %v486 = vpop.f32.mrf.mxu0
    %v487 = vadd.f32 %v165, %v486
    %488 = vmatprep.mubr.bf16.mxu0 0
    %489 = vmatmul.mubr.bf16.gmra.mxu0 %v217
    %v490 = vpop.f32.mrf.mxu0
    %v491 = vadd.f32 %v161, %v490
    %v492 = vpop.f32.mrf.mxu0
    %v493 = vadd.f32 %v165, %v492
    %v494 = vpop.f32.mrf.mxu0
    %v495 = vadd.f32 %v161, %v494
    %v496 = vpop.f32.mrf.mxu0
    %v497 = vadd.f32 %v165, %v496
    %498 = vdwg.mxu0
    %499 = vmatprep.subr.bf16.mxu0 %v353
    %500 = vmatpush1.bf16.msra.mxu0 %v352
    %501 = vmatprep.subr.bf16.mxu0 %v349
    %502 = vmatpush1.bf16.msra.mxu0 %v348
    %503 = vmatprep.subr.bf16.mxu0 %v345
    %504 = vmatpush1.bf16.msra.mxu0 %v344
    %505 = vmatprep.subr.bf16.mxu0 %v341
    %506 = vmatpush1.bf16.msra.mxu0 %v340
    %507 = vmatprep.subr.bf16.mxu0 %v337
    %508 = vmatpush1.bf16.msra.mxu0 %v336
    %509 = vmatprep.subr.bf16.mxu0 %v333
    %510 = vmatpush1.bf16.msra.mxu0 %v332
    %511 = vmatprep.subr.bf16.mxu0 %v329
    %512 = vmatpush1.bf16.msra.mxu0 %v328
    %513 = vmatprep.subr.bf16.mxu0 %v325
    %514 = vmatpush1.bf16.msra.mxu0 %v324
    %515 = vmatprep.subr.bf16.mxu0 0
    %516 = vmatpush2.bf16.msra.mxu0 0
    %517 = vmatprep.subr.bf16.mxu0 0
    %518 = vmatpush2.bf16.msra.mxu0 0
    %519 = vmatprep.subr.bf16.mxu0 0
    %520 = vmatpush2.bf16.msra.mxu0 0
    %521 = vmatprep.subr.bf16.mxu0 0
    %522 = vmatpush2.bf16.msra.mxu0 0
    %523 = vmatprep.subr.bf16.mxu0 0
    %524 = vmatpush2.bf16.msra.mxu0 0
    %525 = vmatprep.subr.bf16.mxu0 0
    %526 = vmatpush2.bf16.msra.mxu0 0
    %527 = vmatprep.subr.bf16.mxu0 0
    %528 = vmatpush2.bf16.msra.mxu0 0
    %529 = vmatprep.subr.bf16.mxu0 0
    %530 = vmatpush2.bf16.msra.mxu0 0
    %531 = vmatprep.mubr.bf16.mxu0 0
    %532 = vmatmul.mubr.bf16.gmra.mxu0 %v210
    %v533 = vpop.f32.mrf.mxu0
    %v534 = vadd.f32 %v169, %v533
    %v535 = vpop.f32.mrf.mxu0
    %v536 = vadd.f32 %v173, %v535
    %v537 = vpop.f32.mrf.mxu0
    %v538 = vadd.f32 %v169, %v537
    %v539 = vpop.f32.mrf.mxu0
    %v540 = vadd.f32 %v173, %v539
    %541 = vmatprep.mubr.bf16.mxu0 0
    %542 = vmatmul.mubr.bf16.gmra.mxu0 %v211
    %v543 = vpop.f32.mrf.mxu0
    %v544 = vadd.f32 %v169, %v543
    %v545 = vpop.f32.mrf.mxu0
    %v546 = vadd.f32 %v173, %v545
    %v547 = vpop.f32.mrf.mxu0
    %v548 = vadd.f32 %v169, %v547
    %v549 = vpop.f32.mrf.mxu0
    %v550 = vadd.f32 %v173, %v549
    %551 = vmatprep.mubr.bf16.mxu0 0
    %552 = vmatmul.mubr.bf16.gmra.mxu0 %v212
    %v553 = vpop.f32.mrf.mxu0
    %v554 = vadd.f32 %v169, %v553
    %v555 = vpop.f32.mrf.mxu0
    %v556 = vadd.f32 %v173, %v555
    %v557 = vpop.f32.mrf.mxu0
    %v558 = vadd.f32 %v169, %v557
    %v559 = vpop.f32.mrf.mxu0
    %v560 = vadd.f32 %v173, %v559
    %561 = vmatprep.mubr.bf16.mxu0 0
    %562 = vmatmul.mubr.bf16.gmra.mxu0 %v213
    %v563 = vpop.f32.mrf.mxu0
    %v564 = vadd.f32 %v169, %v563
    %v565 = vpop.f32.mrf.mxu0
    %v566 = vadd.f32 %v173, %v565
    %v567 = vpop.f32.mrf.mxu0
    %v568 = vadd.f32 %v169, %v567
    %v569 = vpop.f32.mrf.mxu0
    %v570 = vadd.f32 %v173, %v569
    %571 = vmatprep.mubr.bf16.mxu0 0
    %572 = vmatmul.mubr.bf16.gmra.mxu0 %v214
    %v573 = vpop.f32.mrf.mxu0
    %v574 = vadd.f32 %v169, %v573
    %v575 = vpop.f32.mrf.mxu0
    %v576 = vadd.f32 %v173, %v575
    %v577 = vpop.f32.mrf.mxu0
    %v578 = vadd.f32 %v169, %v577
    %v579 = vpop.f32.mrf.mxu0
    %v580 = vadd.f32 %v173, %v579
    %581 = vmatprep.mubr.bf16.mxu0 0
    %582 = vmatmul.mubr.bf16.gmra.mxu0 %v215
    %v583 = vpop.f32.mrf.mxu0
    %v584 = vadd.f32 %v169, %v583
    %v585 = vpop.f32.mrf.mxu0
    %v586 = vadd.f32 %v173, %v585
    %v587 = vpop.f32.mrf.mxu0
    %v588 = vadd.f32 %v169, %v587
    %v589 = vpop.f32.mrf.mxu0
    %v590 = vadd.f32 %v173, %v589
    %591 = vmatprep.mubr.bf16.mxu0 0
    %592 = vmatmul.mubr.bf16.gmra.mxu0 %v216
    %v593 = vpop.f32.mrf.mxu0
    %v594 = vadd.f32 %v169, %v593
    %v595 = vpop.f32.mrf.mxu0
    %v596 = vadd.f32 %v173, %v595
    %v597 = vpop.f32.mrf.mxu0
    %v598 = vadd.f32 %v169, %v597
    %v599 = vpop.f32.mrf.mxu0
    %v600 = vadd.f32 %v173, %v599
    %601 = vmatprep.mubr.bf16.mxu0 0
    %602 = vmatmul.mubr.bf16.gmra.mxu0 %v217
    %v603 = vpop.f32.mrf.mxu0
    %v604 = vadd.f32 %v169, %v603
    %v605 = vpop.f32.mrf.mxu0
    %v606 = vadd.f32 %v173, %v605
    %v607 = vpop.f32.mrf.mxu0
    %v608 = vadd.f32 %v169, %v607
    %v609 = vpop.f32.mrf.mxu0
    %v610 = vadd.f32 %v173, %v609
    %611 = vdwg.mxu0
    %612 = vst [vmem:[#allocation2] sm:$0xff] %v421
    %613 = vst [vmem:[#allocation2 + $0x8] sm:$0xff] %v423
    %614 = vst [vmem:[#allocation2 + $0x10] sm:$0xff] %v534
    %615 = vst [vmem:[#allocation2 + $0x18] sm:$0xff] %v536
    %616 = vst [vmem:[#allocation2 + $0x20] sm:$0xff] %v425
    %617 = vst [vmem:[#allocation2 + $0x28] sm:$0xff] %v427
    %618 = vst [vmem:[#allocation2 + $0x30] sm:$0xff] %v538
    %619 = vst [vmem:[#allocation2 + $0x38] sm:$0xff] %v540
    %620 = vst [vmem:[#allocation2 + $0x40] sm:$0xff] %v431
    %621 = vst [vmem:[#allocation2 + $0x48] sm:$0xff] %v433
    %622 = vst [vmem:[#allocation2 + $0x50] sm:$0xff] %v544
    %623 = vst [vmem:[#allocation2 + $0x58] sm:$0xff] %v546
    %624 = vst [vmem:[#allocation2 + $0x60] sm:$0xff] %v435
    %625 = vst [vmem:[#allocation2 + $0x68] sm:$0xff] %v437
    %626 = vst [vmem:[#allocation2 + $0x70] sm:$0xff] %v548
    %627 = vst [vmem:[#allocation2 + $0x78] sm:$0xff] %v550
    %628 = vst [vmem:[#allocation2 + $0x80] sm:$0xff] %v441
    %629 = vst [vmem:[#allocation2 + $0x88] sm:$0xff] %v443
    %630 = vst [vmem:[#allocation2 + $0x90] sm:$0xff] %v554
    %631 = vst [vmem:[#allocation2 + $0x98] sm:$0xff] %v556
    %632 = vst [vmem:[#allocation2 + $0xa0] sm:$0xff] %v445
    %633 = vst [vmem:[#allocation2 + $0xa8] sm:$0xff] %v447
    %634 = vst [vmem:[#allocation2 + $0xb0] sm:$0xff] %v558
    %635 = vst [vmem:[#allocation2 + $0xb8] sm:$0xff] %v560
    %636 = vst [vmem:[#allocation2 + $0xc0] sm:$0xff] %v451
    %637 = vst [vmem:[#allocation2 + $0xc8] sm:$0xff] %v453
    %638 = vst [vmem:[#allocation2 + $0xd0] sm:$0xff] %v564
    %639 = vst [vmem:[#allocation2 + $0xd8] sm:$0xff] %v566
    %640 = vst [vmem:[#allocation2 + $0xe0] sm:$0xff] %v455
    %641 = vst [vmem:[#allocation2 + $0xe8] sm:$0xff] %v457
    %642 = vst [vmem:[#allocation2 + $0xf0] sm:$0xff] %v568
    %643 = vst [vmem:[#allocation2 + $0xf8] sm:$0xff] %v570
    %644 = vst [vmem:[#allocation2 + $0x100] sm:$0xff] %v461
    %645 = vst [vmem:[#allocation2 + $0x108] sm:$0xff] %v463
    %646 = vst [vmem:[#allocation2 + $0x110] sm:$0xff] %v574
    %647 = vst [vmem:[#allocation2 + $0x118] sm:$0xff] %v576
    %648 = vst [vmem:[#allocation2 + $0x120] sm:$0xff] %v465
    %649 = vst [vmem:[#allocation2 + $0x128] sm:$0xff] %v467
    %650 = vst [vmem:[#allocation2 + $0x130] sm:$0xff] %v578
    %651 = vst [vmem:[#allocation2 + $0x138] sm:$0xff] %v580
    %652 = vst [vmem:[#allocation2 + $0x140] sm:$0xff] %v471
    %653 = vst [vmem:[#allocation2 + $0x148] sm:$0xff] %v473
    %654 = vst [vmem:[#allocation2 + $0x150] sm:$0xff] %v584
    %655 = vst [vmem:[#allocation2 + $0x158] sm:$0xff] %v586
    %656 = vst [vmem:[#allocation2 + $0x160] sm:$0xff] %v475
    %657 = vst [vmem:[#allocation2 + $0x168] sm:$0xff] %v477
    %658 = vst [vmem:[#allocation2 + $0x170] sm:$0xff] %v588
    %659 = vst [vmem:[#allocation2 + $0x178] sm:$0xff] %v590
    %660 = vst [vmem:[#allocation2 + $0x180] sm:$0xff] %v481
    %661 = vst [vmem:[#allocation2 + $0x188] sm:$0xff] %v483
    %662 = vst [vmem:[#allocation2 + $0x190] sm:$0xff] %v594
    %663 = vst [vmem:[#allocation2 + $0x198] sm:$0xff] %v596
    %664 = vst [vmem:[#allocation2 + $0x1a0] sm:$0xff] %v485
    %665 = vst [vmem:[#allocation2 + $0x1a8] sm:$0xff] %v487
    %666 = vst [vmem:[#allocation2 + $0x1b0] sm:$0xff] %v598
    %667 = vst [vmem:[#allocation2 + $0x1b8] sm:$0xff] %v600
    %668 = vst [vmem:[#allocation2 + $0x1c0] sm:$0xff] %v491
    %669 = vst [vmem:[#allocation2 + $0x1c8] sm:$0xff] %v493
    %670 = vst [vmem:[#allocation2 + $0x1d0] sm:$0xff] %v604
    %671 = vst [vmem:[#allocation2 + $0x1d8] sm:$0xff] %v606
    %672 = vst [vmem:[#allocation2 + $0x1e0] sm:$0xff] %v495
    %673 = vst [vmem:[#allocation2 + $0x1e8] sm:$0xff] %v497
    %674 = vst [vmem:[#allocation2 + $0x1f0] sm:$0xff] %v608
    %675 = vst [vmem:[#allocation2 + $0x1f8] sm:$0xff] %v610
    %v676 = vld [vmem:[#allocation9] sm:$0xff]
    %v677 = vld [vmem:[#allocation9 + $0x8] sm:$0xff]
    %v678 = vld [vmem:[#allocation9 + $0x10] sm:$0xff]
    %v679 = vld [vmem:[#allocation9 + $0x18] sm:$0xff]
    %v680 = vld [vmem:[#allocation9 + $0x20] sm:$0xff]
    %v681 = vld [vmem:[#allocation9 + $0x28] sm:$0xff]
    %v682 = vld [vmem:[#allocation9 + $0x30] sm:$0xff]
    %v683 = vld [vmem:[#allocation9 + $0x38] sm:$0xff]
    %v684 = vld [vmem:[#allocation9 + $0x40] sm:$0xff]
    %v685 = vld [vmem:[#allocation9 + $0x48] sm:$0xff]
    %v686 = vld [vmem:[#allocation9 + $0x50] sm:$0xff]
    %v687 = vld [vmem:[#allocation9 + $0x58] sm:$0xff]
    %v688 = vld [vmem:[#allocation9 + $0x60] sm:$0xff]
    %v689 = vld [vmem:[#allocation9 + $0x68] sm:$0xff]
    %v690 = vld [vmem:[#allocation9 + $0x70] sm:$0xff]
    %v691 = vld [vmem:[#allocation9 + $0x78] sm:$0xff]
    %v692 = vld [vmem:[#allocation9 + $0x80] sm:$0xff]
    %v693 = vld [vmem:[#allocation9 + $0x88] sm:$0xff]
    %v694 = vld [vmem:[#allocation9 + $0x90] sm:$0xff]
    %v695 = vld [vmem:[#allocation9 + $0x98] sm:$0xff]
    %v696 = vld [vmem:[#allocation9 + $0xa0] sm:$0xff]
    %v697 = vld [vmem:[#allocation9 + $0xa8] sm:$0xff]
    %v698 = vld [vmem:[#allocation9 + $0xb0] sm:$0xff]
    %v699 = vld [vmem:[#allocation9 + $0xb8] sm:$0xff]
    %v700 = vld [vmem:[#allocation9 + $0xc0] sm:$0xff]
    %v701 = vld [vmem:[#allocation9 + $0xc8] sm:$0xff]
    %v702 = vld [vmem:[#allocation9 + $0xd0] sm:$0xff]
    %v703 = vld [vmem:[#allocation9 + $0xd8] sm:$0xff]
    %v704 = vld [vmem:[#allocation9 + $0xe0] sm:$0xff]
    %v705 = vld [vmem:[#allocation9 + $0xe8] sm:$0xff]
    %v706 = vld [vmem:[#allocation9 + $0xf0] sm:$0xff]
    %v707 = vld [vmem:[#allocation9 + $0xf8] sm:$0xff]
    %v708 = vld [vmem:[#allocation3] sm:$0xff]
    %v709 = vld [vmem:[#allocation3 + $0x8] sm:$0xff]
    %s710 = scalar_lea.vmem [#allocation3], 16
    %v711 = vld [vmem:[%s710] sm:$0xff]
    %v712 = vld [vmem:[%s710 + $0x8] sm:$0xff]
    %s713 = smul.u32 0, 4
    %s714 = smul.addr %s713, 8
    %s715 = scalar_lea.vmem [#allocation2], %s714
    %v716 = vld [vmem:[%s715] sm:$0xff]
    %v717 = vld [vmem:[%s715 + $0x8] sm:$0xff]
    %v718 = vld [vmem:[%s715 + $0x10] sm:$0xff]
    %v719 = vld [vmem:[%s715 + $0x18] sm:$0xff]
    %v720 = vld [vmem:[%s715 + $0x20] sm:$0xff]
    %v721 = vld [vmem:[%s715 + $0x28] sm:$0xff]
    %v722 = vld [vmem:[%s715 + $0x30] sm:$0xff]
    %v723 = vld [vmem:[%s715 + $0x38] sm:$0xff]
    %v724 = vpack.c.bf16 %v709, %v708
    %v757 = vunpack.c.l.b16 %v676
    %v758 = vunpack.c.h.b16 %v676
    %v759 = vunpack.c.l.b16 %v677
    %v760 = vunpack.c.h.b16 %v677
    %v761 = vunpack.c.l.b16 %v678
    %v762 = vunpack.c.h.b16 %v678
    %v763 = vunpack.c.l.b16 %v679
    %v764 = vunpack.c.h.b16 %v679
    %v765 = vunpack.c.l.b16 %v680
    %v766 = vunpack.c.h.b16 %v680
    %v767 = vunpack.c.l.b16 %v681
    %v768 = vunpack.c.h.b16 %v681
    %v769 = vunpack.c.l.b16 %v682
    %v770 = vunpack.c.h.b16 %v682
    %v771 = vunpack.c.l.b16 %v683
    %v772 = vunpack.c.h.b16 %v683
    %v773 = vunpack.c.l.b16 %v684
    %v774 = vunpack.c.h.b16 %v684
    %v775 = vunpack.c.l.b16 %v685
    %v776 = vunpack.c.h.b16 %v685
    %v777 = vunpack.c.l.b16 %v686
    %v778 = vunpack.c.h.b16 %v686
    %v779 = vunpack.c.l.b16 %v687
    %v780 = vunpack.c.h.b16 %v687
    %v781 = vunpack.c.l.b16 %v688
    %v782 = vunpack.c.h.b16 %v688
    %v783 = vunpack.c.l.b16 %v689
    %v784 = vunpack.c.h.b16 %v689
    %v785 = vunpack.c.l.b16 %v690
    %v786 = vunpack.c.h.b16 %v690
    %v787 = vunpack.c.l.b16 %v691
    %v788 = vunpack.c.h.b16 %v691
    %v789 = vunpack.c.l.b16 %v692
    %v790 = vunpack.c.h.b16 %v692
    %v791 = vunpack.c.l.b16 %v693
    %v792 = vunpack.c.h.b16 %v693
    %v793 = vunpack.c.l.b16 %v694
    %v794 = vunpack.c.h.b16 %v694
    %v795 = vunpack.c.l.b16 %v695
    %v796 = vunpack.c.h.b16 %v695
    %v797 = vunpack.c.l.b16 %v696
    %v798 = vunpack.c.h.b16 %v696
    %v799 = vunpack.c.l.b16 %v697
    %v800 = vunpack.c.h.b16 %v697
    %v801 = vunpack.c.l.b16 %v698
    %v802 = vunpack.c.h.b16 %v698
    %v803 = vunpack.c.l.b16 %v699
    %v804 = vunpack.c.h.b16 %v699
    %v805 = vunpack.c.l.b16 %v700
    %v806 = vunpack.c.h.b16 %v700
    %v807 = vunpack.c.l.b16 %v701
    %v808 = vunpack.c.h.b16 %v701
    %v809 = vunpack.c.l.b16 %v702
    %v810 = vunpack.c.h.b16 %v702
    %v811 = vunpack.c.l.b16 %v703
    %v812 = vunpack.c.h.b16 %v703
    %v813 = vunpack.c.l.b16 %v704
    %v814 = vunpack.c.h.b16 %v704
    %v815 = vunpack.c.l.b16 %v705
    %v816 = vunpack.c.h.b16 %v705
    %v817 = vunpack.c.l.b16 %v706
    %v818 = vunpack.c.h.b16 %v706
    %v819 = vunpack.c.l.b16 %v707
    %v820 = vunpack.c.h.b16 %v707
    %v821 = vpack.c.b16 %v761, %v757
    %v822 = vpack.c.b16 %v762, %v758
    %v823 = vpack.c.b16 %v763, %v759
    %v824 = vpack.c.b16 %v764, %v760
    %v825 = vpack.c.b16 %v769, %v765
    %v826 = vpack.c.b16 %v770, %v766
    %v827 = vpack.c.b16 %v771, %v767
    %v828 = vpack.c.b16 %v772, %v768
    %v829 = vpack.c.b16 %v777, %v773
    %v830 = vpack.c.b16 %v778, %v774
    %v831 = vpack.c.b16 %v779, %v775
    %v832 = vpack.c.b16 %v780, %v776
    %v833 = vpack.c.b16 %v785, %v781
    %v834 = vpack.c.b16 %v786, %v782
    %v835 = vpack.c.b16 %v787, %v783
    %v836 = vpack.c.b16 %v788, %v784
    %v837 = vpack.c.b16 %v793, %v789
    %v838 = vpack.c.b16 %v794, %v790
    %v839 = vpack.c.b16 %v795, %v791
    %v840 = vpack.c.b16 %v796, %v792
    %v841 = vpack.c.b16 %v801, %v797
    %v842 = vpack.c.b16 %v802, %v798
    %v843 = vpack.c.b16 %v803, %v799
    %v844 = vpack.c.b16 %v804, %v800
    %v845 = vpack.c.b16 %v809, %v805
    %v846 = vpack.c.b16 %v810, %v806
    %v847 = vpack.c.b16 %v811, %v807
    %v848 = vpack.c.b16 %v812, %v808
    %v849 = vpack.c.b16 %v817, %v813
    %v850 = vpack.c.b16 %v818, %v814
    %v851 = vpack.c.b16 %v819, %v815
    %v852 = vpack.c.b16 %v820, %v816
    %885 = vmatprep.subr.bf16.mxu0 %v850
    %886 = vmatpush1.bf16.msra.mxu0 %v849
    %887 = vmatprep.subr.bf16.mxu0 %v846
    %888 = vmatpush1.bf16.msra.mxu0 %v845
    %889 = vmatprep.subr.bf16.mxu0 %v842
    %890 = vmatpush1.bf16.msra.mxu0 %v841
    %891 = vmatprep.subr.bf16.mxu0 %v838
    %892 = vmatpush1.bf16.msra.mxu0 %v837
    %893 = vmatprep.subr.bf16.mxu0 %v834
    %894 = vmatpush1.bf16.msra.mxu0 %v833
    %895 = vmatprep.subr.bf16.mxu0 %v830
    %896 = vmatpush1.bf16.msra.mxu0 %v829
    %897 = vmatprep.subr.bf16.mxu0 %v826
    %898 = vmatpush1.bf16.msra.mxu0 %v825
    %899 = vmatprep.subr.bf16.mxu0 %v822
    %900 = vmatpush1.bf16.msra.mxu0 %v821
    %901 = vmatprep.subr.bf16.mxu0 0
    %902 = vmatpush2.bf16.msra.mxu0 0
    %903 = vmatprep.subr.bf16.mxu0 0
    %904 = vmatpush2.bf16.msra.mxu0 0
    %905 = vmatprep.subr.bf16.mxu0 0
    %906 = vmatpush2.bf16.msra.mxu0 0
    %907 = vmatprep.subr.bf16.mxu0 0
    %908 = vmatpush2.bf16.msra.mxu0 0
    %909 = vmatprep.subr.bf16.mxu0 0
    %910 = vmatpush2.bf16.msra.mxu0 0
    %911 = vmatprep.subr.bf16.mxu0 0
    %912 = vmatpush2.bf16.msra.mxu0 0
    %913 = vmatprep.subr.bf16.mxu0 0
    %914 = vmatpush2.bf16.msra.mxu0 0
    %915 = vmatprep.subr.bf16.mxu0 0
    %916 = vmatpush2.bf16.msra.mxu0 0
    %917 = vmatprep.mubr.bf16.mxu0 0
    %918 = vmatmul.mubr.bf16.gmra.mxu0 %v724
    %v919 = vpop.f32.mrf.mxu0
    %v920 = vadd.f32 0.0, %v919
    %v921 = vpop.f32.mrf.mxu0
    %v922 = vadd.f32 0.0, %v921
    %v923 = vpop.f32.mrf.mxu0
    %v924 = vadd.f32 0.0, %v923
    %v925 = vpop.f32.mrf.mxu0
    %v926 = vadd.f32 0.0, %v925
    %927 = vdwg.mxu0
    %928 = vmatprep.subr.bf16.mxu0 %v852
    %929 = vmatpush1.bf16.msra.mxu0 %v851
    %930 = vmatprep.subr.bf16.mxu0 %v848
    %931 = vmatpush1.bf16.msra.mxu0 %v847
    %932 = vmatprep.subr.bf16.mxu0 %v844
    %933 = vmatpush1.bf16.msra.mxu0 %v843
    %934 = vmatprep.subr.bf16.mxu0 %v840
    %935 = vmatpush1.bf16.msra.mxu0 %v839
    %936 = vmatprep.subr.bf16.mxu0 %v836
    %937 = vmatpush1.bf16.msra.mxu0 %v835
    %938 = vmatprep.subr.bf16.mxu0 %v832
    %939 = vmatpush1.bf16.msra.mxu0 %v831
    %940 = vmatprep.subr.bf16.mxu0 %v828
    %941 = vmatpush1.bf16.msra.mxu0 %v827
    %942 = vmatprep.subr.bf16.mxu0 %v824
    %943 = vmatpush1.bf16.msra.mxu0 %v823
    %944 = vmatprep.subr.bf16.mxu0 0
    %945 = vmatpush2.bf16.msra.mxu0 0
    %946 = vmatprep.subr.bf16.mxu0 0
    %947 = vmatpush2.bf16.msra.mxu0 0
    %948 = vmatprep.subr.bf16.mxu0 0
    %949 = vmatpush2.bf16.msra.mxu0 0
    %950 = vmatprep.subr.bf16.mxu0 0
    %951 = vmatpush2.bf16.msra.mxu0 0
    %952 = vmatprep.subr.bf16.mxu0 0
    %953 = vmatpush2.bf16.msra.mxu0 0
    %954 = vmatprep.subr.bf16.mxu0 0
    %955 = vmatpush2.bf16.msra.mxu0 0
    %956 = vmatprep.subr.bf16.mxu0 0
    %957 = vmatpush2.bf16.msra.mxu0 0
    %958 = vmatprep.subr.bf16.mxu0 0
    %959 = vmatpush2.bf16.msra.mxu0 0
    %960 = vmatprep.mubr.bf16.mxu0 0
    %961 = vmatmul.mubr.bf16.gmra.mxu0 %v724
    %v962 = vpop.f32.mrf.mxu0
    %v963 = vadd.f32 0.0, %v962
    %v964 = vpop.f32.mrf.mxu0
    %v965 = vadd.f32 0.0, %v964
    %v966 = vpop.f32.mrf.mxu0
    %v967 = vadd.f32 0.0, %v966
    %v968 = vpop.f32.mrf.mxu0
    %v969 = vadd.f32 0.0, %v968
    %970 = vdwg.mxu0
    %v971 = vadd.f32 %v716, %v920
    %v972 = vadd.f32 %v717, %v922
    %v973 = vadd.f32 %v718, %v963
    %v974 = vadd.f32 %v719, %v965
    %v975 = vadd.f32 %v720, %v924
    %v976 = vadd.f32 %v721, %v926
    %v977 = vadd.f32 %v722, %v967
    %v978 = vadd.f32 %v723, %v969
    %v979 = vxor.u32 %v971, 2147483648
    %v980 = vxor.u32 %v975, 2147483648
    %v981 = vmul.f32 %v979, 1.442695
    %v982 = vpow.pop %v981
    %v983 = vmul.f32 %v980, 1.442695
    %v984 = vpow.pop %v983
    %v985 = vadd.f32 %v982, 1.0
    %v986 = vadd.f32 %v984, 1.0
    %v987 = vrcp.pop %v985
    %v988 = vmul.f32 1.0, %v987
    %v989 = vrcp.pop %v986
    %v990 = vmul.f32 1.0, %v989
    %v991 = vxor.u32 %v972, 2147483648
    %v992 = vxor.u32 %v976, 2147483648
    %v993 = vmul.f32 %v991, 1.442695
    %v994 = vpow.pop %v993
    %v995 = vmul.f32 %v992, 1.442695
    %v996 = vpow.pop %v995
    %v997 = vadd.f32 %v994, 1.0
    %v998 = vadd.f32 %v996, 1.0
    %v999 = vrcp.pop %v997
    %v1000 = vmul.f32 1.0, %v999
    %v1001 = vrcp.pop %v998
    %v1002 = vmul.f32 1.0, %v1001
    %v1003 = vtanh.pop %v973
    %v1004 = vtanh.pop %v977
    %v1005 = vxor.u32 %v974, 2147483648
    %v1006 = vxor.u32 %v978, 2147483648
    %v1007 = vmul.f32 %v1005, 1.442695
    %v1008 = vpow.pop %v1007
    %v1009 = vmul.f32 %v1006, 1.442695
    %v1010 = vpow.pop %v1009
    %v1011 = vadd.f32 %v1008, 1.0
    %v1012 = vadd.f32 %v1010, 1.0
    %v1013 = vrcp.pop %v1011
    %v1014 = vmul.f32 1.0, %v1013
    %v1015 = vrcp.pop %v1012
    %v1016 = vmul.f32 1.0, %v1015
    %v1017 = vmul.f32 %v1000, %v711
    %v1018 = vmul.f32 %v1002, %v712
    %v1019 = vmul.f32 %v988, %v1003
    %v1020 = vmul.f32 %v990, %v1004
    %v1021 = vadd.f32 %v1017, %v1019
    %v1022 = vadd.f32 %v1018, %v1020
    %v1023 = vtanh.pop %v1021
    %v1024 = vtanh.pop %v1022
    %v1025 = vmul.f32 %v1014, %v1023
    %v1026 = vmul.f32 %v1016, %v1024
    %v1027 = vpack.c.bf16 %v1026, %v1025
    %v1029 = vunpack.c.l.b16 %v1027
    %v1030 = vunpack.c.h.b16 %v1027
    %v1031 = vpack.c.b16 %v1029, %v1029
    %v1032 = vpack.c.b16 %v1030, %v1030
    %1035 = vst [vmem:[#allocation13] sm:$0xf] %v1031
    %1036 = vst [vmem:[#allocation13 + $0x4] sm:$0xf] %v1032
    %s1037 = smul.u32 2, 4
    %s1038 = smul.addr %s1037, 8
    %s1039 = scalar_lea.vmem [#allocation2], %s1038
    %v1040 = vld [vmem:[%s1039] sm:$0xff]
    %v1041 = vld [vmem:[%s1039 + $0x8] sm:$0xff]
    %v1042 = vld [vmem:[%s1039 + $0x10] sm:$0xff]
    %v1043 = vld [vmem:[%s1039 + $0x18] sm:$0xff]
    %v1044 = vld [vmem:[%s1039 + $0x20] sm:$0xff]
    %v1045 = vld [vmem:[%s1039 + $0x28] sm:$0xff]
    %v1046 = vld [vmem:[%s1039 + $0x30] sm:$0xff]
    %v1047 = vld [vmem:[%s1039 + $0x38] sm:$0xff]
    %1048 = vmatprep.subr.bf16.mxu0 %v850
    %1049 = vmatpush1.bf16.msra.mxu0 %v849
    %1050 = vmatprep.subr.bf16.mxu0 %v846
    %1051 = vmatpush1.bf16.msra.mxu0 %v845
    %1052 = vmatprep.subr.bf16.mxu0 %v842
    %1053 = vmatpush1.bf16.msra.mxu0 %v841
    %1054 = vmatprep.subr.bf16.mxu0 %v838
    %1055 = vmatpush1.bf16.msra.mxu0 %v837
    %1056 = vmatprep.subr.bf16.mxu0 %v834
    %1057 = vmatpush1.bf16.msra.mxu0 %v833
    %1058 = vmatprep.subr.bf16.mxu0 %v830
    %1059 = vmatpush1.bf16.msra.mxu0 %v829
    %1060 = vmatprep.subr.bf16.mxu0 %v826
    %1061 = vmatpush1.bf16.msra.mxu0 %v825
    %1062 = vmatprep.subr.bf16.mxu0 %v822
    %1063 = vmatpush1.bf16.msra.mxu0 %v821
    %1064 = vmatprep.subr.bf16.mxu0 0
    %1065 = vmatpush2.bf16.msra.mxu0 0
    %1066 = vmatprep.subr.bf16.mxu0 0
    %1067 = vmatpush2.bf16.msra.mxu0 0
    %1068 = vmatprep.subr.bf16.mxu0 0
    %1069 = vmatpush2.bf16.msra.mxu0 0
    %1070 = vmatprep.subr.bf16.mxu0 0
    %1071 = vmatpush2.bf16.msra.mxu0 0
    %1072 = vmatprep.subr.bf16.mxu0 0
    %1073 = vmatpush2.bf16.msra.mxu0 0
    %1074 = vmatprep.subr.bf16.mxu0 0
    %1075 = vmatpush2.bf16.msra.mxu0 0
    %1076 = vmatprep.subr.bf16.mxu0 0
    %1077 = vmatpush2.bf16.msra.mxu0 0
    %1078 = vmatprep.subr.bf16.mxu0 0
    %1079 = vmatpush2.bf16.msra.mxu0 0
    %1080 = vmatprep.mubr.bf16.mxu0 0
    %1081 = vmatmul.mubr.bf16.gmra.mxu0 %v1027
    %v1082 = vpop.f32.mrf.mxu0
    %v1083 = vadd.f32 0.0, %v1082
    %v1084 = vpop.f32.mrf.mxu0
    %v1085 = vadd.f32 0.0, %v1084
    %v1086 = vpop.f32.mrf.mxu0
    %v1087 = vadd.f32 0.0, %v1086
    %v1088 = vpop.f32.mrf.mxu0
    %v1089 = vadd.f32 0.0, %v1088
    %1090 = vdwg.mxu0
    %1091 = vmatprep.subr.bf16.mxu0 %v852
    %1092 = vmatpush1.bf16.msra.mxu0 %v851
    %1093 = vmatprep.subr.bf16.mxu0 %v848
    %1094 = vmatpush1.bf16.msra.mxu0 %v847
    %1095 = vmatprep.subr.bf16.mxu0 %v844
    %1096 = vmatpush1.bf16.msra.mxu0 %v843
    %1097 = vmatprep.subr.bf16.mxu0 %v840
    %1098 = vmatpush1.bf16.msra.mxu0 %v839
    %1099 = vmatprep.subr.bf16.mxu0 %v836
    %1100 = vmatpush1.bf16.msra.mxu0 %v835
    %1101 = vmatprep.subr.bf16.mxu0 %v832
    %1102 = vmatpush1.bf16.msra.mxu0 %v831
    %1103 = vmatprep.subr.bf16.mxu0 %v828
    %1104 = vmatpush1.bf16.msra.mxu0 %v827
    %1105 = vmatprep.subr.bf16.mxu0 %v824
    %1106 = vmatpush1.bf16.msra.mxu0 %v823
    %1107 = vmatprep.subr.bf16.mxu0 0
    %1108 = vmatpush2.bf16.msra.mxu0 0
    %1109 = vmatprep.subr.bf16.mxu0 0
    %1110 = vmatpush2.bf16.msra.mxu0 0
    %1111 = vmatprep.subr.bf16.mxu0 0
    %1112 = vmatpush2.bf16.msra.mxu0 0
    %1113 = vmatprep.subr.bf16.mxu0 0
    %1114 = vmatpush2.bf16.msra.mxu0 0
    %1115 = vmatprep.subr.bf16.mxu0 0
    %1116 = vmatpush2.bf16.msra.mxu0 0
    %1117 = vmatprep.subr.bf16.mxu0 0
    %1118 = vmatpush2.bf16.msra.mxu0 0
    %1119 = vmatprep.subr.bf16.mxu0 0
    %1120 = vmatpush2.bf16.msra.mxu0 0
    %1121 = vmatprep.subr.bf16.mxu0 0
    %1122 = vmatpush2.bf16.msra.mxu0 0
    %1123 = vmatprep.mubr.bf16.mxu0 0
    %1124 = vmatmul.mubr.bf16.gmra.mxu0 %v1027
    %v1125 = vpop.f32.mrf.mxu0
    %v1126 = vadd.f32 0.0, %v1125
    %v1127 = vpop.f32.mrf.mxu0
    %v1128 = vadd.f32 0.0, %v1127
    %v1129 = vpop.f32.mrf.mxu0
    %v1130 = vadd.f32 0.0, %v1129
    %v1131 = vpop.f32.mrf.mxu0
    %v1132 = vadd.f32 0.0, %v1131
    %1133 = vdwg.mxu0
    %v1134 = vadd.f32 %v1040, %v1083
    %v1135 = vadd.f32 %v1041, %v1085
    %v1136 = vadd.f32 %v1042, %v1126
    %v1137 = vadd.f32 %v1043, %v1128
    %v1138 = vadd.f32 %v1044, %v1087
    %v1139 = vadd.f32 %v1045, %v1089
    %v1140 = vadd.f32 %v1046, %v1130
    %v1141 = vadd.f32 %v1047, %v1132
    %v1142 = vxor.u32 %v1134, 2147483648
    %v1143 = vxor.u32 %v1138, 2147483648
    %v1144 = vmul.f32 %v1142, 1.442695
    %v1145 = vpow.pop %v1144
    %v1146 = vmul.f32 %v1143, 1.442695
    %v1147 = vpow.pop %v1146
    %v1148 = vadd.f32 %v1145, 1.0
    %v1149 = vadd.f32 %v1147, 1.0
    %v1150 = vrcp.pop %v1148
    %v1151 = vmul.f32 1.0, %v1150
    %v1152 = vrcp.pop %v1149
    %v1153 = vmul.f32 1.0, %v1152
    %v1154 = vxor.u32 %v1135, 2147483648
    %v1155 = vxor.u32 %v1139, 2147483648
    %v1156 = vmul.f32 %v1154, 1.442695
    %v1157 = vpow.pop %v1156
    %v1158 = vmul.f32 %v1155, 1.442695
    %v1159 = vpow.pop %v1158
    %v1160 = vadd.f32 %v1157, 1.0
    %v1161 = vadd.f32 %v1159, 1.0
    %v1162 = vrcp.pop %v1160
    %v1163 = vmul.f32 1.0, %v1162
    %v1164 = vrcp.pop %v1161
    %v1165 = vmul.f32 1.0, %v1164
    %v1166 = vtanh.pop %v1136
    %v1167 = vtanh.pop %v1140
    %v1168 = vxor.u32 %v1137, 2147483648
    %v1169 = vxor.u32 %v1141, 2147483648
    %v1170 = vmul.f32 %v1168, 1.442695
    %v1171 = vpow.pop %v1170
    %v1172 = vmul.f32 %v1169, 1.442695
    %v1173 = vpow.pop %v1172
    %v1174 = vadd.f32 %v1171, 1.0
    %v1175 = vadd.f32 %v1173, 1.0
    %v1176 = vrcp.pop %v1174
    %v1177 = vmul.f32 1.0, %v1176
    %v1178 = vrcp.pop %v1175
    %v1179 = vmul.f32 1.0, %v1178
    %v1180 = vmul.f32 %v1163, %v1021
    %v1181 = vmul.f32 %v1165, %v1022
    %v1182 = vmul.f32 %v1151, %v1166
    %v1183 = vmul.f32 %v1153, %v1167
    %v1184 = vadd.f32 %v1180, %v1182
    %v1185 = vadd.f32 %v1181, %v1183
    %v1186 = vtanh.pop %v1184
    %v1187 = vtanh.pop %v1185
    %v1188 = vmul.f32 %v1177, %v1186
    %v1189 = vmul.f32 %v1179, %v1187
    %v1190 = vpack.c.bf16 %v1189, %v1188
    %v1192 = vunpack.c.l.b16 %v1190
    %v1193 = vunpack.c.h.b16 %v1190
    %v1194 = vpack.c.b16 %v1192, %v1192
    %v1195 = vpack.c.b16 %v1193, %v1193
    %s1198 = scalar_lea.vmem [#allocation13], 8
    %1199 = vst [vmem:[%s1198] sm:$0xf] %v1194
    %1200 = vst [vmem:[%s1198 + $0x4] sm:$0xf] %v1195
    %s1201 = smul.u32 4, 4
    %s1202 = smul.addr %s1201, 8
    %s1203 = scalar_lea.vmem [#allocation2], %s1202
    %v1204 = vld [vmem:[%s1203] sm:$0xff]
    %v1205 = vld [vmem:[%s1203 + $0x8] sm:$0xff]
    %v1206 = vld [vmem:[%s1203 + $0x10] sm:$0xff]
    %v1207 = vld [vmem:[%s1203 + $0x18] sm:$0xff]
    %v1208 = vld [vmem:[%s1203 + $0x20] sm:$0xff]
    %v1209 = vld [vmem:[%s1203 + $0x28] sm:$0xff]
    %v1210 = vld [vmem:[%s1203 + $0x30] sm:$0xff]
    %v1211 = vld [vmem:[%s1203 + $0x38] sm:$0xff]
    %1212 = vmatprep.subr.bf16.mxu0 %v850
    %1213 = vmatpush1.bf16.msra.mxu0 %v849
    %1214 = vmatprep.subr.bf16.mxu0 %v846
    %1215 = vmatpush1.bf16.msra.mxu0 %v845
    %1216 = vmatprep.subr.bf16.mxu0 %v842
    %1217 = vmatpush1.bf16.msra.mxu0 %v841
    %1218 = vmatprep.subr.bf16.mxu0 %v838
    %1219 = vmatpush1.bf16.msra.mxu0 %v837
    %1220 = vmatprep.subr.bf16.mxu0 %v834
    %1221 = vmatpush1.bf16.msra.mxu0 %v833
    %1222 = vmatprep.subr.bf16.mxu0 %v830
    %1223 = vmatpush1.bf16.msra.mxu0 %v829
    %1224 = vmatprep.subr.bf16.mxu0 %v826
    %1225 = vmatpush1.bf16.msra.mxu0 %v825
    %1226 = vmatprep.subr.bf16.mxu0 %v822
    %1227 = vmatpush1.bf16.msra.mxu0 %v821
    %1228 = vmatprep.subr.bf16.mxu0 0
    %1229 = vmatpush2.bf16.msra.mxu0 0
    %1230 = vmatprep.subr.bf16.mxu0 0
    %1231 = vmatpush2.bf16.msra.mxu0 0
    %1232 = vmatprep.subr.bf16.mxu0 0
    %1233 = vmatpush2.bf16.msra.mxu0 0
    %1234 = vmatprep.subr.bf16.mxu0 0
    %1235 = vmatpush2.bf16.msra.mxu0 0
    %1236 = vmatprep.subr.bf16.mxu0 0
    %1237 = vmatpush2.bf16.msra.mxu0 0
    %1238 = vmatprep.subr.bf16.mxu0 0
    %1239 = vmatpush2.bf16.msra.mxu0 0
    %1240 = vmatprep.subr.bf16.mxu0 0
    %1241 = vmatpush2.bf16.msra.mxu0 0
    %1242 = vmatprep.subr.bf16.mxu0 0
    %1243 = vmatpush2.bf16.msra.mxu0 0
    %1244 = vmatprep.mubr.bf16.mxu0 0
    %1245 = vmatmul.mubr.bf16.gmra.mxu0 %v1190
    %v1246 = vpop.f32.mrf.mxu0
    %v1247 = vadd.f32 0.0, %v1246
    %v1248 = vpop.f32.mrf.mxu0
    %v1249 = vadd.f32 0.0, %v1248
    %v1250 = vpop.f32.mrf.mxu0
    %v1251 = vadd.f32 0.0, %v1250
    %v1252 = vpop.f32.mrf.mxu0
    %v1253 = vadd.f32 0.0, %v1252
    %1254 = vdwg.mxu0
    %1255 = vmatprep.subr.bf16.mxu0 %v852
    %1256 = vmatpush1.bf16.msra.mxu0 %v851
    %1257 = vmatprep.subr.bf16.mxu0 %v848
    %1258 = vmatpush1.bf16.msra.mxu0 %v847
    %1259 = vmatprep.subr.bf16.mxu0 %v844
    %1260 = vmatpush1.bf16.msra.mxu0 %v843
    %1261 = vmatprep.subr.bf16.mxu0 %v840
    %1262 = vmatpush1.bf16.msra.mxu0 %v839
    %1263 = vmatprep.subr.bf16.mxu0 %v836
    %1264 = vmatpush1.bf16.msra.mxu0 %v835
    %1265 = vmatprep.subr.bf16.mxu0 %v832
    %1266 = vmatpush1.bf16.msra.mxu0 %v831
    %1267 = vmatprep.subr.bf16.mxu0 %v828
    %1268 = vmatpush1.bf16.msra.mxu0 %v827
    %1269 = vmatprep.subr.bf16.mxu0 %v824
    %1270 = vmatpush1.bf16.msra.mxu0 %v823
    %1271 = vmatprep.subr.bf16.mxu0 0
    %1272 = vmatpush2.bf16.msra.mxu0 0
    %1273 = vmatprep.subr.bf16.mxu0 0
    %1274 = vmatpush2.bf16.msra.mxu0 0
    %1275 = vmatprep.subr.bf16.mxu0 0
    %1276 = vmatpush2.bf16.msra.mxu0 0
    %1277 = vmatprep.subr.bf16.mxu0 0
    %1278 = vmatpush2.bf16.msra.mxu0 0
    %1279 = vmatprep.subr.bf16.mxu0 0
    %1280 = vmatpush2.bf16.msra.mxu0 0
    %1281 = vmatprep.subr.bf16.mxu0 0
    %1282 = vmatpush2.bf16.msra.mxu0 0
    %1283 = vmatprep.subr.bf16.mxu0 0
    %1284 = vmatpush2.bf16.msra.mxu0 0
    %1285 = vmatprep.subr.bf16.mxu0 0
    %1286 = vmatpush2.bf16.msra.mxu0 0
    %1287 = vmatprep.mubr.bf16.mxu0 0
    %1288 = vmatmul.mubr.bf16.gmra.mxu0 %v1190
    %v1289 = vpop.f32.mrf.mxu0
    %v1290 = vadd.f32 0.0, %v1289
    %v1291 = vpop.f32.mrf.mxu0
    %v1292 = vadd.f32 0.0, %v1291
    %v1293 = vpop.f32.mrf.mxu0
    %v1294 = vadd.f32 0.0, %v1293
    %v1295 = vpop.f32.mrf.mxu0
    %v1296 = vadd.f32 0.0, %v1295
    %1297 = vdwg.mxu0
    %v1298 = vadd.f32 %v1204, %v1247
    %v1299 = vadd.f32 %v1205, %v1249
    %v1300 = vadd.f32 %v1206, %v1290
    %v1301 = vadd.f32 %v1207, %v1292
    %v1302 = vadd.f32 %v1208, %v1251
    %v1303 = vadd.f32 %v1209, %v1253
    %v1304 = vadd.f32 %v1210, %v1294
    %v1305 = vadd.f32 %v1211, %v1296
    %v1306 = vxor.u32 %v1298, 2147483648
    %v1307 = vxor.u32 %v1302, 2147483648
    %v1308 = vmul.f32 %v1306, 1.442695
    %v1309 = vpow.pop %v1308
    %v1310 = vmul.f32 %v1307, 1.442695
    %v1311 = vpow.pop %v1310
    %v1312 = vadd.f32 %v1309, 1.0
    %v1313 = vadd.f32 %v1311, 1.0
    %v1314 = vrcp.pop %v1312
    %v1315 = vmul.f32 1.0, %v1314
    %v1316 = vrcp.pop %v1313
    %v1317 = vmul.f32 1.0, %v1316
    %v1318 = vxor.u32 %v1299, 2147483648
    %v1319 = vxor.u32 %v1303, 2147483648
    %v1320 = vmul.f32 %v1318, 1.442695
    %v1321 = vpow.pop %v1320
    %v1322 = vmul.f32 %v1319, 1.442695
    %v1323 = vpow.pop %v1322
    %v1324 = vadd.f32 %v1321, 1.0
    %v1325 = vadd.f32 %v1323, 1.0
    %v1326 = vrcp.pop %v1324
    %v1327 = vmul.f32 1.0, %v1326
    %v1328 = vrcp.pop %v1325
    %v1329 = vmul.f32 1.0, %v1328
    %v1330 = vtanh.pop %v1300
    %v1331 = vtanh.pop %v1304
    %v1332 = vxor.u32 %v1301, 2147483648
    %v1333 = vxor.u32 %v1305, 2147483648
    %v1334 = vmul.f32 %v1332, 1.442695
    %v1335 = vpow.pop %v1334
    %v1336 = vmul.f32 %v1333, 1.442695
    %v1337 = vpow.pop %v1336
    %v1338 = vadd.f32 %v1335, 1.0
    %v1339 = vadd.f32 %v1337, 1.0
    %v1340 = vrcp.pop %v1338
    %v1341 = vmul.f32 1.0, %v1340
    %v1342 = vrcp.pop %v1339
    %v1343 = vmul.f32 1.0, %v1342
    %v1344 = vmul.f32 %v1327, %v1184
    %v1345 = vmul.f32 %v1329, %v1185
    %v1346 = vmul.f32 %v1315, %v1330
    %v1347 = vmul.f32 %v1317, %v1331
    %v1348 = vadd.f32 %v1344, %v1346
    %v1349 = vadd.f32 %v1345, %v1347
    %v1350 = vtanh.pop %v1348
    %v1351 = vtanh.pop %v1349
    %v1352 = vmul.f32 %v1341, %v1350
    %v1353 = vmul.f32 %v1343, %v1351
    %v1354 = vpack.c.bf16 %v1353, %v1352
    %v1356 = vunpack.c.l.b16 %v1354
    %v1357 = vunpack.c.h.b16 %v1354
    %v1358 = vpack.c.b16 %v1356, %v1356
    %v1359 = vpack.c.b16 %v1357, %v1357
    %s1362 = scalar_lea.vmem [#allocation13], 16
    %1363 = vst [vmem:[%s1362] sm:$0xf] %v1358
    %1364 = vst [vmem:[%s1362 + $0x4] sm:$0xf] %v1359
    %s1365 = smul.u32 6, 4
    %s1366 = smul.addr %s1365, 8
    %s1367 = scalar_lea.vmem [#allocation2], %s1366
    %v1368 = vld [vmem:[%s1367] sm:$0xff]
    %v1369 = vld [vmem:[%s1367 + $0x8] sm:$0xff]
    %v1370 = vld [vmem:[%s1367 + $0x10] sm:$0xff]
    %v1371 = vld [vmem:[%s1367 + $0x18] sm:$0xff]
    %v1372 = vld [vmem:[%s1367 + $0x20] sm:$0xff]
    %v1373 = vld [vmem:[%s1367 + $0x28] sm:$0xff]
    %v1374 = vld [vmem:[%s1367 + $0x30] sm:$0xff]
    %v1375 = vld [vmem:[%s1367 + $0x38] sm:$0xff]
    %1376 = vmatprep.subr.bf16.mxu0 %v850
    %1377 = vmatpush1.bf16.msra.mxu0 %v849
    %1378 = vmatprep.subr.bf16.mxu0 %v846
    %1379 = vmatpush1.bf16.msra.mxu0 %v845
    %1380 = vmatprep.subr.bf16.mxu0 %v842
    %1381 = vmatpush1.bf16.msra.mxu0 %v841
    %1382 = vmatprep.subr.bf16.mxu0 %v838
    %1383 = vmatpush1.bf16.msra.mxu0 %v837
    %1384 = vmatprep.subr.bf16.mxu0 %v834
    %1385 = vmatpush1.bf16.msra.mxu0 %v833
    %1386 = vmatprep.subr.bf16.mxu0 %v830
    %1387 = vmatpush1.bf16.msra.mxu0 %v829
    %1388 = vmatprep.subr.bf16.mxu0 %v826
    %1389 = vmatpush1.bf16.msra.mxu0 %v825
    %1390 = vmatprep.subr.bf16.mxu0 %v822
    %1391 = vmatpush1.bf16.msra.mxu0 %v821
    %1392 = vmatprep.subr.bf16.mxu0 0
    %1393 = vmatpush2.bf16.msra.mxu0 0
    %1394 = vmatprep.subr.bf16.mxu0 0
    %1395 = vmatpush2.bf16.msra.mxu0 0
    %1396 = vmatprep.subr.bf16.mxu0 0
    %1397 = vmatpush2.bf16.msra.mxu0 0
    %1398 = vmatprep.subr.bf16.mxu0 0
    %1399 = vmatpush2.bf16.msra.mxu0 0
    %1400 = vmatprep.subr.bf16.mxu0 0
    %1401 = vmatpush2.bf16.msra.mxu0 0
    %1402 = vmatprep.subr.bf16.mxu0 0
    %1403 = vmatpush2.bf16.msra.mxu0 0
    %1404 = vmatprep.subr.bf16.mxu0 0
    %1405 = vmatpush2.bf16.msra.mxu0 0
    %1406 = vmatprep.subr.bf16.mxu0 0
    %1407 = vmatpush2.bf16.msra.mxu0 0
    %1408 = vmatprep.mubr.bf16.mxu0 0
    %1409 = vmatmul.mubr.bf16.gmra.mxu0 %v1354
    %v1410 = vpop.f32.mrf.mxu0
    %v1411 = vadd.f32 0.0, %v1410
    %v1412 = vpop.f32.mrf.mxu0
    %v1413 = vadd.f32 0.0, %v1412
    %v1414 = vpop.f32.mrf.mxu0
    %v1415 = vadd.f32 0.0, %v1414
    %v1416 = vpop.f32.mrf.mxu0
    %v1417 = vadd.f32 0.0, %v1416
    %1418 = vdwg.mxu0
    %1419 = vmatprep.subr.bf16.mxu0 %v852
    %1420 = vmatpush1.bf16.msra.mxu0 %v851
    %1421 = vmatprep.subr.bf16.mxu0 %v848
    %1422 = vmatpush1.bf16.msra.mxu0 %v847
    %1423 = vmatprep.subr.bf16.mxu0 %v844
    %1424 = vmatpush1.bf16.msra.mxu0 %v843
    %1425 = vmatprep.subr.bf16.mxu0 %v840
    %1426 = vmatpush1.bf16.msra.mxu0 %v839
    %1427 = vmatprep.subr.bf16.mxu0 %v836
    %1428 = vmatpush1.bf16.msra.mxu0 %v835
    %1429 = vmatprep.subr.bf16.mxu0 %v832
    %1430 = vmatpush1.bf16.msra.mxu0 %v831
    %1431 = vmatprep.subr.bf16.mxu0 %v828
    %1432 = vmatpush1.bf16.msra.mxu0 %v827
    %1433 = vmatprep.subr.bf16.mxu0 %v824
    %1434 = vmatpush1.bf16.msra.mxu0 %v823
    %1435 = vmatprep.subr.bf16.mxu0 0
    %1436 = vmatpush2.bf16.msra.mxu0 0
    %1437 = vmatprep.subr.bf16.mxu0 0
    %1438 = vmatpush2.bf16.msra.mxu0 0
    %1439 = vmatprep.subr.bf16.mxu0 0
    %1440 = vmatpush2.bf16.msra.mxu0 0
    %1441 = vmatprep.subr.bf16.mxu0 0
    %1442 = vmatpush2.bf16.msra.mxu0 0
    %1443 = vmatprep.subr.bf16.mxu0 0
    %1444 = vmatpush2.bf16.msra.mxu0 0
    %1445 = vmatprep.subr.bf16.mxu0 0
    %1446 = vmatpush2.bf16.msra.mxu0 0
    %1447 = vmatprep.subr.bf16.mxu0 0
    %1448 = vmatpush2.bf16.msra.mxu0 0
    %1449 = vmatprep.subr.bf16.mxu0 0
    %1450 = vmatpush2.bf16.msra.mxu0 0
    %1451 = vmatprep.mubr.bf16.mxu0 0
    %1452 = vmatmul.mubr.bf16.gmra.mxu0 %v1354
    %v1453 = vpop.f32.mrf.mxu0
    %v1454 = vadd.f32 0.0, %v1453
    %v1455 = vpop.f32.mrf.mxu0
    %v1456 = vadd.f32 0.0, %v1455
    %v1457 = vpop.f32.mrf.mxu0
    %v1458 = vadd.f32 0.0, %v1457
    %v1459 = vpop.f32.mrf.mxu0
    %v1460 = vadd.f32 0.0, %v1459
    %1461 = vdwg.mxu0
    %v1462 = vadd.f32 %v1368, %v1411
    %v1463 = vadd.f32 %v1369, %v1413
    %v1464 = vadd.f32 %v1370, %v1454
    %v1465 = vadd.f32 %v1371, %v1456
    %v1466 = vadd.f32 %v1372, %v1415
    %v1467 = vadd.f32 %v1373, %v1417
    %v1468 = vadd.f32 %v1374, %v1458
    %v1469 = vadd.f32 %v1375, %v1460
    %v1470 = vxor.u32 %v1462, 2147483648
    %v1471 = vxor.u32 %v1466, 2147483648
    %v1472 = vmul.f32 %v1470, 1.442695
    %v1473 = vpow.pop %v1472
    %v1474 = vmul.f32 %v1471, 1.442695
    %v1475 = vpow.pop %v1474
    %v1476 = vadd.f32 %v1473, 1.0
    %v1477 = vadd.f32 %v1475, 1.0
    %v1478 = vrcp.pop %v1476
    %v1479 = vmul.f32 1.0, %v1478
    %v1480 = vrcp.pop %v1477
    %v1481 = vmul.f32 1.0, %v1480
    %v1482 = vxor.u32 %v1463, 2147483648
    %v1483 = vxor.u32 %v1467, 2147483648
    %v1484 = vmul.f32 %v1482, 1.442695
    %v1485 = vpow.pop %v1484
    %v1486 = vmul.f32 %v1483, 1.442695
    %v1487 = vpow.pop %v1486
    %v1488 = vadd.f32 %v1485, 1.0
    %v1489 = vadd.f32 %v1487, 1.0
    %v1490 = vrcp.pop %v1488
    %v1491 = vmul.f32 1.0, %v1490
    %v1492 = vrcp.pop %v1489
    %v1493 = vmul.f32 1.0, %v1492
    %v1494 = vtanh.pop %v1464
    %v1495 = vtanh.pop %v1468
    %v1496 = vxor.u32 %v1465, 2147483648
    %v1497 = vxor.u32 %v1469, 2147483648
    %v1498 = vmul.f32 %v1496, 1.442695
    %v1499 = vpow.pop %v1498
    %v1500 = vmul.f32 %v1497, 1.442695
    %v1501 = vpow.pop %v1500
    %v1502 = vadd.f32 %v1499, 1.0
    %v1503 = vadd.f32 %v1501, 1.0
    %v1504 = vrcp.pop %v1502
    %v1505 = vmul.f32 1.0, %v1504
    %v1506 = vrcp.pop %v1503
    %v1507 = vmul.f32 1.0, %v1506
    %v1508 = vmul.f32 %v1491, %v1348
    %v1509 = vmul.f32 %v1493, %v1349
    %v1510 = vmul.f32 %v1479, %v1494
    %v1511 = vmul.f32 %v1481, %v1495
    %v1512 = vadd.f32 %v1508, %v1510
    %v1513 = vadd.f32 %v1509, %v1511
    %v1514 = vtanh.pop %v1512
    %v1515 = vtanh.pop %v1513
    %v1516 = vmul.f32 %v1505, %v1514
    %v1517 = vmul.f32 %v1507, %v1515
    %v1518 = vpack.c.bf16 %v1517, %v1516
    %v1520 = vunpack.c.l.b16 %v1518
    %v1521 = vunpack.c.h.b16 %v1518
    %v1522 = vpack.c.b16 %v1520, %v1520
    %v1523 = vpack.c.b16 %v1521, %v1521
    %s1526 = scalar_lea.vmem [#allocation13], 24
    %1527 = vst [vmem:[%s1526] sm:$0xf] %v1522
    %1528 = vst [vmem:[%s1526 + $0x4] sm:$0xf] %v1523
    %s1529 = smul.u32 8, 4
    %s1530 = smul.addr %s1529, 8
    %s1531 = scalar_lea.vmem [#allocation2], %s1530
    %v1532 = vld [vmem:[%s1531] sm:$0xff]
    %v1533 = vld [vmem:[%s1531 + $0x8] sm:$0xff]
    %v1534 = vld [vmem:[%s1531 + $0x10] sm:$0xff]
    %v1535 = vld [vmem:[%s1531 + $0x18] sm:$0xff]
    %v1536 = vld [vmem:[%s1531 + $0x20] sm:$0xff]
    %v1537 = vld [vmem:[%s1531 + $0x28] sm:$0xff]
    %v1538 = vld [vmem:[%s1531 + $0x30] sm:$0xff]
    %v1539 = vld [vmem:[%s1531 + $0x38] sm:$0xff]
    %1540 = vmatprep.subr.bf16.mxu0 %v850
    %1541 = vmatpush1.bf16.msra.mxu0 %v849
    %1542 = vmatprep.subr.bf16.mxu0 %v846
    %1543 = vmatpush1.bf16.msra.mxu0 %v845
    %1544 = vmatprep.subr.bf16.mxu0 %v842
    %1545 = vmatpush1.bf16.msra.mxu0 %v841
    %1546 = vmatprep.subr.bf16.mxu0 %v838
    %1547 = vmatpush1.bf16.msra.mxu0 %v837
    %1548 = vmatprep.subr.bf16.mxu0 %v834
    %1549 = vmatpush1.bf16.msra.mxu0 %v833
    %1550 = vmatprep.subr.bf16.mxu0 %v830
    %1551 = vmatpush1.bf16.msra.mxu0 %v829
    %1552 = vmatprep.subr.bf16.mxu0 %v826
    %1553 = vmatpush1.bf16.msra.mxu0 %v825
    %1554 = vmatprep.subr.bf16.mxu0 %v822
    %1555 = vmatpush1.bf16.msra.mxu0 %v821
    %1556 = vmatprep.subr.bf16.mxu0 0
    %1557 = vmatpush2.bf16.msra.mxu0 0
    %1558 = vmatprep.subr.bf16.mxu0 0
    %1559 = vmatpush2.bf16.msra.mxu0 0
    %1560 = vmatprep.subr.bf16.mxu0 0
    %1561 = vmatpush2.bf16.msra.mxu0 0
    %1562 = vmatprep.subr.bf16.mxu0 0
    %1563 = vmatpush2.bf16.msra.mxu0 0
    %1564 = vmatprep.subr.bf16.mxu0 0
    %1565 = vmatpush2.bf16.msra.mxu0 0
    %1566 = vmatprep.subr.bf16.mxu0 0
    %1567 = vmatpush2.bf16.msra.mxu0 0
    %1568 = vmatprep.subr.bf16.mxu0 0
    %1569 = vmatpush2.bf16.msra.mxu0 0
    %1570 = vmatprep.subr.bf16.mxu0 0
    %1571 = vmatpush2.bf16.msra.mxu0 0
    %1572 = vmatprep.mubr.bf16.mxu0 0
    %1573 = vmatmul.mubr.bf16.gmra.mxu0 %v1518
    %v1574 = vpop.f32.mrf.mxu0
    %v1575 = vadd.f32 0.0, %v1574
    %v1576 = vpop.f32.mrf.mxu0
    %v1577 = vadd.f32 0.0, %v1576
    %v1578 = vpop.f32.mrf.mxu0
    %v1579 = vadd.f32 0.0, %v1578
    %v1580 = vpop.f32.mrf.mxu0
    %v1581 = vadd.f32 0.0, %v1580
    %1582 = vdwg.mxu0
    %1583 = vmatprep.subr.bf16.mxu0 %v852
    %1584 = vmatpush1.bf16.msra.mxu0 %v851
    %1585 = vmatprep.subr.bf16.mxu0 %v848
    %1586 = vmatpush1.bf16.msra.mxu0 %v847
    %1587 = vmatprep.subr.bf16.mxu0 %v844
    %1588 = vmatpush1.bf16.msra.mxu0 %v843
    %1589 = vmatprep.subr.bf16.mxu0 %v840
    %1590 = vmatpush1.bf16.msra.mxu0 %v839
    %1591 = vmatprep.subr.bf16.mxu0 %v836
    %1592 = vmatpush1.bf16.msra.mxu0 %v835
    %1593 = vmatprep.subr.bf16.mxu0 %v832
    %1594 = vmatpush1.bf16.msra.mxu0 %v831
    %1595 = vmatprep.subr.bf16.mxu0 %v828
    %1596 = vmatpush1.bf16.msra.mxu0 %v827
    %1597 = vmatprep.subr.bf16.mxu0 %v824
    %1598 = vmatpush1.bf16.msra.mxu0 %v823
    %1599 = vmatprep.subr.bf16.mxu0 0
    %1600 = vmatpush2.bf16.msra.mxu0 0
    %1601 = vmatprep.subr.bf16.mxu0 0
    %1602 = vmatpush2.bf16.msra.mxu0 0
    %1603 = vmatprep.subr.bf16.mxu0 0
    %1604 = vmatpush2.bf16.msra.mxu0 0
    %1605 = vmatprep.subr.bf16.mxu0 0
    %1606 = vmatpush2.bf16.msra.mxu0 0
    %1607 = vmatprep.subr.bf16.mxu0 0
    %1608 = vmatpush2.bf16.msra.mxu0 0
    %1609 = vmatprep.subr.bf16.mxu0 0
    %1610 = vmatpush2.bf16.msra.mxu0 0
    %1611 = vmatprep.subr.bf16.mxu0 0
    %1612 = vmatpush2.bf16.msra.mxu0 0
    %1613 = vmatprep.subr.bf16.mxu0 0
    %1614 = vmatpush2.bf16.msra.mxu0 0
    %1615 = vmatprep.mubr.bf16.mxu0 0
    %1616 = vmatmul.mubr.bf16.gmra.mxu0 %v1518
    %v1617 = vpop.f32.mrf.mxu0
    %v1618 = vadd.f32 0.0, %v1617
    %v1619 = vpop.f32.mrf.mxu0
    %v1620 = vadd.f32 0.0, %v1619
    %v1621 = vpop.f32.mrf.mxu0
    %v1622 = vadd.f32 0.0, %v1621
    %v1623 = vpop.f32.mrf.mxu0
    %v1624 = vadd.f32 0.0, %v1623
    %1625 = vdwg.mxu0
    %v1626 = vadd.f32 %v1532, %v1575
    %v1627 = vadd.f32 %v1533, %v1577
    %v1628 = vadd.f32 %v1534, %v1618
    %v1629 = vadd.f32 %v1535, %v1620
    %v1630 = vadd.f32 %v1536, %v1579
    %v1631 = vadd.f32 %v1537, %v1581
    %v1632 = vadd.f32 %v1538, %v1622
    %v1633 = vadd.f32 %v1539, %v1624
    %v1634 = vxor.u32 %v1626, 2147483648
    %v1635 = vxor.u32 %v1630, 2147483648
    %v1636 = vmul.f32 %v1634, 1.442695
    %v1637 = vpow.pop %v1636
    %v1638 = vmul.f32 %v1635, 1.442695
    %v1639 = vpow.pop %v1638
    %v1640 = vadd.f32 %v1637, 1.0
    %v1641 = vadd.f32 %v1639, 1.0
    %v1642 = vrcp.pop %v1640
    %v1643 = vmul.f32 1.0, %v1642
    %v1644 = vrcp.pop %v1641
    %v1645 = vmul.f32 1.0, %v1644
    %v1646 = vxor.u32 %v1627, 2147483648
    %v1647 = vxor.u32 %v1631, 2147483648
    %v1648 = vmul.f32 %v1646, 1.442695
    %v1649 = vpow.pop %v1648
    %v1650 = vmul.f32 %v1647, 1.442695
    %v1651 = vpow.pop %v1650
    %v1652 = vadd.f32 %v1649, 1.0
    %v1653 = vadd.f32 %v1651, 1.0
    %v1654 = vrcp.pop %v1652
    %v1655 = vmul.f32 1.0, %v1654
    %v1656 = vrcp.pop %v1653
    %v1657 = vmul.f32 1.0, %v1656
    %v1658 = vtanh.pop %v1628
    %v1659 = vtanh.pop %v1632
    %v1660 = vxor.u32 %v1629, 2147483648
    %v1661 = vxor.u32 %v1633, 2147483648
    %v1662 = vmul.f32 %v1660, 1.442695
    %v1663 = vpow.pop %v1662
    %v1664 = vmul.f32 %v1661, 1.442695
    %v1665 = vpow.pop %v1664
    %v1666 = vadd.f32 %v1663, 1.0
    %v1667 = vadd.f32 %v1665, 1.0
    %v1668 = vrcp.pop %v1666
    %v1669 = vmul.f32 1.0, %v1668
    %v1670 = vrcp.pop %v1667
    %v1671 = vmul.f32 1.0, %v1670
    %v1672 = vmul.f32 %v1655, %v1512
    %v1673 = vmul.f32 %v1657, %v1513
    %v1674 = vmul.f32 %v1643, %v1658
    %v1675 = vmul.f32 %v1645, %v1659
    %v1676 = vadd.f32 %v1672, %v1674
    %v1677 = vadd.f32 %v1673, %v1675
    %v1678 = vtanh.pop %v1676
    %v1679 = vtanh.pop %v1677
    %v1680 = vmul.f32 %v1669, %v1678
    %v1681 = vmul.f32 %v1671, %v1679
    %v1682 = vpack.c.bf16 %v1681, %v1680
    %v1684 = vunpack.c.l.b16 %v1682
    %v1685 = vunpack.c.h.b16 %v1682
    %v1686 = vpack.c.b16 %v1684, %v1684
    %v1687 = vpack.c.b16 %v1685, %v1685
    %s1690 = scalar_lea.vmem [#allocation13], 32
    %1691 = vst [vmem:[%s1690] sm:$0xf] %v1686
    %1692 = vst [vmem:[%s1690 + $0x4] sm:$0xf] %v1687
    %s1693 = smul.u32 10, 4
    %s1694 = smul.addr %s1693, 8
    %s1695 = scalar_lea.vmem [#allocation2], %s1694
    %v1696 = vld [vmem:[%s1695] sm:$0xff]
    %v1697 = vld [vmem:[%s1695 + $0x8] sm:$0xff]
    %v1698 = vld [vmem:[%s1695 + $0x10] sm:$0xff]
    %v1699 = vld [vmem:[%s1695 + $0x18] sm:$0xff]
    %v1700 = vld [vmem:[%s1695 + $0x20] sm:$0xff]
    %v1701 = vld [vmem:[%s1695 + $0x28] sm:$0xff]
    %v1702 = vld [vmem:[%s1695 + $0x30] sm:$0xff]
    %v1703 = vld [vmem:[%s1695 + $0x38] sm:$0xff]
    %1704 = vmatprep.subr.bf16.mxu0 %v850
    %1705 = vmatpush1.bf16.msra.mxu0 %v849
    %1706 = vmatprep.subr.bf16.mxu0 %v846
    %1707 = vmatpush1.bf16.msra.mxu0 %v845
    %1708 = vmatprep.subr.bf16.mxu0 %v842
    %1709 = vmatpush1.bf16.msra.mxu0 %v841
    %1710 = vmatprep.subr.bf16.mxu0 %v838
    %1711 = vmatpush1.bf16.msra.mxu0 %v837
    %1712 = vmatprep.subr.bf16.mxu0 %v834
    %1713 = vmatpush1.bf16.msra.mxu0 %v833
    %1714 = vmatprep.subr.bf16.mxu0 %v830
    %1715 = vmatpush1.bf16.msra.mxu0 %v829
    %1716 = vmatprep.subr.bf16.mxu0 %v826
    %1717 = vmatpush1.bf16.msra.mxu0 %v825
    %1718 = vmatprep.subr.bf16.mxu0 %v822
    %1719 = vmatpush1.bf16.msra.mxu0 %v821
    %1720 = vmatprep.subr.bf16.mxu0 0
    %1721 = vmatpush2.bf16.msra.mxu0 0
    %1722 = vmatprep.subr.bf16.mxu0 0
    %1723 = vmatpush2.bf16.msra.mxu0 0
    %1724 = vmatprep.subr.bf16.mxu0 0
    %1725 = vmatpush2.bf16.msra.mxu0 0
    %1726 = vmatprep.subr.bf16.mxu0 0
    %1727 = vmatpush2.bf16.msra.mxu0 0
    %1728 = vmatprep.subr.bf16.mxu0 0
    %1729 = vmatpush2.bf16.msra.mxu0 0
    %1730 = vmatprep.subr.bf16.mxu0 0
    %1731 = vmatpush2.bf16.msra.mxu0 0
    %1732 = vmatprep.subr.bf16.mxu0 0
    %1733 = vmatpush2.bf16.msra.mxu0 0
    %1734 = vmatprep.subr.bf16.mxu0 0
    %1735 = vmatpush2.bf16.msra.mxu0 0
    %1736 = vmatprep.mubr.bf16.mxu0 0
    %1737 = vmatmul.mubr.bf16.gmra.mxu0 %v1682
    %v1738 = vpop.f32.mrf.mxu0
    %v1739 = vadd.f32 0.0, %v1738
    %v1740 = vpop.f32.mrf.mxu0
    %v1741 = vadd.f32 0.0, %v1740
    %v1742 = vpop.f32.mrf.mxu0
    %v1743 = vadd.f32 0.0, %v1742
    %v1744 = vpop.f32.mrf.mxu0
    %v1745 = vadd.f32 0.0, %v1744
    %1746 = vdwg.mxu0
    %1747 = vmatprep.subr.bf16.mxu0 %v852
    %1748 = vmatpush1.bf16.msra.mxu0 %v851
    %1749 = vmatprep.subr.bf16.mxu0 %v848
    %1750 = vmatpush1.bf16.msra.mxu0 %v847
    %1751 = vmatprep.subr.bf16.mxu0 %v844
    %1752 = vmatpush1.bf16.msra.mxu0 %v843
    %1753 = vmatprep.subr.bf16.mxu0 %v840
    %1754 = vmatpush1.bf16.msra.mxu0 %v839
    %1755 = vmatprep.subr.bf16.mxu0 %v836
    %1756 = vmatpush1.bf16.msra.mxu0 %v835
    %1757 = vmatprep.subr.bf16.mxu0 %v832
    %1758 = vmatpush1.bf16.msra.mxu0 %v831
    %1759 = vmatprep.subr.bf16.mxu0 %v828
    %1760 = vmatpush1.bf16.msra.mxu0 %v827
    %1761 = vmatprep.subr.bf16.mxu0 %v824
    %1762 = vmatpush1.bf16.msra.mxu0 %v823
    %1763 = vmatprep.subr.bf16.mxu0 0
    %1764 = vmatpush2.bf16.msra.mxu0 0
    %1765 = vmatprep.subr.bf16.mxu0 0
    %1766 = vmatpush2.bf16.msra.mxu0 0
    %1767 = vmatprep.subr.bf16.mxu0 0
    %1768 = vmatpush2.bf16.msra.mxu0 0
    %1769 = vmatprep.subr.bf16.mxu0 0
    %1770 = vmatpush2.bf16.msra.mxu0 0
    %1771 = vmatprep.subr.bf16.mxu0 0
    %1772 = vmatpush2.bf16.msra.mxu0 0
    %1773 = vmatprep.subr.bf16.mxu0 0
    %1774 = vmatpush2.bf16.msra.mxu0 0
    %1775 = vmatprep.subr.bf16.mxu0 0
    %1776 = vmatpush2.bf16.msra.mxu0 0
    %1777 = vmatprep.subr.bf16.mxu0 0
    %1778 = vmatpush2.bf16.msra.mxu0 0
    %1779 = vmatprep.mubr.bf16.mxu0 0
    %1780 = vmatmul.mubr.bf16.gmra.mxu0 %v1682
    %v1781 = vpop.f32.mrf.mxu0
    %v1782 = vadd.f32 0.0, %v1781
    %v1783 = vpop.f32.mrf.mxu0
    %v1784 = vadd.f32 0.0, %v1783
    %v1785 = vpop.f32.mrf.mxu0
    %v1786 = vadd.f32 0.0, %v1785
    %v1787 = vpop.f32.mrf.mxu0
    %v1788 = vadd.f32 0.0, %v1787
    %1789 = vdwg.mxu0
    %v1790 = vadd.f32 %v1696, %v1739
    %v1791 = vadd.f32 %v1697, %v1741
    %v1792 = vadd.f32 %v1698, %v1782
    %v1793 = vadd.f32 %v1699, %v1784
    %v1794 = vadd.f32 %v1700, %v1743
    %v1795 = vadd.f32 %v1701, %v1745
    %v1796 = vadd.f32 %v1702, %v1786
    %v1797 = vadd.f32 %v1703, %v1788
    %v1798 = vxor.u32 %v1790, 2147483648
    %v1799 = vxor.u32 %v1794, 2147483648
    %v1800 = vmul.f32 %v1798, 1.442695
    %v1801 = vpow.pop %v1800
    %v1802 = vmul.f32 %v1799, 1.442695
    %v1803 = vpow.pop %v1802
    %v1804 = vadd.f32 %v1801, 1.0
    %v1805 = vadd.f32 %v1803, 1.0
    %v1806 = vrcp.pop %v1804
    %v1807 = vmul.f32 1.0, %v1806
    %v1808 = vrcp.pop %v1805
    %v1809 = vmul.f32 1.0, %v1808
    %v1810 = vxor.u32 %v1791, 2147483648
    %v1811 = vxor.u32 %v1795, 2147483648
    %v1812 = vmul.f32 %v1810, 1.442695
    %v1813 = vpow.pop %v1812
    %v1814 = vmul.f32 %v1811, 1.442695
    %v1815 = vpow.pop %v1814
    %v1816 = vadd.f32 %v1813, 1.0
    %v1817 = vadd.f32 %v1815, 1.0
    %v1818 = vrcp.pop %v1816
    %v1819 = vmul.f32 1.0, %v1818
    %v1820 = vrcp.pop %v1817
    %v1821 = vmul.f32 1.0, %v1820
    %v1822 = vtanh.pop %v1792
    %v1823 = vtanh.pop %v1796
    %v1824 = vxor.u32 %v1793, 2147483648
    %v1825 = vxor.u32 %v1797, 2147483648
    %v1826 = vmul.f32 %v1824, 1.442695
    %v1827 = vpow.pop %v1826
    %v1828 = vmul.f32 %v1825, 1.442695
    %v1829 = vpow.pop %v1828
    %v1830 = vadd.f32 %v1827, 1.0
    %v1831 = vadd.f32 %v1829, 1.0
    %v1832 = vrcp.pop %v1830
    %v1833 = vmul.f32 1.0, %v1832
    %v1834 = vrcp.pop %v1831
    %v1835 = vmul.f32 1.0, %v1834
    %v1836 = vmul.f32 %v1819, %v1676
    %v1837 = vmul.f32 %v1821, %v1677
    %v1838 = vmul.f32 %v1807, %v1822
    %v1839 = vmul.f32 %v1809, %v1823
    %v1840 = vadd.f32 %v1836, %v1838
    %v1841 = vadd.f32 %v1837, %v1839
    %v1842 = vtanh.pop %v1840
    %v1843 = vtanh.pop %v1841
    %v1844 = vmul.f32 %v1833, %v1842
    %v1845 = vmul.f32 %v1835, %v1843
    %v1846 = vpack.c.bf16 %v1845, %v1844
    %v1848 = vunpack.c.l.b16 %v1846
    %v1849 = vunpack.c.h.b16 %v1846
    %v1850 = vpack.c.b16 %v1848, %v1848
    %v1851 = vpack.c.b16 %v1849, %v1849
    %s1854 = scalar_lea.vmem [#allocation13], 40
    %1855 = vst [vmem:[%s1854] sm:$0xf] %v1850
    %1856 = vst [vmem:[%s1854 + $0x4] sm:$0xf] %v1851
    %s1857 = smul.u32 12, 4
    %s1858 = smul.addr %s1857, 8
    %s1859 = scalar_lea.vmem [#allocation2], %s1858
    %v1860 = vld [vmem:[%s1859] sm:$0xff]
    %v1861 = vld [vmem:[%s1859 + $0x8] sm:$0xff]
    %v1862 = vld [vmem:[%s1859 + $0x10] sm:$0xff]
    %v1863 = vld [vmem:[%s1859 + $0x18] sm:$0xff]
    %v1864 = vld [vmem:[%s1859 + $0x20] sm:$0xff]
    %v1865 = vld [vmem:[%s1859 + $0x28] sm:$0xff]
    %v1866 = vld [vmem:[%s1859 + $0x30] sm:$0xff]
    %v1867 = vld [vmem:[%s1859 + $0x38] sm:$0xff]
    %1868 = vmatprep.subr.bf16.mxu0 %v850
    %1869 = vmatpush1.bf16.msra.mxu0 %v849
    %1870 = vmatprep.subr.bf16.mxu0 %v846
    %1871 = vmatpush1.bf16.msra.mxu0 %v845
    %1872 = vmatprep.subr.bf16.mxu0 %v842
    %1873 = vmatpush1.bf16.msra.mxu0 %v841
    %1874 = vmatprep.subr.bf16.mxu0 %v838
    %1875 = vmatpush1.bf16.msra.mxu0 %v837
    %1876 = vmatprep.subr.bf16.mxu0 %v834
    %1877 = vmatpush1.bf16.msra.mxu0 %v833
    %1878 = vmatprep.subr.bf16.mxu0 %v830
    %1879 = vmatpush1.bf16.msra.mxu0 %v829
    %1880 = vmatprep.subr.bf16.mxu0 %v826
    %1881 = vmatpush1.bf16.msra.mxu0 %v825
    %1882 = vmatprep.subr.bf16.mxu0 %v822
    %1883 = vmatpush1.bf16.msra.mxu0 %v821
    %1884 = vmatprep.subr.bf16.mxu0 0
    %1885 = vmatpush2.bf16.msra.mxu0 0
    %1886 = vmatprep.subr.bf16.mxu0 0
    %1887 = vmatpush2.bf16.msra.mxu0 0
    %1888 = vmatprep.subr.bf16.mxu0 0
    %1889 = vmatpush2.bf16.msra.mxu0 0
    %1890 = vmatprep.subr.bf16.mxu0 0
    %1891 = vmatpush2.bf16.msra.mxu0 0
    %1892 = vmatprep.subr.bf16.mxu0 0
    %1893 = vmatpush2.bf16.msra.mxu0 0
    %1894 = vmatprep.subr.bf16.mxu0 0
    %1895 = vmatpush2.bf16.msra.mxu0 0
    %1896 = vmatprep.subr.bf16.mxu0 0
    %1897 = vmatpush2.bf16.msra.mxu0 0
    %1898 = vmatprep.subr.bf16.mxu0 0
    %1899 = vmatpush2.bf16.msra.mxu0 0
    %1900 = vmatprep.mubr.bf16.mxu0 0
    %1901 = vmatmul.mubr.bf16.gmra.mxu0 %v1846
    %v1902 = vpop.f32.mrf.mxu0
    %v1903 = vadd.f32 0.0, %v1902
    %v1904 = vpop.f32.mrf.mxu0
    %v1905 = vadd.f32 0.0, %v1904
    %v1906 = vpop.f32.mrf.mxu0
    %v1907 = vadd.f32 0.0, %v1906
    %v1908 = vpop.f32.mrf.mxu0
    %v1909 = vadd.f32 0.0, %v1908
    %1910 = vdwg.mxu0
    %1911 = vmatprep.subr.bf16.mxu0 %v852
    %1912 = vmatpush1.bf16.msra.mxu0 %v851
    %1913 = vmatprep.subr.bf16.mxu0 %v848
    %1914 = vmatpush1.bf16.msra.mxu0 %v847
    %1915 = vmatprep.subr.bf16.mxu0 %v844
    %1916 = vmatpush1.bf16.msra.mxu0 %v843
    %1917 = vmatprep.subr.bf16.mxu0 %v840
    %1918 = vmatpush1.bf16.msra.mxu0 %v839
    %1919 = vmatprep.subr.bf16.mxu0 %v836
    %1920 = vmatpush1.bf16.msra.mxu0 %v835
    %1921 = vmatprep.subr.bf16.mxu0 %v832
    %1922 = vmatpush1.bf16.msra.mxu0 %v831
    %1923 = vmatprep.subr.bf16.mxu0 %v828
    %1924 = vmatpush1.bf16.msra.mxu0 %v827
    %1925 = vmatprep.subr.bf16.mxu0 %v824
    %1926 = vmatpush1.bf16.msra.mxu0 %v823
    %1927 = vmatprep.subr.bf16.mxu0 0
    %1928 = vmatpush2.bf16.msra.mxu0 0
    %1929 = vmatprep.subr.bf16.mxu0 0
    %1930 = vmatpush2.bf16.msra.mxu0 0
    %1931 = vmatprep.subr.bf16.mxu0 0
    %1932 = vmatpush2.bf16.msra.mxu0 0
    %1933 = vmatprep.subr.bf16.mxu0 0
    %1934 = vmatpush2.bf16.msra.mxu0 0
    %1935 = vmatprep.subr.bf16.mxu0 0
    %1936 = vmatpush2.bf16.msra.mxu0 0
    %1937 = vmatprep.subr.bf16.mxu0 0
    %1938 = vmatpush2.bf16.msra.mxu0 0
    %1939 = vmatprep.subr.bf16.mxu0 0
    %1940 = vmatpush2.bf16.msra.mxu0 0
    %1941 = vmatprep.subr.bf16.mxu0 0
    %1942 = vmatpush2.bf16.msra.mxu0 0
    %1943 = vmatprep.mubr.bf16.mxu0 0
    %1944 = vmatmul.mubr.bf16.gmra.mxu0 %v1846
    %v1945 = vpop.f32.mrf.mxu0
    %v1946 = vadd.f32 0.0, %v1945
    %v1947 = vpop.f32.mrf.mxu0
    %v1948 = vadd.f32 0.0, %v1947
    %v1949 = vpop.f32.mrf.mxu0
    %v1950 = vadd.f32 0.0, %v1949
    %v1951 = vpop.f32.mrf.mxu0
    %v1952 = vadd.f32 0.0, %v1951
    %1953 = vdwg.mxu0
    %v1954 = vadd.f32 %v1860, %v1903
    %v1955 = vadd.f32 %v1861, %v1905
    %v1956 = vadd.f32 %v1862, %v1946
    %v1957 = vadd.f32 %v1863, %v1948
    %v1958 = vadd.f32 %v1864, %v1907
    %v1959 = vadd.f32 %v1865, %v1909
    %v1960 = vadd.f32 %v1866, %v1950
    %v1961 = vadd.f32 %v1867, %v1952
    %v1962 = vxor.u32 %v1954, 2147483648
    %v1963 = vxor.u32 %v1958, 2147483648
    %v1964 = vmul.f32 %v1962, 1.442695
    %v1965 = vpow.pop %v1964
    %v1966 = vmul.f32 %v1963, 1.442695
    %v1967 = vpow.pop %v1966
    %v1968 = vadd.f32 %v1965, 1.0
    %v1969 = vadd.f32 %v1967, 1.0
    %v1970 = vrcp.pop %v1968
    %v1971 = vmul.f32 1.0, %v1970
    %v1972 = vrcp.pop %v1969
    %v1973 = vmul.f32 1.0, %v1972
    %v1974 = vxor.u32 %v1955, 2147483648
    %v1975 = vxor.u32 %v1959, 2147483648
    %v1976 = vmul.f32 %v1974, 1.442695
    %v1977 = vpow.pop %v1976
    %v1978 = vmul.f32 %v1975, 1.442695
    %v1979 = vpow.pop %v1978
    %v1980 = vadd.f32 %v1977, 1.0
    %v1981 = vadd.f32 %v1979, 1.0
    %v1982 = vrcp.pop %v1980
    %v1983 = vmul.f32 1.0, %v1982
    %v1984 = vrcp.pop %v1981
    %v1985 = vmul.f32 1.0, %v1984
    %v1986 = vtanh.pop %v1956
    %v1987 = vtanh.pop %v1960
    %v1988 = vxor.u32 %v1957, 2147483648
    %v1989 = vxor.u32 %v1961, 2147483648
    %v1990 = vmul.f32 %v1988, 1.442695
    %v1991 = vpow.pop %v1990
    %v1992 = vmul.f32 %v1989, 1.442695
    %v1993 = vpow.pop %v1992
    %v1994 = vadd.f32 %v1991, 1.0
    %v1995 = vadd.f32 %v1993, 1.0
    %v1996 = vrcp.pop %v1994
    %v1997 = vmul.f32 1.0, %v1996
    %v1998 = vrcp.pop %v1995
    %v1999 = vmul.f32 1.0, %v1998
    %v2000 = vmul.f32 %v1983, %v1840
    %v2001 = vmul.f32 %v1985, %v1841
    %v2002 = vmul.f32 %v1971, %v1986
    %v2003 = vmul.f32 %v1973, %v1987
    %v2004 = vadd.f32 %v2000, %v2002
    %v2005 = vadd.f32 %v2001, %v2003
    %v2006 = vtanh.pop %v2004
    %v2007 = vtanh.pop %v2005
    %v2008 = vmul.f32 %v1997, %v2006
    %v2009 = vmul.f32 %v1999, %v2007
    %v2010 = vpack.c.bf16 %v2009, %v2008
    %v2012 = vunpack.c.l.b16 %v2010
    %v2013 = vunpack.c.h.b16 %v2010
    %v2014 = vpack.c.b16 %v2012, %v2012
    %v2015 = vpack.c.b16 %v2013, %v2013
    %s2018 = scalar_lea.vmem [#allocation13], 48
    %2019 = vst [vmem:[%s2018] sm:$0xf] %v2014
    %2020 = vst [vmem:[%s2018 + $0x4] sm:$0xf] %v2015
    %s2021 = smul.u32 14, 4
    %s2022 = smul.addr %s2021, 8
    %s2023 = scalar_lea.vmem [#allocation2], %s2022
    %v2024 = vld [vmem:[%s2023] sm:$0xff]
    %v2025 = vld [vmem:[%s2023 + $0x8] sm:$0xff]
    %v2026 = vld [vmem:[%s2023 + $0x10] sm:$0xff]
    %v2027 = vld [vmem:[%s2023 + $0x18] sm:$0xff]
    %v2028 = vld [vmem:[%s2023 + $0x20] sm:$0xff]
    %v2029 = vld [vmem:[%s2023 + $0x28] sm:$0xff]
    %v2030 = vld [vmem:[%s2023 + $0x30] sm:$0xff]
    %v2031 = vld [vmem:[%s2023 + $0x38] sm:$0xff]
    %2032 = vmatprep.subr.bf16.mxu0 %v850
    %2033 = vmatpush1.bf16.msra.mxu0 %v849
    %2034 = vmatprep.subr.bf16.mxu0 %v846
    %2035 = vmatpush1.bf16.msra.mxu0 %v845
    %2036 = vmatprep.subr.bf16.mxu0 %v842
    %2037 = vmatpush1.bf16.msra.mxu0 %v841
    %2038 = vmatprep.subr.bf16.mxu0 %v838
    %2039 = vmatpush1.bf16.msra.mxu0 %v837
    %2040 = vmatprep.subr.bf16.mxu0 %v834
    %2041 = vmatpush1.bf16.msra.mxu0 %v833
    %2042 = vmatprep.subr.bf16.mxu0 %v830
    %2043 = vmatpush1.bf16.msra.mxu0 %v829
    %2044 = vmatprep.subr.bf16.mxu0 %v826
    %2045 = vmatpush1.bf16.msra.mxu0 %v825
    %2046 = vmatprep.subr.bf16.mxu0 %v822
    %2047 = vmatpush1.bf16.msra.mxu0 %v821
    %2048 = vmatprep.subr.bf16.mxu0 0
    %2049 = vmatpush2.bf16.msra.mxu0 0
    %2050 = vmatprep.subr.bf16.mxu0 0
    %2051 = vmatpush2.bf16.msra.mxu0 0
    %2052 = vmatprep.subr.bf16.mxu0 0
    %2053 = vmatpush2.bf16.msra.mxu0 0
    %2054 = vmatprep.subr.bf16.mxu0 0
    %2055 = vmatpush2.bf16.msra.mxu0 0
    %2056 = vmatprep.subr.bf16.mxu0 0
    %2057 = vmatpush2.bf16.msra.mxu0 0
    %2058 = vmatprep.subr.bf16.mxu0 0
    %2059 = vmatpush2.bf16.msra.mxu0 0
    %2060 = vmatprep.subr.bf16.mxu0 0
    %2061 = vmatpush2.bf16.msra.mxu0 0
    %2062 = vmatprep.subr.bf16.mxu0 0
    %2063 = vmatpush2.bf16.msra.mxu0 0
    %2064 = vmatprep.mubr.bf16.mxu0 0
    %2065 = vmatmul.mubr.bf16.gmra.mxu0 %v2010
    %v2066 = vpop.f32.mrf.mxu0
    %v2067 = vadd.f32 0.0, %v2066
    %v2068 = vpop.f32.mrf.mxu0
    %v2069 = vadd.f32 0.0, %v2068
    %v2070 = vpop.f32.mrf.mxu0
    %v2071 = vadd.f32 0.0, %v2070
    %v2072 = vpop.f32.mrf.mxu0
    %v2073 = vadd.f32 0.0, %v2072
    %2074 = vdwg.mxu0
    %2075 = vmatprep.subr.bf16.mxu0 %v852
    %2076 = vmatpush1.bf16.msra.mxu0 %v851
    %2077 = vmatprep.subr.bf16.mxu0 %v848
    %2078 = vmatpush1.bf16.msra.mxu0 %v847
    %2079 = vmatprep.subr.bf16.mxu0 %v844
    %2080 = vmatpush1.bf16.msra.mxu0 %v843
    %2081 = vmatprep.subr.bf16.mxu0 %v840
    %2082 = vmatpush1.bf16.msra.mxu0 %v839
    %2083 = vmatprep.subr.bf16.mxu0 %v836
    %2084 = vmatpush1.bf16.msra.mxu0 %v835
    %2085 = vmatprep.subr.bf16.mxu0 %v832
    %2086 = vmatpush1.bf16.msra.mxu0 %v831
    %2087 = vmatprep.subr.bf16.mxu0 %v828
    %2088 = vmatpush1.bf16.msra.mxu0 %v827
    %2089 = vmatprep.subr.bf16.mxu0 %v824
    %2090 = vmatpush1.bf16.msra.mxu0 %v823
    %2091 = vmatprep.subr.bf16.mxu0 0
    %2092 = vmatpush2.bf16.msra.mxu0 0
    %2093 = vmatprep.subr.bf16.mxu0 0
    %2094 = vmatpush2.bf16.msra.mxu0 0
    %2095 = vmatprep.subr.bf16.mxu0 0
    %2096 = vmatpush2.bf16.msra.mxu0 0
    %2097 = vmatprep.subr.bf16.mxu0 0
    %2098 = vmatpush2.bf16.msra.mxu0 0
    %2099 = vmatprep.subr.bf16.mxu0 0
    %2100 = vmatpush2.bf16.msra.mxu0 0
    %2101 = vmatprep.subr.bf16.mxu0 0
    %2102 = vmatpush2.bf16.msra.mxu0 0
    %2103 = vmatprep.subr.bf16.mxu0 0
    %2104 = vmatpush2.bf16.msra.mxu0 0
    %2105 = vmatprep.subr.bf16.mxu0 0
    %2106 = vmatpush2.bf16.msra.mxu0 0
    %2107 = vmatprep.mubr.bf16.mxu0 0
    %2108 = vmatmul.mubr.bf16.gmra.mxu0 %v2010
    %v2109 = vpop.f32.mrf.mxu0
    %v2110 = vadd.f32 0.0, %v2109
    %v2111 = vpop.f32.mrf.mxu0
    %v2112 = vadd.f32 0.0, %v2111
    %v2113 = vpop.f32.mrf.mxu0
    %v2114 = vadd.f32 0.0, %v2113
    %v2115 = vpop.f32.mrf.mxu0
    %v2116 = vadd.f32 0.0, %v2115
    %2117 = vdwg.mxu0
    %v2118 = vadd.f32 %v2024, %v2067
    %v2119 = vadd.f32 %v2025, %v2069
    %v2120 = vadd.f32 %v2026, %v2110
    %v2121 = vadd.f32 %v2027, %v2112
    %v2122 = vadd.f32 %v2028, %v2071
    %v2123 = vadd.f32 %v2029, %v2073
    %v2124 = vadd.f32 %v2030, %v2114
    %v2125 = vadd.f32 %v2031, %v2116
    %v2126 = vxor.u32 %v2118, 2147483648
    %v2127 = vxor.u32 %v2122, 2147483648
    %v2128 = vmul.f32 %v2126, 1.442695
    %v2129 = vpow.pop %v2128
    %v2130 = vmul.f32 %v2127, 1.442695
    %v2131 = vpow.pop %v2130
    %v2132 = vadd.f32 %v2129, 1.0
    %v2133 = vadd.f32 %v2131, 1.0
    %v2134 = vrcp.pop %v2132
    %v2135 = vmul.f32 1.0, %v2134
    %v2136 = vrcp.pop %v2133
    %v2137 = vmul.f32 1.0, %v2136
    %v2138 = vxor.u32 %v2119, 2147483648
    %v2139 = vxor.u32 %v2123, 2147483648
    %v2140 = vmul.f32 %v2138, 1.442695
    %v2141 = vpow.pop %v2140
    %v2142 = vmul.f32 %v2139, 1.442695
    %v2143 = vpow.pop %v2142
    %v2144 = vadd.f32 %v2141, 1.0
    %v2145 = vadd.f32 %v2143, 1.0
    %v2146 = vrcp.pop %v2144
    %v2147 = vmul.f32 1.0, %v2146
    %v2148 = vrcp.pop %v2145
    %v2149 = vmul.f32 1.0, %v2148
    %v2150 = vtanh.pop %v2120
    %v2151 = vtanh.pop %v2124
    %v2152 = vxor.u32 %v2121, 2147483648
    %v2153 = vxor.u32 %v2125, 2147483648
    %v2154 = vmul.f32 %v2152, 1.442695
    %v2155 = vpow.pop %v2154
    %v2156 = vmul.f32 %v2153, 1.442695
    %v2157 = vpow.pop %v2156
    %v2158 = vadd.f32 %v2155, 1.0
    %v2159 = vadd.f32 %v2157, 1.0
    %v2160 = vrcp.pop %v2158
    %v2161 = vmul.f32 1.0, %v2160
    %v2162 = vrcp.pop %v2159
    %v2163 = vmul.f32 1.0, %v2162
    %v2164 = vmul.f32 %v2147, %v2004
    %v2165 = vmul.f32 %v2149, %v2005
    %v2166 = vmul.f32 %v2135, %v2150
    %v2167 = vmul.f32 %v2137, %v2151
    %v2168 = vadd.f32 %v2164, %v2166
    %v2169 = vadd.f32 %v2165, %v2167
    %v2170 = vtanh.pop %v2168
    %v2171 = vtanh.pop %v2169
    %v2172 = vmul.f32 %v2161, %v2170
    %v2173 = vmul.f32 %v2163, %v2171
    %v2174 = vpack.c.bf16 %v2173, %v2172
    %v2176 = vunpack.c.l.b16 %v2174
    %v2177 = vunpack.c.h.b16 %v2174
    %v2178 = vpack.c.b16 %v2176, %v2176
    %v2179 = vpack.c.b16 %v2177, %v2177
    %s2182 = scalar_lea.vmem [#allocation13], 56
    %2183 = vst [vmem:[%s2182] sm:$0xf] %v2178
    %2184 = vst [vmem:[%s2182 + $0x4] sm:$0xf] %v2179
    %2185 = vst [vmem:[#allocation3] sm:$0xff] %v2172
    %2186 = vst [vmem:[#allocation3 + $0x8] sm:$0xff] %v2173
    %2187 = vst [vmem:[%s710] sm:$0xff] %v2168
    %2188 = vst [vmem:[%s710 + $0x8] sm:$0xff] %v2169
    %v2189 = vld [vmem:[#allocation13] sm:$0xf]
    %v2190 = vld [vmem:[#allocation13 + $0x4] sm:$0xf]
    %v2191 = vld [vmem:[#allocation13 + $0x8] sm:$0xf]
    %v2192 = vld [vmem:[#allocation13 + $0xc] sm:$0xf]
    %v2193 = vld [vmem:[#allocation13 + $0x10] sm:$0xf]
    %v2194 = vld [vmem:[#allocation13 + $0x14] sm:$0xf]
    %v2195 = vld [vmem:[#allocation13 + $0x18] sm:$0xf]
    %v2196 = vld [vmem:[#allocation13 + $0x1c] sm:$0xf]
    %v2197 = vld [vmem:[#allocation13 + $0x20] sm:$0xf]
    %v2198 = vld [vmem:[#allocation13 + $0x24] sm:$0xf]
    %v2199 = vld [vmem:[#allocation13 + $0x28] sm:$0xf]
    %v2200 = vld [vmem:[#allocation13 + $0x2c] sm:$0xf]
    %v2201 = vld [vmem:[#allocation13 + $0x30] sm:$0xf]
    %v2202 = vld [vmem:[#allocation13 + $0x34] sm:$0xf]
    %v2203 = vld [vmem:[#allocation13 + $0x38] sm:$0xf]
    %v2204 = vld [vmem:[#allocation13 + $0x3c] sm:$0xf]
    %v2205 = vld [vmem:[#allocation10] sm:$0xff]
    %v2206 = vld [vmem:[#allocation10 + $0x8] sm:$0xff]
    %v2207 = vld [vmem:[#allocation10 + $0x10] sm:$0xff]
    %v2208 = vld [vmem:[#allocation10 + $0x18] sm:$0xff]
    %v2209 = vld [vmem:[#allocation10 + $0x20] sm:$0xff]
    %v2210 = vld [vmem:[#allocation10 + $0x28] sm:$0xff]
    %v2211 = vld [vmem:[#allocation10 + $0x30] sm:$0xff]
    %v2212 = vld [vmem:[#allocation10 + $0x38] sm:$0xff]
    %v2213 = vld [vmem:[#allocation10 + $0x40] sm:$0xff]
    %v2214 = vld [vmem:[#allocation10 + $0x48] sm:$0xff]
    %v2215 = vld [vmem:[#allocation10 + $0x50] sm:$0xff]
    %v2216 = vld [vmem:[#allocation10 + $0x58] sm:$0xff]
    %v2217 = vld [vmem:[#allocation10 + $0x60] sm:$0xff]
    %v2218 = vld [vmem:[#allocation10 + $0x68] sm:$0xff]
    %v2219 = vld [vmem:[#allocation10 + $0x70] sm:$0xff]
    %v2220 = vld [vmem:[#allocation10 + $0x78] sm:$0xff]
    %v2221 = vld [vmem:[#allocation10 + $0x80] sm:$0xff]
    %v2222 = vld [vmem:[#allocation10 + $0x88] sm:$0xff]
    %v2223 = vld [vmem:[#allocation10 + $0x90] sm:$0xff]
    %v2224 = vld [vmem:[#allocation10 + $0x98] sm:$0xff]
    %v2225 = vld [vmem:[#allocation10 + $0xa0] sm:$0xff]
    %v2226 = vld [vmem:[#allocation10 + $0xa8] sm:$0xff]
    %v2227 = vld [vmem:[#allocation10 + $0xb0] sm:$0xff]
    %v2228 = vld [vmem:[#allocation10 + $0xb8] sm:$0xff]
    %v2229 = vld [vmem:[#allocation10 + $0xc0] sm:$0xff]
    %v2230 = vld [vmem:[#allocation10 + $0xc8] sm:$0xff]
    %v2231 = vld [vmem:[#allocation10 + $0xd0] sm:$0xff]
    %v2232 = vld [vmem:[#allocation10 + $0xd8] sm:$0xff]
    %v2233 = vld [vmem:[#allocation10 + $0xe0] sm:$0xff]
    %v2234 = vld [vmem:[#allocation10 + $0xe8] sm:$0xff]
    %v2235 = vld [vmem:[#allocation10 + $0xf0] sm:$0xff]
    %v2236 = vld [vmem:[#allocation10 + $0xf8] sm:$0xff]
    %v2237 = vld [vmem:[%s6] sm:$0xf]
    %v2239 = vlaneseq
    %v2240 = vshrl.u32 %v2239, 7
    %v2241 = vsub.s32 0, %v2240
    %v2242 = vrot.slane %v2237, %v2241
    %v2243 = vlaneseq
    %v2244 = vshrl.u32 %v2243, 7
    %v2245 = vsub.s32 1, %v2244
    %v2246 = vrot.slane %v2237, %v2245
    %v2247 = vlaneseq
    %v2248 = vshrl.u32 %v2247, 7
    %v2249 = vsub.s32 2, %v2248
    %v2250 = vrot.slane %v2237, %v2249
    %v2251 = vlaneseq
    %v2252 = vshrl.u32 %v2251, 7
    %v2253 = vsub.s32 3, %v2252
    %v2254 = vrot.slane %v2237, %v2253
    %v2275 = vunpack.c.l.b16 %v2189
    %v2276 = vunpack.c.l.b16 %v2190
    %v2277 = vunpack.c.l.b16 %v2191
    %v2278 = vunpack.c.l.b16 %v2192
    %v2279 = vunpack.c.l.b16 %v2193
    %v2280 = vunpack.c.l.b16 %v2194
    %v2281 = vunpack.c.l.b16 %v2195
    %v2282 = vunpack.c.l.b16 %v2196
    %v2283 = vunpack.c.l.b16 %v2197
    %v2284 = vunpack.c.l.b16 %v2198
    %v2285 = vunpack.c.l.b16 %v2199
    %v2286 = vunpack.c.l.b16 %v2200
    %v2287 = vunpack.c.l.b16 %v2201
    %v2288 = vunpack.c.l.b16 %v2202
    %v2289 = vunpack.c.l.b16 %v2203
    %v2290 = vunpack.c.l.b16 %v2204
    %v2291 = vpack.c.b16 %v2276, %v2275
    %v2292 = vpack.c.b16 %v2278, %v2277
    %v2293 = vpack.c.b16 %v2280, %v2279
    %v2294 = vpack.c.b16 %v2282, %v2281
    %v2295 = vpack.c.b16 %v2284, %v2283
    %v2296 = vpack.c.b16 %v2286, %v2285
    %v2297 = vpack.c.b16 %v2288, %v2287
    %v2298 = vpack.c.b16 %v2290, %v2289
    %v2339 = vunpack.c.l.b16 %v2205
    %v2340 = vunpack.c.h.b16 %v2205
    %v2341 = vunpack.c.l.b16 %v2206
    %v2342 = vunpack.c.h.b16 %v2206
    %v2343 = vunpack.c.l.b16 %v2207
    %v2344 = vunpack.c.h.b16 %v2207
    %v2345 = vunpack.c.l.b16 %v2208
    %v2346 = vunpack.c.h.b16 %v2208
    %v2347 = vunpack.c.l.b16 %v2209
    %v2348 = vunpack.c.h.b16 %v2209
    %v2349 = vunpack.c.l.b16 %v2210
    %v2350 = vunpack.c.h.b16 %v2210
    %v2351 = vunpack.c.l.b16 %v2211
    %v2352 = vunpack.c.h.b16 %v2211
    %v2353 = vunpack.c.l.b16 %v2212
    %v2354 = vunpack.c.h.b16 %v2212
    %v2355 = vunpack.c.l.b16 %v2213
    %v2356 = vunpack.c.h.b16 %v2213
    %v2357 = vunpack.c.l.b16 %v2214
    %v2358 = vunpack.c.h.b16 %v2214
    %v2359 = vunpack.c.l.b16 %v2215
    %v2360 = vunpack.c.h.b16 %v2215
    %v2361 = vunpack.c.l.b16 %v2216
    %v2362 = vunpack.c.h.b16 %v2216
    %v2363 = vunpack.c.l.b16 %v2217
    %v2364 = vunpack.c.h.b16 %v2217
    %v2365 = vunpack.c.l.b16 %v2218
    %v2366 = vunpack.c.h.b16 %v2218
    %v2367 = vunpack.c.l.b16 %v2219
    %v2368 = vunpack.c.h.b16 %v2219
    %v2369 = vunpack.c.l.b16 %v2220
    %v2370 = vunpack.c.h.b16 %v2220
    %v2371 = vunpack.c.l.b16 %v2221
    %v2372 = vunpack.c.h.b16 %v2221
    %v2373 = vunpack.c.l.b16 %v2222
    %v2374 = vunpack.c.h.b16 %v2222
    %v2375 = vunpack.c.l.b16 %v2223
    %v2376 = vunpack.c.h.b16 %v2223
    %v2377 = vunpack.c.l.b16 %v2224
    %v2378 = vunpack.c.h.b16 %v2224
    %v2379 = vunpack.c.l.b16 %v2225
    %v2380 = vunpack.c.h.b16 %v2225
    %v2381 = vunpack.c.l.b16 %v2226
    %v2382 = vunpack.c.h.b16 %v2226
    %v2383 = vunpack.c.l.b16 %v2227
    %v2384 = vunpack.c.h.b16 %v2227
    %v2385 = vunpack.c.l.b16 %v2228
    %v2386 = vunpack.c.h.b16 %v2228
    %v2387 = vunpack.c.l.b16 %v2229
    %v2388 = vunpack.c.h.b16 %v2229
    %v2389 = vunpack.c.l.b16 %v2230
    %v2390 = vunpack.c.h.b16 %v2230
    %v2391 = vunpack.c.l.b16 %v2231
    %v2392 = vunpack.c.h.b16 %v2231
    %v2393 = vunpack.c.l.b16 %v2232
    %v2394 = vunpack.c.h.b16 %v2232
    %v2395 = vunpack.c.l.b16 %v2233
    %v2396 = vunpack.c.h.b16 %v2233
    %v2397 = vunpack.c.l.b16 %v2234
    %v2398 = vunpack.c.h.b16 %v2234
    %v2399 = vunpack.c.l.b16 %v2235
    %v2400 = vunpack.c.h.b16 %v2235
    %v2401 = vunpack.c.l.b16 %v2236
    %v2402 = vunpack.c.h.b16 %v2236
    %v2403 = vpack.c.b16 %v2343, %v2339
    %v2404 = vpack.c.b16 %v2344, %v2340
    %v2405 = vpack.c.b16 %v2345, %v2341
    %v2406 = vpack.c.b16 %v2346, %v2342
    %v2407 = vpack.c.b16 %v2351, %v2347
    %v2408 = vpack.c.b16 %v2352, %v2348
    %v2409 = vpack.c.b16 %v2353, %v2349
    %v2410 = vpack.c.b16 %v2354, %v2350
    %v2411 = vpack.c.b16 %v2359, %v2355
    %v2412 = vpack.c.b16 %v2360, %v2356
    %v2413 = vpack.c.b16 %v2361, %v2357
    %v2414 = vpack.c.b16 %v2362, %v2358
    %v2415 = vpack.c.b16 %v2367, %v2363
    %v2416 = vpack.c.b16 %v2368, %v2364
    %v2417 = vpack.c.b16 %v2369, %v2365
    %v2418 = vpack.c.b16 %v2370, %v2366
    %v2419 = vpack.c.b16 %v2375, %v2371
    %v2420 = vpack.c.b16 %v2376, %v2372
    %v2421 = vpack.c.b16 %v2377, %v2373
    %v2422 = vpack.c.b16 %v2378, %v2374
    %v2423 = vpack.c.b16 %v2383, %v2379
    %v2424 = vpack.c.b16 %v2384, %v2380
    %v2425 = vpack.c.b16 %v2385, %v2381
    %v2426 = vpack.c.b16 %v2386, %v2382
    %v2427 = vpack.c.b16 %v2391, %v2387
    %v2428 = vpack.c.b16 %v2392, %v2388
    %v2429 = vpack.c.b16 %v2393, %v2389
    %v2430 = vpack.c.b16 %v2394, %v2390
    %v2431 = vpack.c.b16 %v2399, %v2395
    %v2432 = vpack.c.b16 %v2400, %v2396
    %v2433 = vpack.c.b16 %v2401, %v2397
    %v2434 = vpack.c.b16 %v2402, %v2398
    %2467 = vmatprep.subr.bf16.mxu0 %v2432
    %2468 = vmatpush1.bf16.msra.mxu0 %v2431
    %2469 = vmatprep.subr.bf16.mxu0 %v2428
    %2470 = vmatpush1.bf16.msra.mxu0 %v2427
    %2471 = vmatprep.subr.bf16.mxu0 %v2424
    %2472 = vmatpush1.bf16.msra.mxu0 %v2423
    %2473 = vmatprep.subr.bf16.mxu0 %v2420
    %2474 = vmatpush1.bf16.msra.mxu0 %v2419
    %2475 = vmatprep.subr.bf16.mxu0 %v2416
    %2476 = vmatpush1.bf16.msra.mxu0 %v2415
    %2477 = vmatprep.subr.bf16.mxu0 %v2412
    %2478 = vmatpush1.bf16.msra.mxu0 %v2411
    %2479 = vmatprep.subr.bf16.mxu0 %v2408
    %2480 = vmatpush1.bf16.msra.mxu0 %v2407
    %2481 = vmatprep.subr.bf16.mxu0 %v2404
    %2482 = vmatpush1.bf16.msra.mxu0 %v2403
    %2483 = vmatprep.subr.bf16.mxu0 0
    %2484 = vmatpush2.bf16.msra.mxu0 0
    %2485 = vmatprep.subr.bf16.mxu0 0
    %2486 = vmatpush2.bf16.msra.mxu0 0
    %2487 = vmatprep.subr.bf16.mxu0 0
    %2488 = vmatpush2.bf16.msra.mxu0 0
    %2489 = vmatprep.subr.bf16.mxu0 0
    %2490 = vmatpush2.bf16.msra.mxu0 0
    %2491 = vmatprep.subr.bf16.mxu0 0
    %2492 = vmatpush2.bf16.msra.mxu0 0
    %2493 = vmatprep.subr.bf16.mxu0 0
    %2494 = vmatpush2.bf16.msra.mxu0 0
    %2495 = vmatprep.subr.bf16.mxu0 0
    %2496 = vmatpush2.bf16.msra.mxu0 0
    %2497 = vmatprep.subr.bf16.mxu0 0
    %2498 = vmatpush2.bf16.msra.mxu0 0
    %2499 = vmatprep.mubr.bf16.mxu0 0
    %2500 = vmatmul.mubr.bf16.gmra.mxu0 %v2291
    %v2501 = vpop.f32.mrf.mxu0
    %v2502 = vadd.f32 %v2242, %v2501
    %v2503 = vpop.f32.mrf.mxu0
    %v2504 = vadd.f32 %v2246, %v2503
    %v2505 = vpop.f32.mrf.mxu0
    %v2506 = vadd.f32 %v2242, %v2505
    %v2507 = vpop.f32.mrf.mxu0
    %v2508 = vadd.f32 %v2246, %v2507
    %2509 = vmatprep.mubr.bf16.mxu0 0
    %2510 = vmatmul.mubr.bf16.gmra.mxu0 %v2292
    %v2511 = vpop.f32.mrf.mxu0
    %v2512 = vadd.f32 %v2242, %v2511
    %v2513 = vpop.f32.mrf.mxu0
    %v2514 = vadd.f32 %v2246, %v2513
    %v2515 = vpop.f32.mrf.mxu0
    %v2516 = vadd.f32 %v2242, %v2515
    %v2517 = vpop.f32.mrf.mxu0
    %v2518 = vadd.f32 %v2246, %v2517
    %2519 = vmatprep.mubr.bf16.mxu0 0
    %2520 = vmatmul.mubr.bf16.gmra.mxu0 %v2293
    %v2521 = vpop.f32.mrf.mxu0
    %v2522 = vadd.f32 %v2242, %v2521
    %v2523 = vpop.f32.mrf.mxu0
    %v2524 = vadd.f32 %v2246, %v2523
    %v2525 = vpop.f32.mrf.mxu0
    %v2526 = vadd.f32 %v2242, %v2525
    %v2527 = vpop.f32.mrf.mxu0
    %v2528 = vadd.f32 %v2246, %v2527
    %2529 = vmatprep.mubr.bf16.mxu0 0
    %2530 = vmatmul.mubr.bf16.gmra.mxu0 %v2294
    %v2531 = vpop.f32.mrf.mxu0
    %v2532 = vadd.f32 %v2242, %v2531
    %v2533 = vpop.f32.mrf.mxu0
    %v2534 = vadd.f32 %v2246, %v2533
    %v2535 = vpop.f32.mrf.mxu0
    %v2536 = vadd.f32 %v2242, %v2535
    %v2537 = vpop.f32.mrf.mxu0
    %v2538 = vadd.f32 %v2246, %v2537
    %2539 = vmatprep.mubr.bf16.mxu0 0
    %2540 = vmatmul.mubr.bf16.gmra.mxu0 %v2295
    %v2541 = vpop.f32.mrf.mxu0
    %v2542 = vadd.f32 %v2242, %v2541
    %v2543 = vpop.f32.mrf.mxu0
    %v2544 = vadd.f32 %v2246, %v2543
    %v2545 = vpop.f32.mrf.mxu0
    %v2546 = vadd.f32 %v2242, %v2545
    %v2547 = vpop.f32.mrf.mxu0
    %v2548 = vadd.f32 %v2246, %v2547
    %2549 = vmatprep.mubr.bf16.mxu0 0
    %2550 = vmatmul.mubr.bf16.gmra.mxu0 %v2296
    %v2551 = vpop.f32.mrf.mxu0
    %v2552 = vadd.f32 %v2242, %v2551
    %v2553 = vpop.f32.mrf.mxu0
    %v2554 = vadd.f32 %v2246, %v2553
    %v2555 = vpop.f32.mrf.mxu0
    %v2556 = vadd.f32 %v2242, %v2555
    %v2557 = vpop.f32.mrf.mxu0
    %v2558 = vadd.f32 %v2246, %v2557
    %2559 = vmatprep.mubr.bf16.mxu0 0
    %2560 = vmatmul.mubr.bf16.gmra.mxu0 %v2297
    %v2561 = vpop.f32.mrf.mxu0
    %v2562 = vadd.f32 %v2242, %v2561
    %v2563 = vpop.f32.mrf.mxu0
    %v2564 = vadd.f32 %v2246, %v2563
    %v2565 = vpop.f32.mrf.mxu0
    %v2566 = vadd.f32 %v2242, %v2565
    %v2567 = vpop.f32.mrf.mxu0
    %v2568 = vadd.f32 %v2246, %v2567
    %2569 = vmatprep.mubr.bf16.mxu0 0
    %2570 = vmatmul.mubr.bf16.gmra.mxu0 %v2298
    %v2571 = vpop.f32.mrf.mxu0
    %v2572 = vadd.f32 %v2242, %v2571
    %v2573 = vpop.f32.mrf.mxu0
    %v2574 = vadd.f32 %v2246, %v2573
    %v2575 = vpop.f32.mrf.mxu0
    %v2576 = vadd.f32 %v2242, %v2575
    %v2577 = vpop.f32.mrf.mxu0
    %v2578 = vadd.f32 %v2246, %v2577
    %2579 = vdwg.mxu0
    %2580 = vmatprep.subr.bf16.mxu0 %v2434
    %2581 = vmatpush1.bf16.msra.mxu0 %v2433
    %2582 = vmatprep.subr.bf16.mxu0 %v2430
    %2583 = vmatpush1.bf16.msra.mxu0 %v2429
    %2584 = vmatprep.subr.bf16.mxu0 %v2426
    %2585 = vmatpush1.bf16.msra.mxu0 %v2425
    %2586 = vmatprep.subr.bf16.mxu0 %v2422
    %2587 = vmatpush1.bf16.msra.mxu0 %v2421
    %2588 = vmatprep.subr.bf16.mxu0 %v2418
    %2589 = vmatpush1.bf16.msra.mxu0 %v2417
    %2590 = vmatprep.subr.bf16.mxu0 %v2414
    %2591 = vmatpush1.bf16.msra.mxu0 %v2413
    %2592 = vmatprep.subr.bf16.mxu0 %v2410
    %2593 = vmatpush1.bf16.msra.mxu0 %v2409
    %2594 = vmatprep.subr.bf16.mxu0 %v2406
    %2595 = vmatpush1.bf16.msra.mxu0 %v2405
    %2596 = vmatprep.subr.bf16.mxu0 0
    %2597 = vmatpush2.bf16.msra.mxu0 0
    %2598 = vmatprep.subr.bf16.mxu0 0
    %2599 = vmatpush2.bf16.msra.mxu0 0
    %2600 = vmatprep.subr.bf16.mxu0 0
    %2601 = vmatpush2.bf16.msra.mxu0 0
    %2602 = vmatprep.subr.bf16.mxu0 0
    %2603 = vmatpush2.bf16.msra.mxu0 0
    %2604 = vmatprep.subr.bf16.mxu0 0
    %2605 = vmatpush2.bf16.msra.mxu0 0
    %2606 = vmatprep.subr.bf16.mxu0 0
    %2607 = vmatpush2.bf16.msra.mxu0 0
    %2608 = vmatprep.subr.bf16.mxu0 0
    %2609 = vmatpush2.bf16.msra.mxu0 0
    %2610 = vmatprep.subr.bf16.mxu0 0
    %2611 = vmatpush2.bf16.msra.mxu0 0
    %2612 = vmatprep.mubr.bf16.mxu0 0
    %2613 = vmatmul.mubr.bf16.gmra.mxu0 %v2291
    %v2614 = vpop.f32.mrf.mxu0
    %v2615 = vadd.f32 %v2250, %v2614
    %v2616 = vpop.f32.mrf.mxu0
    %v2617 = vadd.f32 %v2254, %v2616
    %v2618 = vpop.f32.mrf.mxu0
    %v2619 = vadd.f32 %v2250, %v2618
    %v2620 = vpop.f32.mrf.mxu0
    %v2621 = vadd.f32 %v2254, %v2620
    %2622 = vmatprep.mubr.bf16.mxu0 0
    %2623 = vmatmul.mubr.bf16.gmra.mxu0 %v2292
    %v2624 = vpop.f32.mrf.mxu0
    %v2625 = vadd.f32 %v2250, %v2624
    %v2626 = vpop.f32.mrf.mxu0
    %v2627 = vadd.f32 %v2254, %v2626
    %v2628 = vpop.f32.mrf.mxu0
    %v2629 = vadd.f32 %v2250, %v2628
    %v2630 = vpop.f32.mrf.mxu0
    %v2631 = vadd.f32 %v2254, %v2630
    %2632 = vmatprep.mubr.bf16.mxu0 0
    %2633 = vmatmul.mubr.bf16.gmra.mxu0 %v2293
    %v2634 = vpop.f32.mrf.mxu0
    %v2635 = vadd.f32 %v2250, %v2634
    %v2636 = vpop.f32.mrf.mxu0
    %v2637 = vadd.f32 %v2254, %v2636
    %v2638 = vpop.f32.mrf.mxu0
    %v2639 = vadd.f32 %v2250, %v2638
    %v2640 = vpop.f32.mrf.mxu0
    %v2641 = vadd.f32 %v2254, %v2640
    %2642 = vmatprep.mubr.bf16.mxu0 0
    %2643 = vmatmul.mubr.bf16.gmra.mxu0 %v2294
    %v2644 = vpop.f32.mrf.mxu0
    %v2645 = vadd.f32 %v2250, %v2644
    %v2646 = vpop.f32.mrf.mxu0
    %v2647 = vadd.f32 %v2254, %v2646
    %v2648 = vpop.f32.mrf.mxu0
    %v2649 = vadd.f32 %v2250, %v2648
    %v2650 = vpop.f32.mrf.mxu0
    %v2651 = vadd.f32 %v2254, %v2650
    %2652 = vmatprep.mubr.bf16.mxu0 0
    %2653 = vmatmul.mubr.bf16.gmra.mxu0 %v2295
    %v2654 = vpop.f32.mrf.mxu0
    %v2655 = vadd.f32 %v2250, %v2654
    %v2656 = vpop.f32.mrf.mxu0
    %v2657 = vadd.f32 %v2254, %v2656
    %v2658 = vpop.f32.mrf.mxu0
    %v2659 = vadd.f32 %v2250, %v2658
    %v2660 = vpop.f32.mrf.mxu0
    %v2661 = vadd.f32 %v2254, %v2660
    %2662 = vmatprep.mubr.bf16.mxu0 0
    %2663 = vmatmul.mubr.bf16.gmra.mxu0 %v2296
    %v2664 = vpop.f32.mrf.mxu0
    %v2665 = vadd.f32 %v2250, %v2664
    %v2666 = vpop.f32.mrf.mxu0
    %v2667 = vadd.f32 %v2254, %v2666
    %v2668 = vpop.f32.mrf.mxu0
    %v2669 = vadd.f32 %v2250, %v2668
    %v2670 = vpop.f32.mrf.mxu0
    %v2671 = vadd.f32 %v2254, %v2670
    %2672 = vmatprep.mubr.bf16.mxu0 0
    %2673 = vmatmul.mubr.bf16.gmra.mxu0 %v2297
    %v2674 = vpop.f32.mrf.mxu0
    %v2675 = vadd.f32 %v2250, %v2674
    %v2676 = vpop.f32.mrf.mxu0
    %v2677 = vadd.f32 %v2254, %v2676
    %v2678 = vpop.f32.mrf.mxu0
    %v2679 = vadd.f32 %v2250, %v2678
    %v2680 = vpop.f32.mrf.mxu0
    %v2681 = vadd.f32 %v2254, %v2680
    %2682 = vmatprep.mubr.bf16.mxu0 0
    %2683 = vmatmul.mubr.bf16.gmra.mxu0 %v2298
    %v2684 = vpop.f32.mrf.mxu0
    %v2685 = vadd.f32 %v2250, %v2684
    %v2686 = vpop.f32.mrf.mxu0
    %v2687 = vadd.f32 %v2254, %v2686
    %v2688 = vpop.f32.mrf.mxu0
    %v2689 = vadd.f32 %v2250, %v2688
    %v2690 = vpop.f32.mrf.mxu0
    %v2691 = vadd.f32 %v2254, %v2690
    %2692 = vdwg.mxu0
    %2693 = vst [vmem:[#allocation2] sm:$0xff] %v2502
    %2694 = vst [vmem:[#allocation2 + $0x8] sm:$0xff] %v2504
    %2695 = vst [vmem:[#allocation2 + $0x10] sm:$0xff] %v2615
    %2696 = vst [vmem:[#allocation2 + $0x18] sm:$0xff] %v2617
    %2697 = vst [vmem:[#allocation2 + $0x20] sm:$0xff] %v2506
    %2698 = vst [vmem:[#allocation2 + $0x28] sm:$0xff] %v2508
    %2699 = vst [vmem:[#allocation2 + $0x30] sm:$0xff] %v2619
    %2700 = vst [vmem:[#allocation2 + $0x38] sm:$0xff] %v2621
    %2701 = vst [vmem:[#allocation2 + $0x40] sm:$0xff] %v2512
    %2702 = vst [vmem:[#allocation2 + $0x48] sm:$0xff] %v2514
    %2703 = vst [vmem:[#allocation2 + $0x50] sm:$0xff] %v2625
    %2704 = vst [vmem:[#allocation2 + $0x58] sm:$0xff] %v2627
    %2705 = vst [vmem:[#allocation2 + $0x60] sm:$0xff] %v2516
    %2706 = vst [vmem:[#allocation2 + $0x68] sm:$0xff] %v2518
    %2707 = vst [vmem:[#allocation2 + $0x70] sm:$0xff] %v2629
    %2708 = vst [vmem:[#allocation2 + $0x78] sm:$0xff] %v2631
    %2709 = vst [vmem:[#allocation2 + $0x80] sm:$0xff] %v2522
    %2710 = vst [vmem:[#allocation2 + $0x88] sm:$0xff] %v2524
    %2711 = vst [vmem:[#allocation2 + $0x90] sm:$0xff] %v2635
    %2712 = vst [vmem:[#allocation2 + $0x98] sm:$0xff] %v2637
    %2713 = vst [vmem:[#allocation2 + $0xa0] sm:$0xff] %v2526
    %2714 = vst [vmem:[#allocation2 + $0xa8] sm:$0xff] %v2528
    %2715 = vst [vmem:[#allocation2 + $0xb0] sm:$0xff] %v2639
    %2716 = vst [vmem:[#allocation2 + $0xb8] sm:$0xff] %v2641
    %2717 = vst [vmem:[#allocation2 + $0xc0] sm:$0xff] %v2532
    %2718 = vst [vmem:[#allocation2 + $0xc8] sm:$0xff] %v2534
    %2719 = vst [vmem:[#allocation2 + $0xd0] sm:$0xff] %v2645
    %2720 = vst [vmem:[#allocation2 + $0xd8] sm:$0xff] %v2647
    %2721 = vst [vmem:[#allocation2 + $0xe0] sm:$0xff] %v2536
    %2722 = vst [vmem:[#allocation2 + $0xe8] sm:$0xff] %v2538
    %2723 = vst [vmem:[#allocation2 + $0xf0] sm:$0xff] %v2649
    %2724 = vst [vmem:[#allocation2 + $0xf8] sm:$0xff] %v2651
    %2725 = vst [vmem:[#allocation2 + $0x100] sm:$0xff] %v2542
    %2726 = vst [vmem:[#allocation2 + $0x108] sm:$0xff] %v2544
    %2727 = vst [vmem:[#allocation2 + $0x110] sm:$0xff] %v2655
    %2728 = vst [vmem:[#allocation2 + $0x118] sm:$0xff] %v2657
    %2729 = vst [vmem:[#allocation2 + $0x120] sm:$0xff] %v2546
    %2730 = vst [vmem:[#allocation2 + $0x128] sm:$0xff] %v2548
    %2731 = vst [vmem:[#allocation2 + $0x130] sm:$0xff] %v2659
    %2732 = vst [vmem:[#allocation2 + $0x138] sm:$0xff] %v2661
    %2733 = vst [vmem:[#allocation2 + $0x140] sm:$0xff] %v2552
    %2734 = vst [vmem:[#allocation2 + $0x148] sm:$0xff] %v2554
    %2735 = vst [vmem:[#allocation2 + $0x150] sm:$0xff] %v2665
    %2736 = vst [vmem:[#allocation2 + $0x158] sm:$0xff] %v2667
    %2737 = vst [vmem:[#allocation2 + $0x160] sm:$0xff] %v2556
    %2738 = vst [vmem:[#allocation2 + $0x168] sm:$0xff] %v2558
    %2739 = vst [vmem:[#allocation2 + $0x170] sm:$0xff] %v2669
    %2740 = vst [vmem:[#allocation2 + $0x178] sm:$0xff] %v2671
    %2741 = vst [vmem:[#allocation2 + $0x180] sm:$0xff] %v2562
    %2742 = vst [vmem:[#allocation2 + $0x188] sm:$0xff] %v2564
    %2743 = vst [vmem:[#allocation2 + $0x190] sm:$0xff] %v2675
    %2744 = vst [vmem:[#allocation2 + $0x198] sm:$0xff] %v2677
    %2745 = vst [vmem:[#allocation2 + $0x1a0] sm:$0xff] %v2566
    %2746 = vst [vmem:[#allocation2 + $0x1a8] sm:$0xff] %v2568
    %2747 = vst [vmem:[#allocation2 + $0x1b0] sm:$0xff] %v2679
    %2748 = vst [vmem:[#allocation2 + $0x1b8] sm:$0xff] %v2681
    %2749 = vst [vmem:[#allocation2 + $0x1c0] sm:$0xff] %v2572
    %2750 = vst [vmem:[#allocation2 + $0x1c8] sm:$0xff] %v2574
    %2751 = vst [vmem:[#allocation2 + $0x1d0] sm:$0xff] %v2685
    %2752 = vst [vmem:[#allocation2 + $0x1d8] sm:$0xff] %v2687
    %2753 = vst [vmem:[#allocation2 + $0x1e0] sm:$0xff] %v2576
    %2754 = vst [vmem:[#allocation2 + $0x1e8] sm:$0xff] %v2578
    %2755 = vst [vmem:[#allocation2 + $0x1f0] sm:$0xff] %v2689
    %2756 = vst [vmem:[#allocation2 + $0x1f8] sm:$0xff] %v2691
    %v2757 = vld [vmem:[#allocation12] sm:$0xff]
    %v2758 = vld [vmem:[#allocation12 + $0x8] sm:$0xff]
    %v2759 = vld [vmem:[#allocation12 + $0x10] sm:$0xff]
    %v2760 = vld [vmem:[#allocation12 + $0x18] sm:$0xff]
    %v2761 = vld [vmem:[#allocation12 + $0x20] sm:$0xff]
    %v2762 = vld [vmem:[#allocation12 + $0x28] sm:$0xff]
    %v2763 = vld [vmem:[#allocation12 + $0x30] sm:$0xff]
    %v2764 = vld [vmem:[#allocation12 + $0x38] sm:$0xff]
    %v2765 = vld [vmem:[#allocation12 + $0x40] sm:$0xff]
    %v2766 = vld [vmem:[#allocation12 + $0x48] sm:$0xff]
    %v2767 = vld [vmem:[#allocation12 + $0x50] sm:$0xff]
    %v2768 = vld [vmem:[#allocation12 + $0x58] sm:$0xff]
    %v2769 = vld [vmem:[#allocation12 + $0x60] sm:$0xff]
    %v2770 = vld [vmem:[#allocation12 + $0x68] sm:$0xff]
    %v2771 = vld [vmem:[#allocation12 + $0x70] sm:$0xff]
    %v2772 = vld [vmem:[#allocation12 + $0x78] sm:$0xff]
    %v2773 = vld [vmem:[#allocation12 + $0x80] sm:$0xff]
    %v2774 = vld [vmem:[#allocation12 + $0x88] sm:$0xff]
    %v2775 = vld [vmem:[#allocation12 + $0x90] sm:$0xff]
    %v2776 = vld [vmem:[#allocation12 + $0x98] sm:$0xff]
    %v2777 = vld [vmem:[#allocation12 + $0xa0] sm:$0xff]
    %v2778 = vld [vmem:[#allocation12 + $0xa8] sm:$0xff]
    %v2779 = vld [vmem:[#allocation12 + $0xb0] sm:$0xff]
    %v2780 = vld [vmem:[#allocation12 + $0xb8] sm:$0xff]
    %v2781 = vld [vmem:[#allocation12 + $0xc0] sm:$0xff]
    %v2782 = vld [vmem:[#allocation12 + $0xc8] sm:$0xff]
    %v2783 = vld [vmem:[#allocation12 + $0xd0] sm:$0xff]
    %v2784 = vld [vmem:[#allocation12 + $0xd8] sm:$0xff]
    %v2785 = vld [vmem:[#allocation12 + $0xe0] sm:$0xff]
    %v2786 = vld [vmem:[#allocation12 + $0xe8] sm:$0xff]
    %v2787 = vld [vmem:[#allocation12 + $0xf0] sm:$0xff]
    %v2788 = vld [vmem:[#allocation12 + $0xf8] sm:$0xff]
    %s2789 = scalar_lea.vmem [#allocation3], 32
    %v2790 = vld [vmem:[%s2789] sm:$0xff]
    %v2791 = vld [vmem:[%s2789 + $0x8] sm:$0xff]
    %s2792 = scalar_lea.vmem [#allocation3], 48
    %v2793 = vld [vmem:[%s2792] sm:$0xff]
    %v2794 = vld [vmem:[%s2792 + $0x8] sm:$0xff]
    %v2795 = vld [vmem:[%s715] sm:$0xff]
    %v2796 = vld [vmem:[%s715 + $0x8] sm:$0xff]
    %v2797 = vld [vmem:[%s715 + $0x10] sm:$0xff]
    %v2798 = vld [vmem:[%s715 + $0x18] sm:$0xff]
    %v2799 = vld [vmem:[%s715 + $0x20] sm:$0xff]
    %v2800 = vld [vmem:[%s715 + $0x28] sm:$0xff]
    %v2801 = vld [vmem:[%s715 + $0x30] sm:$0xff]
    %v2802 = vld [vmem:[%s715 + $0x38] sm:$0xff]
    %v2803 = vpack.c.bf16 %v2791, %v2790
    %v2836 = vunpack.c.l.b16 %v2757
    %v2837 = vunpack.c.h.b16 %v2757
    %v2838 = vunpack.c.l.b16 %v2758
    %v2839 = vunpack.c.h.b16 %v2758
    %v2840 = vunpack.c.l.b16 %v2759
    %v2841 = vunpack.c.h.b16 %v2759
    %v2842 = vunpack.c.l.b16 %v2760
    %v2843 = vunpack.c.h.b16 %v2760
    %v2844 = vunpack.c.l.b16 %v2761
    %v2845 = vunpack.c.h.b16 %v2761
    %v2846 = vunpack.c.l.b16 %v2762
    %v2847 = vunpack.c.h.b16 %v2762
    %v2848 = vunpack.c.l.b16 %v2763
    %v2849 = vunpack.c.h.b16 %v2763
    %v2850 = vunpack.c.l.b16 %v2764
    %v2851 = vunpack.c.h.b16 %v2764
    %v2852 = vunpack.c.l.b16 %v2765
    %v2853 = vunpack.c.h.b16 %v2765
    %v2854 = vunpack.c.l.b16 %v2766
    %v2855 = vunpack.c.h.b16 %v2766
    %v2856 = vunpack.c.l.b16 %v2767
    %v2857 = vunpack.c.h.b16 %v2767
    %v2858 = vunpack.c.l.b16 %v2768
    %v2859 = vunpack.c.h.b16 %v2768
    %v2860 = vunpack.c.l.b16 %v2769
    %v2861 = vunpack.c.h.b16 %v2769
    %v2862 = vunpack.c.l.b16 %v2770
    %v2863 = vunpack.c.h.b16 %v2770
    %v2864 = vunpack.c.l.b16 %v2771
    %v2865 = vunpack.c.h.b16 %v2771
    %v2866 = vunpack.c.l.b16 %v2772
    %v2867 = vunpack.c.h.b16 %v2772
    %v2868 = vunpack.c.l.b16 %v2773
    %v2869 = vunpack.c.h.b16 %v2773
    %v2870 = vunpack.c.l.b16 %v2774
    %v2871 = vunpack.c.h.b16 %v2774
    %v2872 = vunpack.c.l.b16 %v2775
    %v2873 = vunpack.c.h.b16 %v2775
    %v2874 = vunpack.c.l.b16 %v2776
    %v2875 = vunpack.c.h.b16 %v2776
    %v2876 = vunpack.c.l.b16 %v2777
    %v2877 = vunpack.c.h.b16 %v2777
    %v2878 = vunpack.c.l.b16 %v2778
    %v2879 = vunpack.c.h.b16 %v2778
    %v2880 = vunpack.c.l.b16 %v2779
    %v2881 = vunpack.c.h.b16 %v2779
    %v2882 = vunpack.c.l.b16 %v2780
    %v2883 = vunpack.c.h.b16 %v2780
    %v2884 = vunpack.c.l.b16 %v2781
    %v2885 = vunpack.c.h.b16 %v2781
    %v2886 = vunpack.c.l.b16 %v2782
    %v2887 = vunpack.c.h.b16 %v2782
    %v2888 = vunpack.c.l.b16 %v2783
    %v2889 = vunpack.c.h.b16 %v2783
    %v2890 = vunpack.c.l.b16 %v2784
    %v2891 = vunpack.c.h.b16 %v2784
    %v2892 = vunpack.c.l.b16 %v2785
    %v2893 = vunpack.c.h.b16 %v2785
    %v2894 = vunpack.c.l.b16 %v2786
    %v2895 = vunpack.c.h.b16 %v2786
    %v2896 = vunpack.c.l.b16 %v2787
    %v2897 = vunpack.c.h.b16 %v2787
    %v2898 = vunpack.c.l.b16 %v2788
    %v2899 = vunpack.c.h.b16 %v2788
    %v2900 = vpack.c.b16 %v2840, %v2836
    %v2901 = vpack.c.b16 %v2841, %v2837
    %v2902 = vpack.c.b16 %v2842, %v2838
    %v2903 = vpack.c.b16 %v2843, %v2839
    %v2904 = vpack.c.b16 %v2848, %v2844
    %v2905 = vpack.c.b16 %v2849, %v2845
    %v2906 = vpack.c.b16 %v2850, %v2846
    %v2907 = vpack.c.b16 %v2851, %v2847
    %v2908 = vpack.c.b16 %v2856, %v2852
    %v2909 = vpack.c.b16 %v2857, %v2853
    %v2910 = vpack.c.b16 %v2858, %v2854
    %v2911 = vpack.c.b16 %v2859, %v2855
    %v2912 = vpack.c.b16 %v2864, %v2860
    %v2913 = vpack.c.b16 %v2865, %v2861
    %v2914 = vpack.c.b16 %v2866, %v2862
    %v2915 = vpack.c.b16 %v2867, %v2863
    %v2916 = vpack.c.b16 %v2872, %v2868
    %v2917 = vpack.c.b16 %v2873, %v2869
    %v2918 = vpack.c.b16 %v2874, %v2870
    %v2919 = vpack.c.b16 %v2875, %v2871
    %v2920 = vpack.c.b16 %v2880, %v2876
    %v2921 = vpack.c.b16 %v2881, %v2877
    %v2922 = vpack.c.b16 %v2882, %v2878
    %v2923 = vpack.c.b16 %v2883, %v2879
    %v2924 = vpack.c.b16 %v2888, %v2884
    %v2925 = vpack.c.b16 %v2889, %v2885
    %v2926 = vpack.c.b16 %v2890, %v2886
    %v2927 = vpack.c.b16 %v2891, %v2887
    %v2928 = vpack.c.b16 %v2896, %v2892
    %v2929 = vpack.c.b16 %v2897, %v2893
    %v2930 = vpack.c.b16 %v2898, %v2894
    %v2931 = vpack.c.b16 %v2899, %v2895
    %2964 = vmatprep.subr.bf16.mxu0 %v2929
    %2965 = vmatpush1.bf16.msra.mxu0 %v2928
    %2966 = vmatprep.subr.bf16.mxu0 %v2925
    %2967 = vmatpush1.bf16.msra.mxu0 %v2924
    %2968 = vmatprep.subr.bf16.mxu0 %v2921
    %2969 = vmatpush1.bf16.msra.mxu0 %v2920
    %2970 = vmatprep.subr.bf16.mxu0 %v2917
    %2971 = vmatpush1.bf16.msra.mxu0 %v2916
    %2972 = vmatprep.subr.bf16.mxu0 %v2913
    %2973 = vmatpush1.bf16.msra.mxu0 %v2912
    %2974 = vmatprep.subr.bf16.mxu0 %v2909
    %2975 = vmatpush1.bf16.msra.mxu0 %v2908
    %2976 = vmatprep.subr.bf16.mxu0 %v2905
    %2977 = vmatpush1.bf16.msra.mxu0 %v2904
    %2978 = vmatprep.subr.bf16.mxu0 %v2901
    %2979 = vmatpush1.bf16.msra.mxu0 %v2900
    %2980 = vmatprep.subr.bf16.mxu0 0
    %2981 = vmatpush2.bf16.msra.mxu0 0
    %2982 = vmatprep.subr.bf16.mxu0 0
    %2983 = vmatpush2.bf16.msra.mxu0 0
    %2984 = vmatprep.subr.bf16.mxu0 0
    %2985 = vmatpush2.bf16.msra.mxu0 0
    %2986 = vmatprep.subr.bf16.mxu0 0
    %2987 = vmatpush2.bf16.msra.mxu0 0
    %2988 = vmatprep.subr.bf16.mxu0 0
    %2989 = vmatpush2.bf16.msra.mxu0 0
    %2990 = vmatprep.subr.bf16.mxu0 0
    %2991 = vmatpush2.bf16.msra.mxu0 0
    %2992 = vmatprep.subr.bf16.mxu0 0
    %2993 = vmatpush2.bf16.msra.mxu0 0
    %2994 = vmatprep.subr.bf16.mxu0 0
    %2995 = vmatpush2.bf16.msra.mxu0 0
    %2996 = vmatprep.mubr.bf16.mxu0 0
    %2997 = vmatmul.mubr.bf16.gmra.mxu0 %v2803
    %v2998 = vpop.f32.mrf.mxu0
    %v2999 = vadd.f32 0.0, %v2998
    %v3000 = vpop.f32.mrf.mxu0
    %v3001 = vadd.f32 0.0, %v3000
    %v3002 = vpop.f32.mrf.mxu0
    %v3003 = vadd.f32 0.0, %v3002
    %v3004 = vpop.f32.mrf.mxu0
    %v3005 = vadd.f32 0.0, %v3004
    %3006 = vdwg.mxu0
    %3007 = vmatprep.subr.bf16.mxu0 %v2931
    %3008 = vmatpush1.bf16.msra.mxu0 %v2930
    %3009 = vmatprep.subr.bf16.mxu0 %v2927
    %3010 = vmatpush1.bf16.msra.mxu0 %v2926
    %3011 = vmatprep.subr.bf16.mxu0 %v2923
    %3012 = vmatpush1.bf16.msra.mxu0 %v2922
    %3013 = vmatprep.subr.bf16.mxu0 %v2919
    %3014 = vmatpush1.bf16.msra.mxu0 %v2918
    %3015 = vmatprep.subr.bf16.mxu0 %v2915
    %3016 = vmatpush1.bf16.msra.mxu0 %v2914
    %3017 = vmatprep.subr.bf16.mxu0 %v2911
    %3018 = vmatpush1.bf16.msra.mxu0 %v2910
    %3019 = vmatprep.subr.bf16.mxu0 %v2907
    %3020 = vmatpush1.bf16.msra.mxu0 %v2906
    %3021 = vmatprep.subr.bf16.mxu0 %v2903
    %3022 = vmatpush1.bf16.msra.mxu0 %v2902
    %3023 = vmatprep.subr.bf16.mxu0 0
    %3024 = vmatpush2.bf16.msra.mxu0 0
    %3025 = vmatprep.subr.bf16.mxu0 0
    %3026 = vmatpush2.bf16.msra.mxu0 0
    %3027 = vmatprep.subr.bf16.mxu0 0
    %3028 = vmatpush2.bf16.msra.mxu0 0
    %3029 = vmatprep.subr.bf16.mxu0 0
    %3030 = vmatpush2.bf16.msra.mxu0 0
    %3031 = vmatprep.subr.bf16.mxu0 0
    %3032 = vmatpush2.bf16.msra.mxu0 0
    %3033 = vmatprep.subr.bf16.mxu0 0
    %3034 = vmatpush2.bf16.msra.mxu0 0
    %3035 = vmatprep.subr.bf16.mxu0 0
    %3036 = vmatpush2.bf16.msra.mxu0 0
    %3037 = vmatprep.subr.bf16.mxu0 0
    %3038 = vmatpush2.bf16.msra.mxu0 0
    %3039 = vmatprep.mubr.bf16.mxu0 0
    %3040 = vmatmul.mubr.bf16.gmra.mxu0 %v2803
    %v3041 = vpop.f32.mrf.mxu0
    %v3042 = vadd.f32 0.0, %v3041
    %v3043 = vpop.f32.mrf.mxu0
    %v3044 = vadd.f32 0.0, %v3043
    %v3045 = vpop.f32.mrf.mxu0
    %v3046 = vadd.f32 0.0, %v3045
    %v3047 = vpop.f32.mrf.mxu0
    %v3048 = vadd.f32 0.0, %v3047
    %3049 = vdwg.mxu0
    %v3050 = vadd.f32 %v2795, %v2999
    %v3051 = vadd.f32 %v2796, %v3001
    %v3052 = vadd.f32 %v2797, %v3042
    %v3053 = vadd.f32 %v2798, %v3044
    %v3054 = vadd.f32 %v2799, %v3003
    %v3055 = vadd.f32 %v2800, %v3005
    %v3056 = vadd.f32 %v2801, %v3046
    %v3057 = vadd.f32 %v2802, %v3048
    %v3058 = vxor.u32 %v3050, 2147483648
    %v3059 = vxor.u32 %v3054, 2147483648
    %v3060 = vmul.f32 %v3058, 1.442695
    %v3061 = vpow.pop %v3060
    %v3062 = vmul.f32 %v3059, 1.442695
    %v3063 = vpow.pop %v3062
    %v3064 = vadd.f32 %v3061, 1.0
    %v3065 = vadd.f32 %v3063, 1.0
    %v3066 = vrcp.pop %v3064
    %v3067 = vmul.f32 1.0, %v3066
    %v3068 = vrcp.pop %v3065
    %v3069 = vmul.f32 1.0, %v3068
    %v3070 = vxor.u32 %v3051, 2147483648
    %v3071 = vxor.u32 %v3055, 2147483648
    %v3072 = vmul.f32 %v3070, 1.442695
    %v3073 = vpow.pop %v3072
    %v3074 = vmul.f32 %v3071, 1.442695
    %v3075 = vpow.pop %v3074
    %v3076 = vadd.f32 %v3073, 1.0
    %v3077 = vadd.f32 %v3075, 1.0
    %v3078 = vrcp.pop %v3076
    %v3079 = vmul.f32 1.0, %v3078
    %v3080 = vrcp.pop %v3077
    %v3081 = vmul.f32 1.0, %v3080
    %v3082 = vtanh.pop %v3052
    %v3083 = vtanh.pop %v3056
    %v3084 = vxor.u32 %v3053, 2147483648
    %v3085 = vxor.u32 %v3057, 2147483648
    %v3086 = vmul.f32 %v3084, 1.442695
    %v3087 = vpow.pop %v3086
    %v3088 = vmul.f32 %v3085, 1.442695
    %v3089 = vpow.pop %v3088
    %v3090 = vadd.f32 %v3087, 1.0
    %v3091 = vadd.f32 %v3089, 1.0
    %v3092 = vrcp.pop %v3090
    %v3093 = vmul.f32 1.0, %v3092
    %v3094 = vrcp.pop %v3091
    %v3095 = vmul.f32 1.0, %v3094
    %v3096 = vmul.f32 %v3079, %v2793
    %v3097 = vmul.f32 %v3081, %v2794
    %v3098 = vmul.f32 %v3067, %v3082
    %v3099 = vmul.f32 %v3069, %v3083
    %v3100 = vadd.f32 %v3096, %v3098
    %v3101 = vadd.f32 %v3097, %v3099
    %v3102 = vtanh.pop %v3100
    %v3103 = vtanh.pop %v3101
    %v3104 = vmul.f32 %v3093, %v3102
    %v3105 = vmul.f32 %v3095, %v3103
    %v3106 = vpack.c.bf16 %v3105, %v3104
    %v3108 = vunpack.c.l.b16 %v3106
    %v3109 = vunpack.c.h.b16 %v3106
    %v3110 = vpack.c.b16 %v3108, %v3108
    %v3111 = vpack.c.b16 %v3109, %v3109
    %3114 = vst [vmem:[#allocation13] sm:$0xf] %v3110
    %3115 = vst [vmem:[#allocation13 + $0x4] sm:$0xf] %v3111
    %v3116 = vld [vmem:[%s1039] sm:$0xff]
    %v3117 = vld [vmem:[%s1039 + $0x8] sm:$0xff]
    %v3118 = vld [vmem:[%s1039 + $0x10] sm:$0xff]
    %v3119 = vld [vmem:[%s1039 + $0x18] sm:$0xff]
    %v3120 = vld [vmem:[%s1039 + $0x20] sm:$0xff]
    %v3121 = vld [vmem:[%s1039 + $0x28] sm:$0xff]
    %v3122 = vld [vmem:[%s1039 + $0x30] sm:$0xff]
    %v3123 = vld [vmem:[%s1039 + $0x38] sm:$0xff]
    %3124 = vmatprep.subr.bf16.mxu0 %v2929
    %3125 = vmatpush1.bf16.msra.mxu0 %v2928
    %3126 = vmatprep.subr.bf16.mxu0 %v2925
    %3127 = vmatpush1.bf16.msra.mxu0 %v2924
    %3128 = vmatprep.subr.bf16.mxu0 %v2921
    %3129 = vmatpush1.bf16.msra.mxu0 %v2920
    %3130 = vmatprep.subr.bf16.mxu0 %v2917
    %3131 = vmatpush1.bf16.msra.mxu0 %v2916
    %3132 = vmatprep.subr.bf16.mxu0 %v2913
    %3133 = vmatpush1.bf16.msra.mxu0 %v2912
    %3134 = vmatprep.subr.bf16.mxu0 %v2909
    %3135 = vmatpush1.bf16.msra.mxu0 %v2908
    %3136 = vmatprep.subr.bf16.mxu0 %v2905
    %3137 = vmatpush1.bf16.msra.mxu0 %v2904
    %3138 = vmatprep.subr.bf16.mxu0 %v2901
    %3139 = vmatpush1.bf16.msra.mxu0 %v2900
    %3140 = vmatprep.subr.bf16.mxu0 0
    %3141 = vmatpush2.bf16.msra.mxu0 0
    %3142 = vmatprep.subr.bf16.mxu0 0
    %3143 = vmatpush2.bf16.msra.mxu0 0
    %3144 = vmatprep.subr.bf16.mxu0 0
    %3145 = vmatpush2.bf16.msra.mxu0 0
    %3146 = vmatprep.subr.bf16.mxu0 0
    %3147 = vmatpush2.bf16.msra.mxu0 0
    %3148 = vmatprep.subr.bf16.mxu0 0
    %3149 = vmatpush2.bf16.msra.mxu0 0
    %3150 = vmatprep.subr.bf16.mxu0 0
    %3151 = vmatpush2.bf16.msra.mxu0 0
    %3152 = vmatprep.subr.bf16.mxu0 0
    %3153 = vmatpush2.bf16.msra.mxu0 0
    %3154 = vmatprep.subr.bf16.mxu0 0
    %3155 = vmatpush2.bf16.msra.mxu0 0
    %3156 = vmatprep.mubr.bf16.mxu0 0
    %3157 = vmatmul.mubr.bf16.gmra.mxu0 %v3106
    %v3158 = vpop.f32.mrf.mxu0
    %v3159 = vadd.f32 0.0, %v3158
    %v3160 = vpop.f32.mrf.mxu0
    %v3161 = vadd.f32 0.0, %v3160
    %v3162 = vpop.f32.mrf.mxu0
    %v3163 = vadd.f32 0.0, %v3162
    %v3164 = vpop.f32.mrf.mxu0
    %v3165 = vadd.f32 0.0, %v3164
    %3166 = vdwg.mxu0
    %3167 = vmatprep.subr.bf16.mxu0 %v2931
    %3168 = vmatpush1.bf16.msra.mxu0 %v2930
    %3169 = vmatprep.subr.bf16.mxu0 %v2927
    %3170 = vmatpush1.bf16.msra.mxu0 %v2926
    %3171 = vmatprep.subr.bf16.mxu0 %v2923
    %3172 = vmatpush1.bf16.msra.mxu0 %v2922
    %3173 = vmatprep.subr.bf16.mxu0 %v2919
    %3174 = vmatpush1.bf16.msra.mxu0 %v2918
    %3175 = vmatprep.subr.bf16.mxu0 %v2915
    %3176 = vmatpush1.bf16.msra.mxu0 %v2914
    %3177 = vmatprep.subr.bf16.mxu0 %v2911
    %3178 = vmatpush1.bf16.msra.mxu0 %v2910
    %3179 = vmatprep.subr.bf16.mxu0 %v2907
    %3180 = vmatpush1.bf16.msra.mxu0 %v2906
    %3181 = vmatprep.subr.bf16.mxu0 %v2903
    %3182 = vmatpush1.bf16.msra.mxu0 %v2902
    %3183 = vmatprep.subr.bf16.mxu0 0
    %3184 = vmatpush2.bf16.msra.mxu0 0
    %3185 = vmatprep.subr.bf16.mxu0 0
    %3186 = vmatpush2.bf16.msra.mxu0 0
    %3187 = vmatprep.subr.bf16.mxu0 0
    %3188 = vmatpush2.bf16.msra.mxu0 0
    %3189 = vmatprep.subr.bf16.mxu0 0
    %3190 = vmatpush2.bf16.msra.mxu0 0
    %3191 = vmatprep.subr.bf16.mxu0 0
    %3192 = vmatpush2.bf16.msra.mxu0 0
    %3193 = vmatprep.subr.bf16.mxu0 0
    %3194 = vmatpush2.bf16.msra.mxu0 0
    %3195 = vmatprep.subr.bf16.mxu0 0
    %3196 = vmatpush2.bf16.msra.mxu0 0
    %3197 = vmatprep.subr.bf16.mxu0 0
    %3198 = vmatpush2.bf16.msra.mxu0 0
    %3199 = vmatprep.mubr.bf16.mxu0 0
    %3200 = vmatmul.mubr.bf16.gmra.mxu0 %v3106
    %v3201 = vpop.f32.mrf.mxu0
    %v3202 = vadd.f32 0.0, %v3201
    %v3203 = vpop.f32.mrf.mxu0
    %v3204 = vadd.f32 0.0, %v3203
    %v3205 = vpop.f32.mrf.mxu0
    %v3206 = vadd.f32 0.0, %v3205
    %v3207 = vpop.f32.mrf.mxu0
    %v3208 = vadd.f32 0.0, %v3207
    %3209 = vdwg.mxu0
    %v3210 = vadd.f32 %v3116, %v3159
    %v3211 = vadd.f32 %v3117, %v3161
    %v3212 = vadd.f32 %v3118, %v3202
    %v3213 = vadd.f32 %v3119, %v3204
    %v3214 = vadd.f32 %v3120, %v3163
    %v3215 = vadd.f32 %v3121, %v3165
    %v3216 = vadd.f32 %v3122, %v3206
    %v3217 = vadd.f32 %v3123, %v3208
    %v3218 = vxor.u32 %v3210, 2147483648
    %v3219 = vxor.u32 %v3214, 2147483648
    %v3220 = vmul.f32 %v3218, 1.442695
    %v3221 = vpow.pop %v3220
    %v3222 = vmul.f32 %v3219, 1.442695
    %v3223 = vpow.pop %v3222
    %v3224 = vadd.f32 %v3221, 1.0
    %v3225 = vadd.f32 %v3223, 1.0
    %v3226 = vrcp.pop %v3224
    %v3227 = vmul.f32 1.0, %v3226
    %v3228 = vrcp.pop %v3225
    %v3229 = vmul.f32 1.0, %v3228
    %v3230 = vxor.u32 %v3211, 2147483648
    %v3231 = vxor.u32 %v3215, 2147483648
    %v3232 = vmul.f32 %v3230, 1.442695
    %v3233 = vpow.pop %v3232
    %v3234 = vmul.f32 %v3231, 1.442695
    %v3235 = vpow.pop %v3234
    %v3236 = vadd.f32 %v3233, 1.0
    %v3237 = vadd.f32 %v3235, 1.0
    %v3238 = vrcp.pop %v3236
    %v3239 = vmul.f32 1.0, %v3238
    %v3240 = vrcp.pop %v3237
    %v3241 = vmul.f32 1.0, %v3240
    %v3242 = vtanh.pop %v3212
    %v3243 = vtanh.pop %v3216
    %v3244 = vxor.u32 %v3213, 2147483648
    %v3245 = vxor.u32 %v3217, 2147483648
    %v3246 = vmul.f32 %v3244, 1.442695
    %v3247 = vpow.pop %v3246
    %v3248 = vmul.f32 %v3245, 1.442695
    %v3249 = vpow.pop %v3248
    %v3250 = vadd.f32 %v3247, 1.0
    %v3251 = vadd.f32 %v3249, 1.0
    %v3252 = vrcp.pop %v3250
    %v3253 = vmul.f32 1.0, %v3252
    %v3254 = vrcp.pop %v3251
    %v3255 = vmul.f32 1.0, %v3254
    %v3256 = vmul.f32 %v3239, %v3100
    %v3257 = vmul.f32 %v3241, %v3101
    %v3258 = vmul.f32 %v3227, %v3242
    %v3259 = vmul.f32 %v3229, %v3243
    %v3260 = vadd.f32 %v3256, %v3258
    %v3261 = vadd.f32 %v3257, %v3259
    %v3262 = vtanh.pop %v3260
    %v3263 = vtanh.pop %v3261
    %v3264 = vmul.f32 %v3253, %v3262
    %v3265 = vmul.f32 %v3255, %v3263
    %v3266 = vpack.c.bf16 %v3265, %v3264
    %v3268 = vunpack.c.l.b16 %v3266
    %v3269 = vunpack.c.h.b16 %v3266
    %v3270 = vpack.c.b16 %v3268, %v3268
    %v3271 = vpack.c.b16 %v3269, %v3269
    %3274 = vst [vmem:[%s1198] sm:$0xf] %v3270
    %3275 = vst [vmem:[%s1198 + $0x4] sm:$0xf] %v3271
    %v3276 = vld [vmem:[%s1203] sm:$0xff]
    %v3277 = vld [vmem:[%s1203 + $0x8] sm:$0xff]
    %v3278 = vld [vmem:[%s1203 + $0x10] sm:$0xff]
    %v3279 = vld [vmem:[%s1203 + $0x18] sm:$0xff]
    %v3280 = vld [vmem:[%s1203 + $0x20] sm:$0xff]
    %v3281 = vld [vmem:[%s1203 + $0x28] sm:$0xff]
    %v3282 = vld [vmem:[%s1203 + $0x30] sm:$0xff]
    %v3283 = vld [vmem:[%s1203 + $0x38] sm:$0xff]
    %3284 = vmatprep.subr.bf16.mxu0 %v2929
    %3285 = vmatpush1.bf16.msra.mxu0 %v2928
    %3286 = vmatprep.subr.bf16.mxu0 %v2925
    %3287 = vmatpush1.bf16.msra.mxu0 %v2924
    %3288 = vmatprep.subr.bf16.mxu0 %v2921
    %3289 = vmatpush1.bf16.msra.mxu0 %v2920
    %3290 = vmatprep.subr.bf16.mxu0 %v2917
    %3291 = vmatpush1.bf16.msra.mxu0 %v2916
    %3292 = vmatprep.subr.bf16.mxu0 %v2913
    %3293 = vmatpush1.bf16.msra.mxu0 %v2912
    %3294 = vmatprep.subr.bf16.mxu0 %v2909
    %3295 = vmatpush1.bf16.msra.mxu0 %v2908
    %3296 = vmatprep.subr.bf16.mxu0 %v2905
    %3297 = vmatpush1.bf16.msra.mxu0 %v2904
    %3298 = vmatprep.subr.bf16.mxu0 %v2901
    %3299 = vmatpush1.bf16.msra.mxu0 %v2900
    %3300 = vmatprep.subr.bf16.mxu0 0
    %3301 = vmatpush2.bf16.msra.mxu0 0
    %3302 = vmatprep.subr.bf16.mxu0 0
    %3303 = vmatpush2.bf16.msra.mxu0 0
    %3304 = vmatprep.subr.bf16.mxu0 0
    %3305 = vmatpush2.bf16.msra.mxu0 0
    %3306 = vmatprep.subr.bf16.mxu0 0
    %3307 = vmatpush2.bf16.msra.mxu0 0
    %3308 = vmatprep.subr.bf16.mxu0 0
    %3309 = vmatpush2.bf16.msra.mxu0 0
    %3310 = vmatprep.subr.bf16.mxu0 0
    %3311 = vmatpush2.bf16.msra.mxu0 0
    %3312 = vmatprep.subr.bf16.mxu0 0
    %3313 = vmatpush2.bf16.msra.mxu0 0
    %3314 = vmatprep.subr.bf16.mxu0 0
    %3315 = vmatpush2.bf16.msra.mxu0 0
    %3316 = vmatprep.mubr.bf16.mxu0 0
    %3317 = vmatmul.mubr.bf16.gmra.mxu0 %v3266
    %v3318 = vpop.f32.mrf.mxu0
    %v3319 = vadd.f32 0.0, %v3318
    %v3320 = vpop.f32.mrf.mxu0
    %v3321 = vadd.f32 0.0, %v3320
    %v3322 = vpop.f32.mrf.mxu0
    %v3323 = vadd.f32 0.0, %v3322
    %v3324 = vpop.f32.mrf.mxu0
    %v3325 = vadd.f32 0.0, %v3324
    %3326 = vdwg.mxu0
    %3327 = vmatprep.subr.bf16.mxu0 %v2931
    %3328 = vmatpush1.bf16.msra.mxu0 %v2930
    %3329 = vmatprep.subr.bf16.mxu0 %v2927
    %3330 = vmatpush1.bf16.msra.mxu0 %v2926
    %3331 = vmatprep.subr.bf16.mxu0 %v2923
    %3332 = vmatpush1.bf16.msra.mxu0 %v2922
    %3333 = vmatprep.subr.bf16.mxu0 %v2919
    %3334 = vmatpush1.bf16.msra.mxu0 %v2918
    %3335 = vmatprep.subr.bf16.mxu0 %v2915
    %3336 = vmatpush1.bf16.msra.mxu0 %v2914
    %3337 = vmatprep.subr.bf16.mxu0 %v2911
    %3338 = vmatpush1.bf16.msra.mxu0 %v2910
    %3339 = vmatprep.subr.bf16.mxu0 %v2907
    %3340 = vmatpush1.bf16.msra.mxu0 %v2906
    %3341 = vmatprep.subr.bf16.mxu0 %v2903
    %3342 = vmatpush1.bf16.msra.mxu0 %v2902
    %3343 = vmatprep.subr.bf16.mxu0 0
    %3344 = vmatpush2.bf16.msra.mxu0 0
    %3345 = vmatprep.subr.bf16.mxu0 0
    %3346 = vmatpush2.bf16.msra.mxu0 0
    %3347 = vmatprep.subr.bf16.mxu0 0
    %3348 = vmatpush2.bf16.msra.mxu0 0
    %3349 = vmatprep.subr.bf16.mxu0 0
    %3350 = vmatpush2.bf16.msra.mxu0 0
    %3351 = vmatprep.subr.bf16.mxu0 0
    %3352 = vmatpush2.bf16.msra.mxu0 0
    %3353 = vmatprep.subr.bf16.mxu0 0
    %3354 = vmatpush2.bf16.msra.mxu0 0
    %3355 = vmatprep.subr.bf16.mxu0 0
    %3356 = vmatpush2.bf16.msra.mxu0 0
    %3357 = vmatprep.subr.bf16.mxu0 0
    %3358 = vmatpush2.bf16.msra.mxu0 0
    %3359 = vmatprep.mubr.bf16.mxu0 0
    %3360 = vmatmul.mubr.bf16.gmra.mxu0 %v3266
    %v3361 = vpop.f32.mrf.mxu0
    %v3362 = vadd.f32 0.0, %v3361
    %v3363 = vpop.f32.mrf.mxu0
    %v3364 = vadd.f32 0.0, %v3363
    %v3365 = vpop.f32.mrf.mxu0
    %v3366 = vadd.f32 0.0, %v3365
    %v3367 = vpop.f32.mrf.mxu0
    %v3368 = vadd.f32 0.0, %v3367
    %3369 = vdwg.mxu0
    %v3370 = vadd.f32 %v3276, %v3319
    %v3371 = vadd.f32 %v3277, %v3321
    %v3372 = vadd.f32 %v3278, %v3362
    %v3373 = vadd.f32 %v3279, %v3364
    %v3374 = vadd.f32 %v3280, %v3323
    %v3375 = vadd.f32 %v3281, %v3325
    %v3376 = vadd.f32 %v3282, %v3366
    %v3377 = vadd.f32 %v3283, %v3368
    %v3378 = vxor.u32 %v3370, 2147483648
    %v3379 = vxor.u32 %v3374, 2147483648
    %v3380 = vmul.f32 %v3378, 1.442695
    %v3381 = vpow.pop %v3380
    %v3382 = vmul.f32 %v3379, 1.442695
    %v3383 = vpow.pop %v3382
    %v3384 = vadd.f32 %v3381, 1.0
    %v3385 = vadd.f32 %v3383, 1.0
    %v3386 = vrcp.pop %v3384
    %v3387 = vmul.f32 1.0, %v3386
    %v3388 = vrcp.pop %v3385
    %v3389 = vmul.f32 1.0, %v3388
    %v3390 = vxor.u32 %v3371, 2147483648
    %v3391 = vxor.u32 %v3375, 2147483648
    %v3392 = vmul.f32 %v3390, 1.442695
    %v3393 = vpow.pop %v3392
    %v3394 = vmul.f32 %v3391, 1.442695
    %v3395 = vpow.pop %v3394
    %v3396 = vadd.f32 %v3393, 1.0
    %v3397 = vadd.f32 %v3395, 1.0
    %v3398 = vrcp.pop %v3396
    %v3399 = vmul.f32 1.0, %v3398
    %v3400 = vrcp.pop %v3397
    %v3401 = vmul.f32 1.0, %v3400
    %v3402 = vtanh.pop %v3372
    %v3403 = vtanh.pop %v3376
    %v3404 = vxor.u32 %v3373, 2147483648
    %v3405 = vxor.u32 %v3377, 2147483648
    %v3406 = vmul.f32 %v3404, 1.442695
    %v3407 = vpow.pop %v3406
    %v3408 = vmul.f32 %v3405, 1.442695
    %v3409 = vpow.pop %v3408
    %v3410 = vadd.f32 %v3407, 1.0
    %v3411 = vadd.f32 %v3409, 1.0
    %v3412 = vrcp.pop %v3410
    %v3413 = vmul.f32 1.0, %v3412
    %v3414 = vrcp.pop %v3411
    %v3415 = vmul.f32 1.0, %v3414
    %v3416 = vmul.f32 %v3399, %v3260
    %v3417 = vmul.f32 %v3401, %v3261
    %v3418 = vmul.f32 %v3387, %v3402
    %v3419 = vmul.f32 %v3389, %v3403
    %v3420 = vadd.f32 %v3416, %v3418
    %v3421 = vadd.f32 %v3417, %v3419
    %v3422 = vtanh.pop %v3420
    %v3423 = vtanh.pop %v3421
    %v3424 = vmul.f32 %v3413, %v3422
    %v3425 = vmul.f32 %v3415, %v3423
    %v3426 = vpack.c.bf16 %v3425, %v3424
    %v3428 = vunpack.c.l.b16 %v3426
    %v3429 = vunpack.c.h.b16 %v3426
    %v3430 = vpack.c.b16 %v3428, %v3428
    %v3431 = vpack.c.b16 %v3429, %v3429
    %3434 = vst [vmem:[%s1362] sm:$0xf] %v3430
    %3435 = vst [vmem:[%s1362 + $0x4] sm:$0xf] %v3431
    %v3436 = vld [vmem:[%s1367] sm:$0xff]
    %v3437 = vld [vmem:[%s1367 + $0x8] sm:$0xff]
    %v3438 = vld [vmem:[%s1367 + $0x10] sm:$0xff]
    %v3439 = vld [vmem:[%s1367 + $0x18] sm:$0xff]
    %v3440 = vld [vmem:[%s1367 + $0x20] sm:$0xff]
    %v3441 = vld [vmem:[%s1367 + $0x28] sm:$0xff]
    %v3442 = vld [vmem:[%s1367 + $0x30] sm:$0xff]
    %v3443 = vld [vmem:[%s1367 + $0x38] sm:$0xff]
    %3444 = vmatprep.subr.bf16.mxu0 %v2929
    %3445 = vmatpush1.bf16.msra.mxu0 %v2928
    %3446 = vmatprep.subr.bf16.mxu0 %v2925
    %3447 = vmatpush1.bf16.msra.mxu0 %v2924
    %3448 = vmatprep.subr.bf16.mxu0 %v2921
    %3449 = vmatpush1.bf16.msra.mxu0 %v2920
    %3450 = vmatprep.subr.bf16.mxu0 %v2917
    %3451 = vmatpush1.bf16.msra.mxu0 %v2916
    %3452 = vmatprep.subr.bf16.mxu0 %v2913
    %3453 = vmatpush1.bf16.msra.mxu0 %v2912
    %3454 = vmatprep.subr.bf16.mxu0 %v2909
    %3455 = vmatpush1.bf16.msra.mxu0 %v2908
    %3456 = vmatprep.subr.bf16.mxu0 %v2905
    %3457 = vmatpush1.bf16.msra.mxu0 %v2904
    %3458 = vmatprep.subr.bf16.mxu0 %v2901
    %3459 = vmatpush1.bf16.msra.mxu0 %v2900
    %3460 = vmatprep.subr.bf16.mxu0 0
    %3461 = vmatpush2.bf16.msra.mxu0 0
    %3462 = vmatprep.subr.bf16.mxu0 0
    %3463 = vmatpush2.bf16.msra.mxu0 0
    %3464 = vmatprep.subr.bf16.mxu0 0
    %3465 = vmatpush2.bf16.msra.mxu0 0
    %3466 = vmatprep.subr.bf16.mxu0 0
    %3467 = vmatpush2.bf16.msra.mxu0 0
    %3468 = vmatprep.subr.bf16.mxu0 0
    %3469 = vmatpush2.bf16.msra.mxu0 0
    %3470 = vmatprep.subr.bf16.mxu0 0
    %3471 = vmatpush2.bf16.msra.mxu0 0
    %3472 = vmatprep.subr.bf16.mxu0 0
    %3473 = vmatpush2.bf16.msra.mxu0 0
    %3474 = vmatprep.subr.bf16.mxu0 0
    %3475 = vmatpush2.bf16.msra.mxu0 0
    %3476 = vmatprep.mubr.bf16.mxu0 0
    %3477 = vmatmul.mubr.bf16.gmra.mxu0 %v3426
    %v3478 = vpop.f32.mrf.mxu0
    %v3479 = vadd.f32 0.0, %v3478
    %v3480 = vpop.f32.mrf.mxu0
    %v3481 = vadd.f32 0.0, %v3480
    %v3482 = vpop.f32.mrf.mxu0
    %v3483 = vadd.f32 0.0, %v3482
    %v3484 = vpop.f32.mrf.mxu0
    %v3485 = vadd.f32 0.0, %v3484
    %3486 = vdwg.mxu0
    %3487 = vmatprep.subr.bf16.mxu0 %v2931
    %3488 = vmatpush1.bf16.msra.mxu0 %v2930
    %3489 = vmatprep.subr.bf16.mxu0 %v2927
    %3490 = vmatpush1.bf16.msra.mxu0 %v2926
    %3491 = vmatprep.subr.bf16.mxu0 %v2923
    %3492 = vmatpush1.bf16.msra.mxu0 %v2922
    %3493 = vmatprep.subr.bf16.mxu0 %v2919
    %3494 = vmatpush1.bf16.msra.mxu0 %v2918
    %3495 = vmatprep.subr.bf16.mxu0 %v2915
    %3496 = vmatpush1.bf16.msra.mxu0 %v2914
    %3497 = vmatprep.subr.bf16.mxu0 %v2911
    %3498 = vmatpush1.bf16.msra.mxu0 %v2910
    %3499 = vmatprep.subr.bf16.mxu0 %v2907
    %3500 = vmatpush1.bf16.msra.mxu0 %v2906
    %3501 = vmatprep.subr.bf16.mxu0 %v2903
    %3502 = vmatpush1.bf16.msra.mxu0 %v2902
    %3503 = vmatprep.subr.bf16.mxu0 0
    %3504 = vmatpush2.bf16.msra.mxu0 0
    %3505 = vmatprep.subr.bf16.mxu0 0
    %3506 = vmatpush2.bf16.msra.mxu0 0
    %3507 = vmatprep.subr.bf16.mxu0 0
    %3508 = vmatpush2.bf16.msra.mxu0 0
    %3509 = vmatprep.subr.bf16.mxu0 0
    %3510 = vmatpush2.bf16.msra.mxu0 0
    %3511 = vmatprep.subr.bf16.mxu0 0
    %3512 = vmatpush2.bf16.msra.mxu0 0
    %3513 = vmatprep.subr.bf16.mxu0 0
    %3514 = vmatpush2.bf16.msra.mxu0 0
    %3515 = vmatprep.subr.bf16.mxu0 0
    %3516 = vmatpush2.bf16.msra.mxu0 0
    %3517 = vmatprep.subr.bf16.mxu0 0
    %3518 = vmatpush2.bf16.msra.mxu0 0
    %3519 = vmatprep.mubr.bf16.mxu0 0
    %3520 = vmatmul.mubr.bf16.gmra.mxu0 %v3426
    %v3521 = vpop.f32.mrf.mxu0
    %v3522 = vadd.f32 0.0, %v3521
    %v3523 = vpop.f32.mrf.mxu0
    %v3524 = vadd.f32 0.0, %v3523
    %v3525 = vpop.f32.mrf.mxu0
    %v3526 = vadd.f32 0.0, %v3525
    %v3527 = vpop.f32.mrf.mxu0
    %v3528 = vadd.f32 0.0, %v3527
    %3529 = vdwg.mxu0
    %v3530 = vadd.f32 %v3436, %v3479
    %v3531 = vadd.f32 %v3437, %v3481
    %v3532 = vadd.f32 %v3438, %v3522
    %v3533 = vadd.f32 %v3439, %v3524
    %v3534 = vadd.f32 %v3440, %v3483
    %v3535 = vadd.f32 %v3441, %v3485
    %v3536 = vadd.f32 %v3442, %v3526
    %v3537 = vadd.f32 %v3443, %v3528
    %v3538 = vxor.u32 %v3530, 2147483648
    %v3539 = vxor.u32 %v3534, 2147483648
    %v3540 = vmul.f32 %v3538, 1.442695
    %v3541 = vpow.pop %v3540
    %v3542 = vmul.f32 %v3539, 1.442695
    %v3543 = vpow.pop %v3542
    %v3544 = vadd.f32 %v3541, 1.0
    %v3545 = vadd.f32 %v3543, 1.0
    %v3546 = vrcp.pop %v3544
    %v3547 = vmul.f32 1.0, %v3546
    %v3548 = vrcp.pop %v3545
    %v3549 = vmul.f32 1.0, %v3548
    %v3550 = vxor.u32 %v3531, 2147483648
    %v3551 = vxor.u32 %v3535, 2147483648
    %v3552 = vmul.f32 %v3550, 1.442695
    %v3553 = vpow.pop %v3552
    %v3554 = vmul.f32 %v3551, 1.442695
    %v3555 = vpow.pop %v3554
    %v3556 = vadd.f32 %v3553, 1.0
    %v3557 = vadd.f32 %v3555, 1.0
    %v3558 = vrcp.pop %v3556
    %v3559 = vmul.f32 1.0, %v3558
    %v3560 = vrcp.pop %v3557
    %v3561 = vmul.f32 1.0, %v3560
    %v3562 = vtanh.pop %v3532
    %v3563 = vtanh.pop %v3536
    %v3564 = vxor.u32 %v3533, 2147483648
    %v3565 = vxor.u32 %v3537, 2147483648
    %v3566 = vmul.f32 %v3564, 1.442695
    %v3567 = vpow.pop %v3566
    %v3568 = vmul.f32 %v3565, 1.442695
    %v3569 = vpow.pop %v3568
    %v3570 = vadd.f32 %v3567, 1.0
    %v3571 = vadd.f32 %v3569, 1.0
    %v3572 = vrcp.pop %v3570
    %v3573 = vmul.f32 1.0, %v3572
    %v3574 = vrcp.pop %v3571
    %v3575 = vmul.f32 1.0, %v3574
    %v3576 = vmul.f32 %v3559, %v3420
    %v3577 = vmul.f32 %v3561, %v3421
    %v3578 = vmul.f32 %v3547, %v3562
    %v3579 = vmul.f32 %v3549, %v3563
    %v3580 = vadd.f32 %v3576, %v3578
    %v3581 = vadd.f32 %v3577, %v3579
    %v3582 = vtanh.pop %v3580
    %v3583 = vtanh.pop %v3581
    %v3584 = vmul.f32 %v3573, %v3582
    %v3585 = vmul.f32 %v3575, %v3583
    %v3586 = vpack.c.bf16 %v3585, %v3584
    %v3588 = vunpack.c.l.b16 %v3586
    %v3589 = vunpack.c.h.b16 %v3586
    %v3590 = vpack.c.b16 %v3588, %v3588
    %v3591 = vpack.c.b16 %v3589, %v3589
    %3594 = vst [vmem:[%s1526] sm:$0xf] %v3590
    %3595 = vst [vmem:[%s1526 + $0x4] sm:$0xf] %v3591
    %v3596 = vld [vmem:[%s1531] sm:$0xff]
    %v3597 = vld [vmem:[%s1531 + $0x8] sm:$0xff]
    %v3598 = vld [vmem:[%s1531 + $0x10] sm:$0xff]
    %v3599 = vld [vmem:[%s1531 + $0x18] sm:$0xff]
    %v3600 = vld [vmem:[%s1531 + $0x20] sm:$0xff]
    %v3601 = vld [vmem:[%s1531 + $0x28] sm:$0xff]
    %v3602 = vld [vmem:[%s1531 + $0x30] sm:$0xff]
    %v3603 = vld [vmem:[%s1531 + $0x38] sm:$0xff]
    %3604 = vmatprep.subr.bf16.mxu0 %v2929
    %3605 = vmatpush1.bf16.msra.mxu0 %v2928
    %3606 = vmatprep.subr.bf16.mxu0 %v2925
    %3607 = vmatpush1.bf16.msra.mxu0 %v2924
    %3608 = vmatprep.subr.bf16.mxu0 %v2921
    %3609 = vmatpush1.bf16.msra.mxu0 %v2920
    %3610 = vmatprep.subr.bf16.mxu0 %v2917
    %3611 = vmatpush1.bf16.msra.mxu0 %v2916
    %3612 = vmatprep.subr.bf16.mxu0 %v2913
    %3613 = vmatpush1.bf16.msra.mxu0 %v2912
    %3614 = vmatprep.subr.bf16.mxu0 %v2909
    %3615 = vmatpush1.bf16.msra.mxu0 %v2908
    %3616 = vmatprep.subr.bf16.mxu0 %v2905
    %3617 = vmatpush1.bf16.msra.mxu0 %v2904
    %3618 = vmatprep.subr.bf16.mxu0 %v2901
    %3619 = vmatpush1.bf16.msra.mxu0 %v2900
    %3620 = vmatprep.subr.bf16.mxu0 0
    %3621 = vmatpush2.bf16.msra.mxu0 0
    %3622 = vmatprep.subr.bf16.mxu0 0
    %3623 = vmatpush2.bf16.msra.mxu0 0
    %3624 = vmatprep.subr.bf16.mxu0 0
    %3625 = vmatpush2.bf16.msra.mxu0 0
    %3626 = vmatprep.subr.bf16.mxu0 0
    %3627 = vmatpush2.bf16.msra.mxu0 0
    %3628 = vmatprep.subr.bf16.mxu0 0
    %3629 = vmatpush2.bf16.msra.mxu0 0
    %3630 = vmatprep.subr.bf16.mxu0 0
    %3631 = vmatpush2.bf16.msra.mxu0 0
    %3632 = vmatprep.subr.bf16.mxu0 0
    %3633 = vmatpush2.bf16.msra.mxu0 0
    %3634 = vmatprep.subr.bf16.mxu0 0
    %3635 = vmatpush2.bf16.msra.mxu0 0
    %3636 = vmatprep.mubr.bf16.mxu0 0
    %3637 = vmatmul.mubr.bf16.gmra.mxu0 %v3586
    %v3638 = vpop.f32.mrf.mxu0
    %v3639 = vadd.f32 0.0, %v3638
    %v3640 = vpop.f32.mrf.mxu0
    %v3641 = vadd.f32 0.0, %v3640
    %v3642 = vpop.f32.mrf.mxu0
    %v3643 = vadd.f32 0.0, %v3642
    %v3644 = vpop.f32.mrf.mxu0
    %v3645 = vadd.f32 0.0, %v3644
    %3646 = vdwg.mxu0
    %3647 = vmatprep.subr.bf16.mxu0 %v2931
    %3648 = vmatpush1.bf16.msra.mxu0 %v2930
    %3649 = vmatprep.subr.bf16.mxu0 %v2927
    %3650 = vmatpush1.bf16.msra.mxu0 %v2926
    %3651 = vmatprep.subr.bf16.mxu0 %v2923
    %3652 = vmatpush1.bf16.msra.mxu0 %v2922
    %3653 = vmatprep.subr.bf16.mxu0 %v2919
    %3654 = vmatpush1.bf16.msra.mxu0 %v2918
    %3655 = vmatprep.subr.bf16.mxu0 %v2915
    %3656 = vmatpush1.bf16.msra.mxu0 %v2914
    %3657 = vmatprep.subr.bf16.mxu0 %v2911
    %3658 = vmatpush1.bf16.msra.mxu0 %v2910
    %3659 = vmatprep.subr.bf16.mxu0 %v2907
    %3660 = vmatpush1.bf16.msra.mxu0 %v2906
    %3661 = vmatprep.subr.bf16.mxu0 %v2903
    %3662 = vmatpush1.bf16.msra.mxu0 %v2902
    %3663 = vmatprep.subr.bf16.mxu0 0
    %3664 = vmatpush2.bf16.msra.mxu0 0
    %3665 = vmatprep.subr.bf16.mxu0 0
    %3666 = vmatpush2.bf16.msra.mxu0 0
    %3667 = vmatprep.subr.bf16.mxu0 0
    %3668 = vmatpush2.bf16.msra.mxu0 0
    %3669 = vmatprep.subr.bf16.mxu0 0
    %3670 = vmatpush2.bf16.msra.mxu0 0
    %3671 = vmatprep.subr.bf16.mxu0 0
    %3672 = vmatpush2.bf16.msra.mxu0 0
    %3673 = vmatprep.subr.bf16.mxu0 0
    %3674 = vmatpush2.bf16.msra.mxu0 0
    %3675 = vmatprep.subr.bf16.mxu0 0
    %3676 = vmatpush2.bf16.msra.mxu0 0
    %3677 = vmatprep.subr.bf16.mxu0 0
    %3678 = vmatpush2.bf16.msra.mxu0 0
    %3679 = vmatprep.mubr.bf16.mxu0 0
    %3680 = vmatmul.mubr.bf16.gmra.mxu0 %v3586
    %v3681 = vpop.f32.mrf.mxu0
    %v3682 = vadd.f32 0.0, %v3681
    %v3683 = vpop.f32.mrf.mxu0
    %v3684 = vadd.f32 0.0, %v3683
    %v3685 = vpop.f32.mrf.mxu0
    %v3686 = vadd.f32 0.0, %v3685
    %v3687 = vpop.f32.mrf.mxu0
    %v3688 = vadd.f32 0.0, %v3687
    %3689 = vdwg.mxu0
    %v3690 = vadd.f32 %v3596, %v3639
    %v3691 = vadd.f32 %v3597, %v3641
    %v3692 = vadd.f32 %v3598, %v3682
    %v3693 = vadd.f32 %v3599, %v3684
    %v3694 = vadd.f32 %v3600, %v3643
    %v3695 = vadd.f32 %v3601, %v3645
    %v3696 = vadd.f32 %v3602, %v3686
    %v3697 = vadd.f32 %v3603, %v3688
    %v3698 = vxor.u32 %v3690, 2147483648
    %v3699 = vxor.u32 %v3694, 2147483648
    %v3700 = vmul.f32 %v3698, 1.442695
    %v3701 = vpow.pop %v3700
    %v3702 = vmul.f32 %v3699, 1.442695
    %v3703 = vpow.pop %v3702
    %v3704 = vadd.f32 %v3701, 1.0
    %v3705 = vadd.f32 %v3703, 1.0
    %v3706 = vrcp.pop %v3704
    %v3707 = vmul.f32 1.0, %v3706
    %v3708 = vrcp.pop %v3705
    %v3709 = vmul.f32 1.0, %v3708
    %v3710 = vxor.u32 %v3691, 2147483648
    %v3711 = vxor.u32 %v3695, 2147483648
    %v3712 = vmul.f32 %v3710, 1.442695
    %v3713 = vpow.pop %v3712
    %v3714 = vmul.f32 %v3711, 1.442695
    %v3715 = vpow.pop %v3714
    %v3716 = vadd.f32 %v3713, 1.0
    %v3717 = vadd.f32 %v3715, 1.0
    %v3718 = vrcp.pop %v3716
    %v3719 = vmul.f32 1.0, %v3718
    %v3720 = vrcp.pop %v3717
    %v3721 = vmul.f32 1.0, %v3720
    %v3722 = vtanh.pop %v3692
    %v3723 = vtanh.pop %v3696
    %v3724 = vxor.u32 %v3693, 2147483648
    %v3725 = vxor.u32 %v3697, 2147483648
    %v3726 = vmul.f32 %v3724, 1.442695
    %v3727 = vpow.pop %v3726
    %v3728 = vmul.f32 %v3725, 1.442695
    %v3729 = vpow.pop %v3728
    %v3730 = vadd.f32 %v3727, 1.0
    %v3731 = vadd.f32 %v3729, 1.0
    %v3732 = vrcp.pop %v3730
    %v3733 = vmul.f32 1.0, %v3732
    %v3734 = vrcp.pop %v3731
    %v3735 = vmul.f32 1.0, %v3734
    %v3736 = vmul.f32 %v3719, %v3580
    %v3737 = vmul.f32 %v3721, %v3581
    %v3738 = vmul.f32 %v3707, %v3722
    %v3739 = vmul.f32 %v3709, %v3723
    %v3740 = vadd.f32 %v3736, %v3738
    %v3741 = vadd.f32 %v3737, %v3739
    %v3742 = vtanh.pop %v3740
    %v3743 = vtanh.pop %v3741
    %v3744 = vmul.f32 %v3733, %v3742
    %v3745 = vmul.f32 %v3735, %v3743
    %v3746 = vpack.c.bf16 %v3745, %v3744
    %v3748 = vunpack.c.l.b16 %v3746
    %v3749 = vunpack.c.h.b16 %v3746
    %v3750 = vpack.c.b16 %v3748, %v3748
    %v3751 = vpack.c.b16 %v3749, %v3749
    %3754 = vst [vmem:[%s1690] sm:$0xf] %v3750
    %3755 = vst [vmem:[%s1690 + $0x4] sm:$0xf] %v3751
    %v3756 = vld [vmem:[%s1695] sm:$0xff]
    %v3757 = vld [vmem:[%s1695 + $0x8] sm:$0xff]
    %v3758 = vld [vmem:[%s1695 + $0x10] sm:$0xff]
    %v3759 = vld [vmem:[%s1695 + $0x18] sm:$0xff]
    %v3760 = vld [vmem:[%s1695 + $0x20] sm:$0xff]
    %v3761 = vld [vmem:[%s1695 + $0x28] sm:$0xff]
    %v3762 = vld [vmem:[%s1695 + $0x30] sm:$0xff]
    %v3763 = vld [vmem:[%s1695 + $0x38] sm:$0xff]
    %3764 = vmatprep.subr.bf16.mxu0 %v2929
    %3765 = vmatpush1.bf16.msra.mxu0 %v2928
    %3766 = vmatprep.subr.bf16.mxu0 %v2925
    %3767 = vmatpush1.bf16.msra.mxu0 %v2924
    %3768 = vmatprep.subr.bf16.mxu0 %v2921
    %3769 = vmatpush1.bf16.msra.mxu0 %v2920
    %3770 = vmatprep.subr.bf16.mxu0 %v2917
    %3771 = vmatpush1.bf16.msra.mxu0 %v2916
    %3772 = vmatprep.subr.bf16.mxu0 %v2913
    %3773 = vmatpush1.bf16.msra.mxu0 %v2912
    %3774 = vmatprep.subr.bf16.mxu0 %v2909
    %3775 = vmatpush1.bf16.msra.mxu0 %v2908
    %3776 = vmatprep.subr.bf16.mxu0 %v2905
    %3777 = vmatpush1.bf16.msra.mxu0 %v2904
    %3778 = vmatprep.subr.bf16.mxu0 %v2901
    %3779 = vmatpush1.bf16.msra.mxu0 %v2900
    %3780 = vmatprep.subr.bf16.mxu0 0
    %3781 = vmatpush2.bf16.msra.mxu0 0
    %3782 = vmatprep.subr.bf16.mxu0 0
    %3783 = vmatpush2.bf16.msra.mxu0 0
    %3784 = vmatprep.subr.bf16.mxu0 0
    %3785 = vmatpush2.bf16.msra.mxu0 0
    %3786 = vmatprep.subr.bf16.mxu0 0
    %3787 = vmatpush2.bf16.msra.mxu0 0
    %3788 = vmatprep.subr.bf16.mxu0 0
    %3789 = vmatpush2.bf16.msra.mxu0 0
    %3790 = vmatprep.subr.bf16.mxu0 0
    %3791 = vmatpush2.bf16.msra.mxu0 0
    %3792 = vmatprep.subr.bf16.mxu0 0
    %3793 = vmatpush2.bf16.msra.mxu0 0
    %3794 = vmatprep.subr.bf16.mxu0 0
    %3795 = vmatpush2.bf16.msra.mxu0 0
    %3796 = vmatprep.mubr.bf16.mxu0 0
    %3797 = vmatmul.mubr.bf16.gmra.mxu0 %v3746
    %v3798 = vpop.f32.mrf.mxu0
    %v3799 = vadd.f32 0.0, %v3798
    %v3800 = vpop.f32.mrf.mxu0
    %v3801 = vadd.f32 0.0, %v3800
    %v3802 = vpop.f32.mrf.mxu0
    %v3803 = vadd.f32 0.0, %v3802
    %v3804 = vpop.f32.mrf.mxu0
    %v3805 = vadd.f32 0.0, %v3804
    %3806 = vdwg.mxu0
    %3807 = vmatprep.subr.bf16.mxu0 %v2931
    %3808 = vmatpush1.bf16.msra.mxu0 %v2930
    %3809 = vmatprep.subr.bf16.mxu0 %v2927
    %3810 = vmatpush1.bf16.msra.mxu0 %v2926
    %3811 = vmatprep.subr.bf16.mxu0 %v2923
    %3812 = vmatpush1.bf16.msra.mxu0 %v2922
    %3813 = vmatprep.subr.bf16.mxu0 %v2919
    %3814 = vmatpush1.bf16.msra.mxu0 %v2918
    %3815 = vmatprep.subr.bf16.mxu0 %v2915
    %3816 = vmatpush1.bf16.msra.mxu0 %v2914
    %3817 = vmatprep.subr.bf16.mxu0 %v2911
    %3818 = vmatpush1.bf16.msra.mxu0 %v2910
    %3819 = vmatprep.subr.bf16.mxu0 %v2907
    %3820 = vmatpush1.bf16.msra.mxu0 %v2906
    %3821 = vmatprep.subr.bf16.mxu0 %v2903
    %3822 = vmatpush1.bf16.msra.mxu0 %v2902
    %3823 = vmatprep.subr.bf16.mxu0 0
    %3824 = vmatpush2.bf16.msra.mxu0 0
    %3825 = vmatprep.subr.bf16.mxu0 0
    %3826 = vmatpush2.bf16.msra.mxu0 0
    %3827 = vmatprep.subr.bf16.mxu0 0
    %3828 = vmatpush2.bf16.msra.mxu0 0
    %3829 = vmatprep.subr.bf16.mxu0 0
    %3830 = vmatpush2.bf16.msra.mxu0 0
    %3831 = vmatprep.subr.bf16.mxu0 0
    %3832 = vmatpush2.bf16.msra.mxu0 0
    %3833 = vmatprep.subr.bf16.mxu0 0
    %3834 = vmatpush2.bf16.msra.mxu0 0
    %3835 = vmatprep.subr.bf16.mxu0 0
    %3836 = vmatpush2.bf16.msra.mxu0 0
    %3837 = vmatprep.subr.bf16.mxu0 0
    %3838 = vmatpush2.bf16.msra.mxu0 0
    %3839 = vmatprep.mubr.bf16.mxu0 0
    %3840 = vmatmul.mubr.bf16.gmra.mxu0 %v3746
    %v3841 = vpop.f32.mrf.mxu0
    %v3842 = vadd.f32 0.0, %v3841
    %v3843 = vpop.f32.mrf.mxu0
    %v3844 = vadd.f32 0.0, %v3843
    %v3845 = vpop.f32.mrf.mxu0
    %v3846 = vadd.f32 0.0, %v3845
    %v3847 = vpop.f32.mrf.mxu0
    %v3848 = vadd.f32 0.0, %v3847
    %3849 = vdwg.mxu0
    %v3850 = vadd.f32 %v3756, %v3799
    %v3851 = vadd.f32 %v3757, %v3801
    %v3852 = vadd.f32 %v3758, %v3842
    %v3853 = vadd.f32 %v3759, %v3844
    %v3854 = vadd.f32 %v3760, %v3803
    %v3855 = vadd.f32 %v3761, %v3805
    %v3856 = vadd.f32 %v3762, %v3846
    %v3857 = vadd.f32 %v3763, %v3848
    %v3858 = vxor.u32 %v3850, 2147483648
    %v3859 = vxor.u32 %v3854, 2147483648
    %v3860 = vmul.f32 %v3858, 1.442695
    %v3861 = vpow.pop %v3860
    %v3862 = vmul.f32 %v3859, 1.442695
    %v3863 = vpow.pop %v3862
    %v3864 = vadd.f32 %v3861, 1.0
    %v3865 = vadd.f32 %v3863, 1.0
    %v3866 = vrcp.pop %v3864
    %v3867 = vmul.f32 1.0, %v3866
    %v3868 = vrcp.pop %v3865
    %v3869 = vmul.f32 1.0, %v3868
    %v3870 = vxor.u32 %v3851, 2147483648
    %v3871 = vxor.u32 %v3855, 2147483648
    %v3872 = vmul.f32 %v3870, 1.442695
    %v3873 = vpow.pop %v3872
    %v3874 = vmul.f32 %v3871, 1.442695
    %v3875 = vpow.pop %v3874
    %v3876 = vadd.f32 %v3873, 1.0
    %v3877 = vadd.f32 %v3875, 1.0
    %v3878 = vrcp.pop %v3876
    %v3879 = vmul.f32 1.0, %v3878
    %v3880 = vrcp.pop %v3877
    %v3881 = vmul.f32 1.0, %v3880
    %v3882 = vtanh.pop %v3852
    %v3883 = vtanh.pop %v3856
    %v3884 = vxor.u32 %v3853, 2147483648
    %v3885 = vxor.u32 %v3857, 2147483648
    %v3886 = vmul.f32 %v3884, 1.442695
    %v3887 = vpow.pop %v3886
    %v3888 = vmul.f32 %v3885, 1.442695
    %v3889 = vpow.pop %v3888
    %v3890 = vadd.f32 %v3887, 1.0
    %v3891 = vadd.f32 %v3889, 1.0
    %v3892 = vrcp.pop %v3890
    %v3893 = vmul.f32 1.0, %v3892
    %v3894 = vrcp.pop %v3891
    %v3895 = vmul.f32 1.0, %v3894
    %v3896 = vmul.f32 %v3879, %v3740
    %v3897 = vmul.f32 %v3881, %v3741
    %v3898 = vmul.f32 %v3867, %v3882
    %v3899 = vmul.f32 %v3869, %v3883
    %v3900 = vadd.f32 %v3896, %v3898
    %v3901 = vadd.f32 %v3897, %v3899
    %v3902 = vtanh.pop %v3900
    %v3903 = vtanh.pop %v3901
    %v3904 = vmul.f32 %v3893, %v3902
    %v3905 = vmul.f32 %v3895, %v3903
    %v3906 = vpack.c.bf16 %v3905, %v3904
    %v3908 = vunpack.c.l.b16 %v3906
    %v3909 = vunpack.c.h.b16 %v3906
    %v3910 = vpack.c.b16 %v3908, %v3908
    %v3911 = vpack.c.b16 %v3909, %v3909
    %3914 = vst [vmem:[%s1854] sm:$0xf] %v3910
    %3915 = vst [vmem:[%s1854 + $0x4] sm:$0xf] %v3911
    %v3916 = vld [vmem:[%s1859] sm:$0xff]
    %v3917 = vld [vmem:[%s1859 + $0x8] sm:$0xff]
    %v3918 = vld [vmem:[%s1859 + $0x10] sm:$0xff]
    %v3919 = vld [vmem:[%s1859 + $0x18] sm:$0xff]
    %v3920 = vld [vmem:[%s1859 + $0x20] sm:$0xff]
    %v3921 = vld [vmem:[%s1859 + $0x28] sm:$0xff]
    %v3922 = vld [vmem:[%s1859 + $0x30] sm:$0xff]
    %v3923 = vld [vmem:[%s1859 + $0x38] sm:$0xff]
    %3924 = vmatprep.subr.bf16.mxu0 %v2929
    %3925 = vmatpush1.bf16.msra.mxu0 %v2928
    %3926 = vmatprep.subr.bf16.mxu0 %v2925
    %3927 = vmatpush1.bf16.msra.mxu0 %v2924
    %3928 = vmatprep.subr.bf16.mxu0 %v2921
    %3929 = vmatpush1.bf16.msra.mxu0 %v2920
    %3930 = vmatprep.subr.bf16.mxu0 %v2917
    %3931 = vmatpush1.bf16.msra.mxu0 %v2916
    %3932 = vmatprep.subr.bf16.mxu0 %v2913
    %3933 = vmatpush1.bf16.msra.mxu0 %v2912
    %3934 = vmatprep.subr.bf16.mxu0 %v2909
    %3935 = vmatpush1.bf16.msra.mxu0 %v2908
    %3936 = vmatprep.subr.bf16.mxu0 %v2905
    %3937 = vmatpush1.bf16.msra.mxu0 %v2904
    %3938 = vmatprep.subr.bf16.mxu0 %v2901
    %3939 = vmatpush1.bf16.msra.mxu0 %v2900
    %3940 = vmatprep.subr.bf16.mxu0 0
    %3941 = vmatpush2.bf16.msra.mxu0 0
    %3942 = vmatprep.subr.bf16.mxu0 0
    %3943 = vmatpush2.bf16.msra.mxu0 0
    %3944 = vmatprep.subr.bf16.mxu0 0
    %3945 = vmatpush2.bf16.msra.mxu0 0
    %3946 = vmatprep.subr.bf16.mxu0 0
    %3947 = vmatpush2.bf16.msra.mxu0 0
    %3948 = vmatprep.subr.bf16.mxu0 0
    %3949 = vmatpush2.bf16.msra.mxu0 0
    %3950 = vmatprep.subr.bf16.mxu0 0
    %3951 = vmatpush2.bf16.msra.mxu0 0
    %3952 = vmatprep.subr.bf16.mxu0 0
    %3953 = vmatpush2.bf16.msra.mxu0 0
    %3954 = vmatprep.subr.bf16.mxu0 0
    %3955 = vmatpush2.bf16.msra.mxu0 0
    %3956 = vmatprep.mubr.bf16.mxu0 0
    %3957 = vmatmul.mubr.bf16.gmra.mxu0 %v3906
    %v3958 = vpop.f32.mrf.mxu0
    %v3959 = vadd.f32 0.0, %v3958
    %v3960 = vpop.f32.mrf.mxu0
    %v3961 = vadd.f32 0.0, %v3960
    %v3962 = vpop.f32.mrf.mxu0
    %v3963 = vadd.f32 0.0, %v3962
    %v3964 = vpop.f32.mrf.mxu0
    %v3965 = vadd.f32 0.0, %v3964
    %3966 = vdwg.mxu0
    %3967 = vmatprep.subr.bf16.mxu0 %v2931
    %3968 = vmatpush1.bf16.msra.mxu0 %v2930
    %3969 = vmatprep.subr.bf16.mxu0 %v2927
    %3970 = vmatpush1.bf16.msra.mxu0 %v2926
    %3971 = vmatprep.subr.bf16.mxu0 %v2923
    %3972 = vmatpush1.bf16.msra.mxu0 %v2922
    %3973 = vmatprep.subr.bf16.mxu0 %v2919
    %3974 = vmatpush1.bf16.msra.mxu0 %v2918
    %3975 = vmatprep.subr.bf16.mxu0 %v2915
    %3976 = vmatpush1.bf16.msra.mxu0 %v2914
    %3977 = vmatprep.subr.bf16.mxu0 %v2911
    %3978 = vmatpush1.bf16.msra.mxu0 %v2910
    %3979 = vmatprep.subr.bf16.mxu0 %v2907
    %3980 = vmatpush1.bf16.msra.mxu0 %v2906
    %3981 = vmatprep.subr.bf16.mxu0 %v2903
    %3982 = vmatpush1.bf16.msra.mxu0 %v2902
    %3983 = vmatprep.subr.bf16.mxu0 0
    %3984 = vmatpush2.bf16.msra.mxu0 0
    %3985 = vmatprep.subr.bf16.mxu0 0
    %3986 = vmatpush2.bf16.msra.mxu0 0
    %3987 = vmatprep.subr.bf16.mxu0 0
    %3988 = vmatpush2.bf16.msra.mxu0 0
    %3989 = vmatprep.subr.bf16.mxu0 0
    %3990 = vmatpush2.bf16.msra.mxu0 0
    %3991 = vmatprep.subr.bf16.mxu0 0
    %3992 = vmatpush2.bf16.msra.mxu0 0
    %3993 = vmatprep.subr.bf16.mxu0 0
    %3994 = vmatpush2.bf16.msra.mxu0 0
    %3995 = vmatprep.subr.bf16.mxu0 0
    %3996 = vmatpush2.bf16.msra.mxu0 0
    %3997 = vmatprep.subr.bf16.mxu0 0
    %3998 = vmatpush2.bf16.msra.mxu0 0
    %3999 = vmatprep.mubr.bf16.mxu0 0
    %4000 = vmatmul.mubr.bf16.gmra.mxu0 %v3906
    %v4001 = vpop.f32.mrf.mxu0
    %v4002 = vadd.f32 0.0, %v4001
    %v4003 = vpop.f32.mrf.mxu0
    %v4004 = vadd.f32 0.0, %v4003
    %v4005 = vpop.f32.mrf.mxu0
    %v4006 = vadd.f32 0.0, %v4005
    %v4007 = vpop.f32.mrf.mxu0
    %v4008 = vadd.f32 0.0, %v4007
    %4009 = vdwg.mxu0
    %v4010 = vadd.f32 %v3916, %v3959
    %v4011 = vadd.f32 %v3917, %v3961
    %v4012 = vadd.f32 %v3918, %v4002
    %v4013 = vadd.f32 %v3919, %v4004
    %v4014 = vadd.f32 %v3920, %v3963
    %v4015 = vadd.f32 %v3921, %v3965
    %v4016 = vadd.f32 %v3922, %v4006
    %v4017 = vadd.f32 %v3923, %v4008
    %v4018 = vxor.u32 %v4010, 2147483648
    %v4019 = vxor.u32 %v4014, 2147483648
    %v4020 = vmul.f32 %v4018, 1.442695
    %v4021 = vpow.pop %v4020
    %v4022 = vmul.f32 %v4019, 1.442695
    %v4023 = vpow.pop %v4022
    %v4024 = vadd.f32 %v4021, 1.0
    %v4025 = vadd.f32 %v4023, 1.0
    %v4026 = vrcp.pop %v4024
    %v4027 = vmul.f32 1.0, %v4026
    %v4028 = vrcp.pop %v4025
    %v4029 = vmul.f32 1.0, %v4028
    %v4030 = vxor.u32 %v4011, 2147483648
    %v4031 = vxor.u32 %v4015, 2147483648
    %v4032 = vmul.f32 %v4030, 1.442695
    %v4033 = vpow.pop %v4032
    %v4034 = vmul.f32 %v4031, 1.442695
    %v4035 = vpow.pop %v4034
    %v4036 = vadd.f32 %v4033, 1.0
    %v4037 = vadd.f32 %v4035, 1.0
    %v4038 = vrcp.pop %v4036
    %v4039 = vmul.f32 1.0, %v4038
    %v4040 = vrcp.pop %v4037
    %v4041 = vmul.f32 1.0, %v4040
    %v4042 = vtanh.pop %v4012
    %v4043 = vtanh.pop %v4016
    %v4044 = vxor.u32 %v4013, 2147483648
    %v4045 = vxor.u32 %v4017, 2147483648
    %v4046 = vmul.f32 %v4044, 1.442695
    %v4047 = vpow.pop %v4046
    %v4048 = vmul.f32 %v4045, 1.442695
    %v4049 = vpow.pop %v4048
    %v4050 = vadd.f32 %v4047, 1.0
    %v4051 = vadd.f32 %v4049, 1.0
    %v4052 = vrcp.pop %v4050
    %v4053 = vmul.f32 1.0, %v4052
    %v4054 = vrcp.pop %v4051
    %v4055 = vmul.f32 1.0, %v4054
    %v4056 = vmul.f32 %v4039, %v3900
    %v4057 = vmul.f32 %v4041, %v3901
    %v4058 = vmul.f32 %v4027, %v4042
    %v4059 = vmul.f32 %v4029, %v4043
    %v4060 = vadd.f32 %v4056, %v4058
    %v4061 = vadd.f32 %v4057, %v4059
    %v4062 = vtanh.pop %v4060
    %v4063 = vtanh.pop %v4061
    %v4064 = vmul.f32 %v4053, %v4062
    %v4065 = vmul.f32 %v4055, %v4063
    %v4066 = vpack.c.bf16 %v4065, %v4064
    %v4068 = vunpack.c.l.b16 %v4066
    %v4069 = vunpack.c.h.b16 %v4066
    %v4070 = vpack.c.b16 %v4068, %v4068
    %v4071 = vpack.c.b16 %v4069, %v4069
    %4074 = vst [vmem:[%s2018] sm:$0xf] %v4070
    %4075 = vst [vmem:[%s2018 + $0x4] sm:$0xf] %v4071
    %v4076 = vld [vmem:[%s2023] sm:$0xff]
    %v4077 = vld [vmem:[%s2023 + $0x8] sm:$0xff]
    %v4078 = vld [vmem:[%s2023 + $0x10] sm:$0xff]
    %v4079 = vld [vmem:[%s2023 + $0x18] sm:$0xff]
    %v4080 = vld [vmem:[%s2023 + $0x20] sm:$0xff]
    %v4081 = vld [vmem:[%s2023 + $0x28] sm:$0xff]
    %v4082 = vld [vmem:[%s2023 + $0x30] sm:$0xff]
    %v4083 = vld [vmem:[%s2023 + $0x38] sm:$0xff]
    %4084 = vmatprep.subr.bf16.mxu0 %v2929
    %4085 = vmatpush1.bf16.msra.mxu0 %v2928
    %4086 = vmatprep.subr.bf16.mxu0 %v2925
    %4087 = vmatpush1.bf16.msra.mxu0 %v2924
    %4088 = vmatprep.subr.bf16.mxu0 %v2921
    %4089 = vmatpush1.bf16.msra.mxu0 %v2920
    %4090 = vmatprep.subr.bf16.mxu0 %v2917
    %4091 = vmatpush1.bf16.msra.mxu0 %v2916
    %4092 = vmatprep.subr.bf16.mxu0 %v2913
    %4093 = vmatpush1.bf16.msra.mxu0 %v2912
    %4094 = vmatprep.subr.bf16.mxu0 %v2909
    %4095 = vmatpush1.bf16.msra.mxu0 %v2908
    %4096 = vmatprep.subr.bf16.mxu0 %v2905
    %4097 = vmatpush1.bf16.msra.mxu0 %v2904
    %4098 = vmatprep.subr.bf16.mxu0 %v2901
    %4099 = vmatpush1.bf16.msra.mxu0 %v2900
    %4100 = vmatprep.subr.bf16.mxu0 0
    %4101 = vmatpush2.bf16.msra.mxu0 0
    %4102 = vmatprep.subr.bf16.mxu0 0
    %4103 = vmatpush2.bf16.msra.mxu0 0
    %4104 = vmatprep.subr.bf16.mxu0 0
    %4105 = vmatpush2.bf16.msra.mxu0 0
    %4106 = vmatprep.subr.bf16.mxu0 0
    %4107 = vmatpush2.bf16.msra.mxu0 0
    %4108 = vmatprep.subr.bf16.mxu0 0
    %4109 = vmatpush2.bf16.msra.mxu0 0
    %4110 = vmatprep.subr.bf16.mxu0 0
    %4111 = vmatpush2.bf16.msra.mxu0 0
    %4112 = vmatprep.subr.bf16.mxu0 0
    %4113 = vmatpush2.bf16.msra.mxu0 0
    %4114 = vmatprep.subr.bf16.mxu0 0
    %4115 = vmatpush2.bf16.msra.mxu0 0
    %4116 = vmatprep.mubr.bf16.mxu0 0
    %4117 = vmatmul.mubr.bf16.gmra.mxu0 %v4066
    %v4118 = vpop.f32.mrf.mxu0
    %v4119 = vadd.f32 0.0, %v4118
    %v4120 = vpop.f32.mrf.mxu0
    %v4121 = vadd.f32 0.0, %v4120
    %v4122 = vpop.f32.mrf.mxu0
    %v4123 = vadd.f32 0.0, %v4122
    %v4124 = vpop.f32.mrf.mxu0
    %v4125 = vadd.f32 0.0, %v4124
    %4126 = vdwg.mxu0
    %4127 = vmatprep.subr.bf16.mxu0 %v2931
    %4128 = vmatpush1.bf16.msra.mxu0 %v2930
    %4129 = vmatprep.subr.bf16.mxu0 %v2927
    %4130 = vmatpush1.bf16.msra.mxu0 %v2926
    %4131 = vmatprep.subr.bf16.mxu0 %v2923
    %4132 = vmatpush1.bf16.msra.mxu0 %v2922
    %4133 = vmatprep.subr.bf16.mxu0 %v2919
    %4134 = vmatpush1.bf16.msra.mxu0 %v2918
    %4135 = vmatprep.subr.bf16.mxu0 %v2915
    %4136 = vmatpush1.bf16.msra.mxu0 %v2914
    %4137 = vmatprep.subr.bf16.mxu0 %v2911
    %4138 = vmatpush1.bf16.msra.mxu0 %v2910
    %4139 = vmatprep.subr.bf16.mxu0 %v2907
    %4140 = vmatpush1.bf16.msra.mxu0 %v2906
    %4141 = vmatprep.subr.bf16.mxu0 %v2903
    %4142 = vmatpush1.bf16.msra.mxu0 %v2902
    %4143 = vmatprep.subr.bf16.mxu0 0
    %4144 = vmatpush2.bf16.msra.mxu0 0
    %4145 = vmatprep.subr.bf16.mxu0 0
    %4146 = vmatpush2.bf16.msra.mxu0 0
    %4147 = vmatprep.subr.bf16.mxu0 0
    %4148 = vmatpush2.bf16.msra.mxu0 0
    %4149 = vmatprep.subr.bf16.mxu0 0
    %4150 = vmatpush2.bf16.msra.mxu0 0
    %4151 = vmatprep.subr.bf16.mxu0 0
    %4152 = vmatpush2.bf16.msra.mxu0 0
    %4153 = vmatprep.subr.bf16.mxu0 0
    %4154 = vmatpush2.bf16.msra.mxu0 0
    %4155 = vmatprep.subr.bf16.mxu0 0
    %4156 = vmatpush2.bf16.msra.mxu0 0
    %4157 = vmatprep.subr.bf16.mxu0 0
    %4158 = vmatpush2.bf16.msra.mxu0 0
    %4159 = vmatprep.mubr.bf16.mxu0 0
    %4160 = vmatmul.mubr.bf16.gmra.mxu0 %v4066
    %v4161 = vpop.f32.mrf.mxu0
    %v4162 = vadd.f32 0.0, %v4161
    %v4163 = vpop.f32.mrf.mxu0
    %v4164 = vadd.f32 0.0, %v4163
    %v4165 = vpop.f32.mrf.mxu0
    %v4166 = vadd.f32 0.0, %v4165
    %v4167 = vpop.f32.mrf.mxu0
    %v4168 = vadd.f32 0.0, %v4167
    %4169 = vdwg.mxu0
    %v4170 = vadd.f32 %v4076, %v4119
    %v4171 = vadd.f32 %v4077, %v4121
    %v4172 = vadd.f32 %v4078, %v4162
    %v4173 = vadd.f32 %v4079, %v4164
    %v4174 = vadd.f32 %v4080, %v4123
    %v4175 = vadd.f32 %v4081, %v4125
    %v4176 = vadd.f32 %v4082, %v4166
    %v4177 = vadd.f32 %v4083, %v4168
    %v4178 = vxor.u32 %v4170, 2147483648
    %v4179 = vxor.u32 %v4174, 2147483648
    %v4180 = vmul.f32 %v4178, 1.442695
    %v4181 = vpow.pop %v4180
    %v4182 = vmul.f32 %v4179, 1.442695
    %v4183 = vpow.pop %v4182
    %v4184 = vadd.f32 %v4181, 1.0
    %v4185 = vadd.f32 %v4183, 1.0
    %v4186 = vrcp.pop %v4184
    %v4187 = vmul.f32 1.0, %v4186
    %v4188 = vrcp.pop %v4185
    %v4189 = vmul.f32 1.0, %v4188
    %v4190 = vxor.u32 %v4171, 2147483648
    %v4191 = vxor.u32 %v4175, 2147483648
    %v4192 = vmul.f32 %v4190, 1.442695
    %v4193 = vpow.pop %v4192
    %v4194 = vmul.f32 %v4191, 1.442695
    %v4195 = vpow.pop %v4194
    %v4196 = vadd.f32 %v4193, 1.0
    %v4197 = vadd.f32 %v4195, 1.0
    %v4198 = vrcp.pop %v4196
    %v4199 = vmul.f32 1.0, %v4198
    %v4200 = vrcp.pop %v4197
    %v4201 = vmul.f32 1.0, %v4200
    %v4202 = vtanh.pop %v4172
    %v4203 = vtanh.pop %v4176
    %v4204 = vxor.u32 %v4173, 2147483648
    %v4205 = vxor.u32 %v4177, 2147483648
    %v4206 = vmul.f32 %v4204, 1.442695
    %v4207 = vpow.pop %v4206
    %v4208 = vmul.f32 %v4205, 1.442695
    %v4209 = vpow.pop %v4208
    %v4210 = vadd.f32 %v4207, 1.0
    %v4211 = vadd.f32 %v4209, 1.0
    %v4212 = vrcp.pop %v4210
    %v4213 = vmul.f32 1.0, %v4212
    %v4214 = vrcp.pop %v4211
    %v4215 = vmul.f32 1.0, %v4214
    %v4216 = vmul.f32 %v4199, %v4060
    %v4217 = vmul.f32 %v4201, %v4061
    %v4218 = vmul.f32 %v4187, %v4202
    %v4219 = vmul.f32 %v4189, %v4203
    %v4220 = vadd.f32 %v4216, %v4218
    %v4221 = vadd.f32 %v4217, %v4219
    %v4222 = vtanh.pop %v4220
    %v4223 = vtanh.pop %v4221
    %v4224 = vmul.f32 %v4213, %v4222
    %v4225 = vmul.f32 %v4215, %v4223
    %v4226 = vpack.c.bf16 %v4225, %v4224
    %v4228 = vunpack.c.l.b16 %v4226
    %v4229 = vunpack.c.h.b16 %v4226
    %v4230 = vpack.c.b16 %v4228, %v4228
    %v4231 = vpack.c.b16 %v4229, %v4229
    %4234 = vst [vmem:[%s2182] sm:$0xf] %v4230
    %4235 = vst [vmem:[%s2182 + $0x4] sm:$0xf] %v4231
    %4236 = vst [vmem:[%s2789] sm:$0xff] %v4224
    %4237 = vst [vmem:[%s2789 + $0x8] sm:$0xff] %v4225
    %4238 = vst [vmem:[%s2792] sm:$0xff] %v4220
    %4239 = vst [vmem:[%s2792 + $0x8] sm:$0xff] %v4221
    // Predicated region
    $region54: #{tpu_custom_call.1} parent=1 // pred_check
      _
    $region55: #{tpu_custom_call.1} parent=1 // pred_check_branch
      %4241 = sbr.rel (0) target = $region57
    $region56: #{tpu_custom_call.1} parent=1 // pred_region
      %s4243 = ssub.s32 1024, 1024
      %4244 = vsyncadd [#allocation6], %s4243
      %s4245 = sshll.u32 [#allocation13], 4
      %s4246 = int_to_ptr.vmem [resolvable:$true] %s4245
      %4251 = dma.vmem_to_hbm [thread:$0]  %s4246, 1024, %s7, [#allocation6], 64, 64, 4
    $region57: #{tpu_custom_call.1} parent=1 // pred_fallthru
      _
    // Predicated region
    $region58: #{tpu_custom_call.1} parent=1 // pred_check
      _
    $region59: #{tpu_custom_call.1} parent=1 // pred_check_branch
      %4253 = sbr.rel (0) target = $region61
    $region60: #{tpu_custom_call.1} parent=1 // pred_region
      %4254 = dma.done [#allocation6], 1024
    $region61: #{tpu_custom_call.1} parent=1 // pred_fallthru
      _
    %4255 = vsyncpa [#allocation5], 1
    %4256 = vsyncpa [#allocation8], 1
    %4257 = vsyncpa [#allocation11], 1
    %4258 = vsyncpa [#allocation6], 1

</llo_original>
